<compile_context>
chip_gen: v5e
topology: v5e:2x2
jax: 0.10.0
libtpu: 0.0.40
codegen_flags: <defaults>
</compile_context>

<pallas_src>
import numpy as np
import jax
import jax.numpy as jnp
from jax.experimental import pallas as pl
from jax.experimental.pallas import tpu as pltpu


# Taps grouped by padded-row / padded-col offset: offset r == py + i, c == px + j.
_OFFSET_PAIRS = {0: ((0, 0),), 1: ((0, 1), (1, 0)), 2: ((1, 1),)}


# ----------------------------- Pallas kernel ------------------------------ #
def fuse_kernel(x_ref, w_ref, b_ref, o_ref):
    """One (b, hb) grid step -> 2*Hb output rows of ConvTranspose2d(4,2,1)+ReLU.

    x_ref : (Hb+2, W+2, Cin) bf16  zero-padded NHWC rows hb*Hb .. hb*Hb+Hb+1
    w_ref : (16, Cin, Cout)  bf16  tap index t = ((py*2+px)*2 + i)*2 + j
    b_ref : (1, Cout)        f32   bias
    o_ref : (4, Hb*W, Cout)  f32   parity slab p = 2*py+px, row index = h*W + w
    """
    Hb = x_ref.shape[0] - 2
    W = x_ref.shape[1] - 2
    Cin = x_ref.shape[2]
    Cout = o_ref.shape[2]
    M = Hb * W

    bias = b_ref[...]                                            # (1, Cout) f32

    # Four per-parity f32 accumulators, filled by 16 MXU matmul-accumulates
    # that reuse the 9 unique shifted windows (one slice+flatten per (r, c)).
    accs = [jnp.zeros((M, Cout), jnp.float32) for _ in range(4)]
    for r in range(3):                                           # padded row offset
        for c in range(3):                                       # padded col offset
            win = x_ref[r:r + Hb, c:c + W, :].reshape(M, Cin)    # (M, Cin) bf16
            for (py, i) in _OFFSET_PAIRS[r]:
                for (px, j) in _OFFSET_PAIRS[c]:
                    p = py * 2 + px
                    t = (p * 2 + i) * 2 + j
                    accs[p] = accs[p] + jnp.dot(
                        win, w_ref[t], preferred_element_type=jnp.float32)

    for p in range(4):
        o_ref[p] = jnp.maximum(accs[p] + bias, 0.0).astype(o_ref.dtype)


# ------------------------------- JAX glue ---------------------------------- #
def pack_params(w_t, bias):
    """One-time packing: ConvTranspose2d weight (Cin,Cout,4,4) -> (16,Cin,Cout) bf16.

    Output pixel (2h+py, 2w+px) draws from padded input row h+py+i, col w+px+j
    through kernel tap (ky, kx) = (3-py-2i, 3-px-2j); only these 4 taps per
    parity are non-zero.
    """
    Cout = w_t.shape[1]
    slabs = []
    for py in range(2):
        for px in range(2):
            for i in range(2):
                for j in range(2):
                    slabs.append(w_t[:, :, 3 - py - 2 * i, 3 - px - 2 * j])
    w_packed = jnp.stack(slabs, axis=0).astype(jnp.bfloat16)      # (16, Cin, Cout)
    return w_packed, bias.reshape(1, Cout).astype(jnp.float32)


def _pick_hb(H, W, Cin, Cout, budget_bytes=20 * 1024 * 1024):
    """Largest divisor Hb of H (<= 64) whose per-step VMEM estimate fits the budget."""
    for hb in range(min(H, 64), 0, -1):
        if H % hb:
            continue
        est = (2 * (hb + 2) * (W + 2) * Cin * 2     # input block, 2 buffers, bf16
               + 16 * Cin * Cout * 2                # resident weights, 1 buffer
               + 2 * 4 * hb * W * Cout * 4)         # output block, 2 buffers, f32
        if est <= budget_bytes:
            return hb
    return 1


def secret_embedder_forward(image_features, secret_data, w_packed, bias2d):
    """Matches SecretEmbedder.forward (returns NCHW (B, Cout, 2H, 2W) float32)."""
    B, Cimg, H, W = image_features.shape
    S = secret_data.shape[1]
    Cin = Cimg + S
    Cout = w_packed.shape[-1]
    Hb = _pick_hb(H, W, Cin, Cout)
    nH = H // Hb

    # Channel-last bf16 activation, zero-padded by 1 in H/W (single fused pass).
    x_nhwc = jnp.transpose(image_features, (0, 2, 3, 1)).astype(jnp.bfloat16)
    sec = jnp.broadcast_to(secret_data.astype(jnp.bfloat16)[:, None, None, :],
                           (B, H, W, S))
    comb = jnp.concatenate([x_nhwc, sec], axis=-1)                 # (B, H, W, Cin)
    xp = jnp.pad(comb, ((0, 0), (1, 1), (1, 1), (0, 0)))           # (B, H+2, W+2, Cin)

    # One halo'd (Hb+2)-row window per grid step.  nH == 1 (typical feature-map
    # sizes) is a free axis insert; otherwise overlapping windows are built once
    # ((Hb+2)/Hb read amplification instead of 3x per-row re-reads).
    if nH == 1:
        xblk = xp[:, None]                                         # (B, 1, H+2, W+2, Cin)
    else:
        xblk = jnp.stack([xp[:, i * Hb:i * Hb + Hb + 2] for i in range(nH)],
                         axis=1)                                   # (B, nH, Hb+2, W+2, Cin)

    y = pl.pallas_call(
        fuse_kernel,
        out_shape=jax.ShapeDtypeStruct((B, nH, 4, Hb * W, Cout), jnp.float32),
        grid_spec=pltpu.PrefetchScalarGridSpec(
            num_scalar_prefetch=0,
            grid=(B, nH),
            in_specs=[
                pl.BlockSpec((None, None, Hb + 2, W + 2, Cin),
                             lambda b, hb: (b, hb, 0, 0, 0)),
                # Resident weights: constant index_map -> fetched once; single
                # buffer avoids a wasted second 1.31 MiB copy.
                pl.BlockSpec((16, Cin, Cout), lambda b, hb: (0, 0, 0),
                             pipeline_mode=pl.Buffered(1)),
                pl.BlockSpec((1, Cout), lambda b, hb: (0, 0)),
            ],
            out_specs=pl.BlockSpec((None, None, 4, Hb * W, Cout),
                                   lambda b, hb: (b, hb, 0, 0, 0)),
        ),
        compiler_params=pltpu.CompilerParams(
            dimension_semantics=("parallel", "parallel")),
    )(xblk, w_packed, bias2d)

    # (B, nH, py, px, Hb, W, C) -> NCHW (B, C, 2H, 2W): one fused transpose.
    y = y.reshape(B, nH, 2, 2, Hb, W, Cout).transpose(0, 6, 1, 4, 2, 5, 3)
    return y.reshape(B, Cout, 2 * H, 2 * W)


def reference_forward(image_features, secret_data, w_t, bias):
    """Pure-JAX reference (== PyTorch ConvTranspose2d(k=4,s=2,p=1) + ReLU)."""
    B, _, H, W = image_features.shape
    S = secret_data.shape[1]
    secret_map = jnp.broadcast_to(secret_data.reshape(B, S, 1, 1), (B, S, H, W))
    combined = jnp.concatenate([image_features, secret_map], axis=1)
    rhs = jnp.flip(w_t, axis=(2, 3)).transpose(1, 0, 2, 3)          # (Cout, Cin, 4, 4)
    out = jax.lax.conv_general_dilated(
        combined, rhs, window_strides=(1, 1), padding=[(2, 2), (2, 2)],
        lhs_dilation=(2, 2), dimension_numbers=("NCHW", "OIHW", "NCHW"),
        precision=jax.lax.Precision.HIGHEST)
    out = out + bias[None, :, None, None]
    return jnp.maximum(out, 0.0)


if __name__ == "__main__":
    key = jax.random.PRNGKey(0)
    k_img, k_sec, k_w, k_b = jax.random.split(key, 4)

    B, H, W = 2, 8, 8
    secret_size = 64
    Cin_img, Cout = 256, 128

    image_features = jax.random.normal(k_img, (B, Cin_img, H, W), jnp.float32)
    secret_data = jax.random.normal(k_sec, (B, secret_size), jnp.float32)

    # Synthetic parameters in PyTorch ConvTranspose2d layout: (Cin, Cout, kH, kW)
    w_t = jax.random.normal(k_w, (Cin_img + secret_size, Cout, 4, 4), jnp.float32) * 0.02
    bias = jax.random.normal(k_b, (Cout,), jnp.float32) * 0.02

    # One-time weight packing, hoisted out of the forward path.
    w_packed, bias2d = pack_params(w_t, bias)

    fwd = jax.jit(secret_embedder_forward)
    out = jax.block_until_ready(fwd(image_features, secret_data, w_packed, bias2d))
    assert out.shape == (B, Cout, 2 * H, 2 * W), out.shape

    ref = jax.block_until_ready(
        reference_forward(image_features, secret_data, w_t, bias))
    if not np.allclose(np.asarray(out), np.asarray(ref), atol=5e-2, rtol=5e-2):
        err = float(np.max(np.abs(np.asarray(out) - np.asarray(ref))))
        raise AssertionError(f"Pallas result does not match reference (max |err|={err})")

    print("KERNEL_OK")
</pallas_src>

<mosaic_0001>
module attributes {stable_mosaic.version = 11 : i64} {
  func.func @fuse_kernel(%arg0: i32, %arg1: i32, %arg2: memref<1x1x10x10x320xbf16, #tpu.memory_space<vmem>>, %arg3: memref<16x320x128xbf16, #tpu.memory_space<vmem>>, %arg4: memref<1x128xf32, #tpu.memory_space<vmem>>, %arg5: memref<1x1x4x64x128xf32, #tpu.memory_space<vmem>>) attributes {dimension_semantics = [#tpu.dimension_semantics<parallel>, #tpu.dimension_semantics<parallel>], iteration_bounds = array<i64: 2, 1>, scalar_prefetch = 0 : i64, scratch_operands = 0 : i64, tpu.core_type = #tpu.core_type<tc>, window_params = [{transform_indices = @transform_0, window_bounds = array<i64: 1, 1, 10, 10, 320>}, {pipeline_mode = #tpu.pipeline_mode<synchronous>, transform_indices = @transform_1, window_bounds = array<i64: 16, 320, 128>}, {pipeline_mode = #tpu.pipeline_mode<synchronous>, transform_indices = @transform_2, window_bounds = array<i64: 1, 128>}, {transform_indices = @transform_3, window_bounds = array<i64: 1, 1, 4, 64, 128>}]} {
    %c0 = arith.constant 0 : index
    %c0_0 = arith.constant 0 : index
    %0 = vector.load %arg4[%c0, %c0_0] : memref<1x128xf32, #tpu.memory_space<vmem>>, vector<1x128xf32>
    %cst = arith.constant 0.000000e+00 : f32
    %1 = vector.broadcast %cst : f32 to vector<64x128xf32>
    %cst_1 = arith.constant 0.000000e+00 : f32
    %2 = vector.broadcast %cst_1 : f32 to vector<64x128xf32>
    %cst_2 = arith.constant 0.000000e+00 : f32
    %3 = vector.broadcast %cst_2 : f32 to vector<64x128xf32>
    %cst_3 = arith.constant 0.000000e+00 : f32
    %4 = vector.broadcast %cst_3 : f32 to vector<64x128xf32>
    %c0_4 = arith.constant 0 : index
    %c0_5 = arith.constant 0 : index
    %c0_6 = arith.constant 0 : index
    %c0_7 = arith.constant 0 : index
    %c0_8 = arith.constant 0 : index
    %5 = vector.load %arg2[%c0_4, %c0_5, %c0_6, %c0_7, %c0_8] : memref<1x1x10x10x320xbf16, #tpu.memory_space<vmem>>, vector<1x1x8x8x320xbf16>
    %6 = vector.shape_cast %5 : vector<1x1x8x8x320xbf16> to vector<8x8x320xbf16>
    %7 = vector.shape_cast %6 : vector<8x8x320xbf16> to vector<64x320xbf16>
    %c0_9 = arith.constant 0 : index
    %c0_10 = arith.constant 0 : index
    %c0_11 = arith.constant 0 : index
    %8 = vector.load %arg3[%c0_9, %c0_10, %c0_11] : memref<16x320x128xbf16, #tpu.memory_space<vmem>>, vector<1x320x128xbf16>
    %9 = vector.shape_cast %8 : vector<1x320x128xbf16> to vector<320x128xbf16>
    %cst_12 = arith.constant dense<0.000000e+00> : vector<64x128xf32>
    %10 = tpu.matmul %7, %9, %cst_12 {dimension_numbers = #tpu.dot_dimension_numbers<[1], [0], [0], [1], [0, 0, 1, 1], [], []>} : vector<64x320xbf16>, vector<320x128xbf16>, vector<64x128xf32> -> vector<64x128xf32>
    %11 = arith.addf %1, %10 : vector<64x128xf32>
    %c0_13 = arith.constant 0 : index
    %c0_14 = arith.constant 0 : index
    %c0_15 = arith.constant 0 : index
    %c1 = arith.constant 1 : index
    %c0_16 = arith.constant 0 : index
    %12 = vector.load %arg2[%c0_13, %c0_14, %c0_15, %c1, %c0_16] : memref<1x1x10x10x320xbf16, #tpu.memory_space<vmem>>, vector<1x1x8x8x320xbf16>
    %13 = vector.shape_cast %12 : vector<1x1x8x8x320xbf16> to vector<8x8x320xbf16>
    %14 = vector.shape_cast %13 : vector<8x8x320xbf16> to vector<64x320xbf16>
    %c1_17 = arith.constant 1 : index
    %c0_18 = arith.constant 0 : index
    %c0_19 = arith.constant 0 : index
    %15 = vector.load %arg3[%c1_17, %c0_18, %c0_19] : memref<16x320x128xbf16, #tpu.memory_space<vmem>>, vector<1x320x128xbf16>
    %16 = vector.shape_cast %15 : vector<1x320x128xbf16> to vector<320x128xbf16>
    %cst_20 = arith.constant dense<0.000000e+00> : vector<64x128xf32>
    %17 = tpu.matmul %14, %16, %cst_20 {dimension_numbers = #tpu.dot_dimension_numbers<[1], [0], [0], [1], [0, 0, 1, 1], [], []>} : vector<64x320xbf16>, vector<320x128xbf16>, vector<64x128xf32> -> vector<64x128xf32>
    %18 = arith.addf %11, %17 : vector<64x128xf32>
    %c4 = arith.constant 4 : index
    %c0_21 = arith.constant 0 : index
    %c0_22 = arith.constant 0 : index
    %19 = vector.load %arg3[%c4, %c0_21, %c0_22] : memref<16x320x128xbf16, #tpu.memory_space<vmem>>, vector<1x320x128xbf16>
    %20 = vector.shape_cast %19 : vector<1x320x128xbf16> to vector<320x128xbf16>
    %cst_23 = arith.constant dense<0.000000e+00> : vector<64x128xf32>
    %21 = tpu.matmul %14, %20, %cst_23 {dimension_numbers = #tpu.dot_dimension_numbers<[1], [0], [0], [1], [0, 0, 1, 1], [], []>} : vector<64x320xbf16>, vector<320x128xbf16>, vector<64x128xf32> -> vector<64x128xf32>
    %22 = arith.addf %2, %21 : vector<64x128xf32>
    %c0_24 = arith.constant 0 : index
    %c0_25 = arith.constant 0 : index
    %c0_26 = arith.constant 0 : index
    %c2 = arith.constant 2 : index
    %c0_27 = arith.constant 0 : index
    %23 = vector.load %arg2[%c0_24, %c0_25, %c0_26, %c2, %c0_27] : memref<1x1x10x10x320xbf16, #tpu.memory_space<vmem>>, vector<1x1x8x8x320xbf16>
    %24 = vector.shape_cast %23 : vector<1x1x8x8x320xbf16> to vector<8x8x320xbf16>
    %25 = vector.shape_cast %24 : vector<8x8x320xbf16> to vector<64x320xbf16>
    %c5 = arith.constant 5 : index
    %c0_28 = arith.constant 0 : index
    %c0_29 = arith.constant 0 : index
    %26 = vector.load %arg3[%c5, %c0_28, %c0_29] : memref<16x320x128xbf16, #tpu.memory_space<vmem>>, vector<1x320x128xbf16>
    %27 = vector.shape_cast %26 : vector<1x320x128xbf16> to vector<320x128xbf16>
    %cst_30 = arith.constant dense<0.000000e+00> : vector<64x128xf32>
    %28 = tpu.matmul %25, %27, %cst_30 {dimension_numbers = #tpu.dot_dimension_numbers<[1], [0], [0], [1], [0, 0, 1, 1], [], []>} : vector<64x320xbf16>, vector<320x128xbf16>, vector<64x128xf32> -> vector<64x128xf32>
    %29 = arith.addf %22, %28 : vector<64x128xf32>
    %c0_31 = arith.constant 0 : index
    %c0_32 = arith.constant 0 : index
    %c1_33 = arith.constant 1 : index
    %c0_34 = arith.constant 0 : index
    %c0_35 = arith.constant 0 : index
    %30 = vector.load %arg2[%c0_31, %c0_32, %c1_33, %c0_34, %c0_35] : memref<1x1x10x10x320xbf16, #tpu.memory_space<vmem>>, vector<1x1x8x8x320xbf16>
    %31 = vector.shape_cast %30 : vector<1x1x8x8x320xbf16> to vector<8x8x320xbf16>
    %32 = vector.shape_cast %31 : vector<8x8x320xbf16> to vector<64x320xbf16>
    %c2_36 = arith.constant 2 : index
    %c0_37 = arith.constant 0 : index
    %c0_38 = arith.constant 0 : index
    %33 = vector.load %arg3[%c2_36, %c0_37, %c0_38] : memref<16x320x128xbf16, #tpu.memory_space<vmem>>, vector<1x320x128xbf16>
    %34 = vector.shape_cast %33 : vector<1x320x128xbf16> to vector<320x128xbf16>
    %cst_39 = arith.constant dense<0.000000e+00> : vector<64x128xf32>
    %35 = tpu.matmul %32, %34, %cst_39 {dimension_numbers = #tpu.dot_dimension_numbers<[1], [0], [0], [1], [0, 0, 1, 1], [], []>} : vector<64x320xbf16>, vector<320x128xbf16>, vector<64x128xf32> -> vector<64x128xf32>
    %36 = arith.addf %18, %35 : vector<64x128xf32>
    %c8 = arith.constant 8 : index
    %c0_40 = arith.constant 0 : index
    %c0_41 = arith.constant 0 : index
    %37 = vector.load %arg3[%c8, %c0_40, %c0_41] : memref<16x320x128xbf16, #tpu.memory_space<vmem>>, vector<1x320x128xbf16>
    %38 = vector.shape_cast %37 : vector<1x320x128xbf16> to vector<320x128xbf16>
    %cst_42 = arith.constant dense<0.000000e+00> : vector<64x128xf32>
    %39 = tpu.matmul %32, %38, %cst_42 {dimension_numbers = #tpu.dot_dimension_numbers<[1], [0], [0], [1], [0, 0, 1, 1], [], []>} : vector<64x320xbf16>, vector<320x128xbf16>, vector<64x128xf32> -> vector<64x128xf32>
    %40 = arith.addf %3, %39 : vector<64x128xf32>
    %c0_43 = arith.constant 0 : index
    %c0_44 = arith.constant 0 : index
    %c1_45 = arith.constant 1 : index
    %c1_46 = arith.constant 1 : index
    %c0_47 = arith.constant 0 : index
    %41 = vector.load %arg2[%c0_43, %c0_44, %c1_45, %c1_46, %c0_47] : memref<1x1x10x10x320xbf16, #tpu.memory_space<vmem>>, vector<1x1x8x8x320xbf16>
    %42 = vector.shape_cast %41 : vector<1x1x8x8x320xbf16> to vector<8x8x320xbf16>
    %43 = vector.shape_cast %42 : vector<8x8x320xbf16> to vector<64x320xbf16>
    %c3 = arith.constant 3 : index
    %c0_48 = arith.constant 0 : index
    %c0_49 = arith.constant 0 : index
    %44 = vector.load %arg3[%c3, %c0_48, %c0_49] : memref<16x320x128xbf16, #tpu.memory_space<vmem>>, vector<1x320x128xbf16>
    %45 = vector.shape_cast %44 : vector<1x320x128xbf16> to vector<320x128xbf16>
    %cst_50 = arith.constant dense<0.000000e+00> : vector<64x128xf32>
    %46 = tpu.matmul %43, %45, %cst_50 {dimension_numbers = #tpu.dot_dimension_numbers<[1], [0], [0], [1], [0, 0, 1, 1], [], []>} : vector<64x320xbf16>, vector<320x128xbf16>, vector<64x128xf32> -> vector<64x128xf32>
    %47 = arith.addf %36, %46 : vector<64x128xf32>
    %c6 = arith.constant 6 : index
    %c0_51 = arith.constant 0 : index
    %c0_52 = arith.constant 0 : index
    %48 = vector.load %arg3[%c6, %c0_51, %c0_52] : memref<16x320x128xbf16, #tpu.memory_space<vmem>>, vector<1x320x128xbf16>
    %49 = vector.shape_cast %48 : vector<1x320x128xbf16> to vector<320x128xbf16>
    %cst_53 = arith.constant dense<0.000000e+00> : vector<64x128xf32>
    %50 = tpu.matmul %43, %49, %cst_53 {dimension_numbers = #tpu.dot_dimension_numbers<[1], [0], [0], [1], [0, 0, 1, 1], [], []>} : vector<64x320xbf16>, vector<320x128xbf16>, vector<64x128xf32> -> vector<64x128xf32>
    %51 = arith.addf %29, %50 : vector<64x128xf32>
    %c9 = arith.constant 9 : index
    %c0_54 = arith.constant 0 : index
    %c0_55 = arith.constant 0 : index
    %52 = vector.load %arg3[%c9, %c0_54, %c0_55] : memref<16x320x128xbf16, #tpu.memory_space<vmem>>, vector<1x320x128xbf16>
    %53 = vector.shape_cast %52 : vector<1x320x128xbf16> to vector<320x128xbf16>
    %cst_56 = arith.constant dense<0.000000e+00> : vector<64x128xf32>
    %54 = tpu.matmul %43, %53, %cst_56 {dimension_numbers = #tpu.dot_dimension_numbers<[1], [0], [0], [1], [0, 0, 1, 1], [], []>} : vector<64x320xbf16>, vector<320x128xbf16>, vector<64x128xf32> -> vector<64x128xf32>
    %55 = arith.addf %40, %54 : vector<64x128xf32>
    %c12 = arith.constant 12 : index
    %c0_57 = arith.constant 0 : index
    %c0_58 = arith.constant 0 : index
    %56 = vector.load %arg3[%c12, %c0_57, %c0_58] : memref<16x320x128xbf16, #tpu.memory_space<vmem>>, vector<1x320x128xbf16>
    %57 = vector.shape_cast %56 : vector<1x320x128xbf16> to vector<320x128xbf16>
    %cst_59 = arith.constant dense<0.000000e+00> : vector<64x128xf32>
    %58 = tpu.matmul %43, %57, %cst_59 {dimension_numbers = #tpu.dot_dimension_numbers<[1], [0], [0], [1], [0, 0, 1, 1], [], []>} : vector<64x320xbf16>, vector<320x128xbf16>, vector<64x128xf32> -> vector<64x128xf32>
    %59 = arith.addf %4, %58 : vector<64x128xf32>
    %c0_60 = arith.constant 0 : index
    %c0_61 = arith.constant 0 : index
    %c1_62 = arith.constant 1 : index
    %c2_63 = arith.constant 2 : index
    %c0_64 = arith.constant 0 : index
    %60 = vector.load %arg2[%c0_60, %c0_61, %c1_62, %c2_63, %c0_64] : memref<1x1x10x10x320xbf16, #tpu.memory_space<vmem>>, vector<1x1x8x8x320xbf16>
    %61 = vector.shape_cast %60 : vector<1x1x8x8x320xbf16> to vector<8x8x320xbf16>
    %62 = vector.shape_cast %61 : vector<8x8x320xbf16> to vector<64x320xbf16>
    %c7 = arith.constant 7 : index
    %c0_65 = arith.constant 0 : index
    %c0_66 = arith.constant 0 : index
    %63 = vector.load %arg3[%c7, %c0_65, %c0_66] : memref<16x320x128xbf16, #tpu.memory_space<vmem>>, vector<1x320x128xbf16>
    %64 = vector.shape_cast %63 : vector<1x320x128xbf16> to vector<320x128xbf16>
    %cst_67 = arith.constant dense<0.000000e+00> : vector<64x128xf32>
    %65 = tpu.matmul %62, %64, %cst_67 {dimension_numbers = #tpu.dot_dimension_numbers<[1], [0], [0], [1], [0, 0, 1, 1], [], []>} : vector<64x320xbf16>, vector<320x128xbf16>, vector<64x128xf32> -> vector<64x128xf32>
    %66 = arith.addf %51, %65 : vector<64x128xf32>
    %c13 = arith.constant 13 : index
    %c0_68 = arith.constant 0 : index
    %c0_69 = arith.constant 0 : index
    %67 = vector.load %arg3[%c13, %c0_68, %c0_69] : memref<16x320x128xbf16, #tpu.memory_space<vmem>>, vector<1x320x128xbf16>
    %68 = vector.shape_cast %67 : vector<1x320x128xbf16> to vector<320x128xbf16>
    %cst_70 = arith.constant dense<0.000000e+00> : vector<64x128xf32>
    %69 = tpu.matmul %62, %68, %cst_70 {dimension_numbers = #tpu.dot_dimension_numbers<[1], [0], [0], [1], [0, 0, 1, 1], [], []>} : vector<64x320xbf16>, vector<320x128xbf16>, vector<64x128xf32> -> vector<64x128xf32>
    %70 = arith.addf %59, %69 : vector<64x128xf32>
    %c0_71 = arith.constant 0 : index
    %c0_72 = arith.constant 0 : index
    %c2_73 = arith.constant 2 : index
    %c0_74 = arith.constant 0 : index
    %c0_75 = arith.constant 0 : index
    %71 = vector.load %arg2[%c0_71, %c0_72, %c2_73, %c0_74, %c0_75] : memref<1x1x10x10x320xbf16, #tpu.memory_space<vmem>>, vector<1x1x8x8x320xbf16>
    %72 = vector.shape_cast %71 : vector<1x1x8x8x320xbf16> to vector<8x8x320xbf16>
    %73 = vector.shape_cast %72 : vector<8x8x320xbf16> to vector<64x320xbf16>
    %c10 = arith.constant 10 : index
    %c0_76 = arith.constant 0 : index
    %c0_77 = arith.constant 0 : index
    %74 = vector.load %arg3[%c10, %c0_76, %c0_77] : memref<16x320x128xbf16, #tpu.memory_space<vmem>>, vector<1x320x128xbf16>
    %75 = vector.shape_cast %74 : vector<1x320x128xbf16> to vector<320x128xbf16>
    %cst_78 = arith.constant dense<0.000000e+00> : vector<64x128xf32>
    %76 = tpu.matmul %73, %75, %cst_78 {dimension_numbers = #tpu.dot_dimension_numbers<[1], [0], [0], [1], [0, 0, 1, 1], [], []>} : vector<64x320xbf16>, vector<320x128xbf16>, vector<64x128xf32> -> vector<64x128xf32>
    %77 = arith.addf %55, %76 : vector<64x128xf32>
    %c0_79 = arith.constant 0 : index
    %c0_80 = arith.constant 0 : index
    %c2_81 = arith.constant 2 : index
    %c1_82 = arith.constant 1 : index
    %c0_83 = arith.constant 0 : index
    %78 = vector.load %arg2[%c0_79, %c0_80, %c2_81, %c1_82, %c0_83] : memref<1x1x10x10x320xbf16, #tpu.memory_space<vmem>>, vector<1x1x8x8x320xbf16>
    %79 = vector.shape_cast %78 : vector<1x1x8x8x320xbf16> to vector<8x8x320xbf16>
    %80 = vector.shape_cast %79 : vector<8x8x320xbf16> to vector<64x320xbf16>
    %c11 = arith.constant 11 : index
    %c0_84 = arith.constant 0 : index
    %c0_85 = arith.constant 0 : index
    %81 = vector.load %arg3[%c11, %c0_84, %c0_85] : memref<16x320x128xbf16, #tpu.memory_space<vmem>>, vector<1x320x128xbf16>
    %82 = vector.shape_cast %81 : vector<1x320x128xbf16> to vector<320x128xbf16>
    %cst_86 = arith.constant dense<0.000000e+00> : vector<64x128xf32>
    %83 = tpu.matmul %80, %82, %cst_86 {dimension_numbers = #tpu.dot_dimension_numbers<[1], [0], [0], [1], [0, 0, 1, 1], [], []>} : vector<64x320xbf16>, vector<320x128xbf16>, vector<64x128xf32> -> vector<64x128xf32>
    %84 = arith.addf %77, %83 : vector<64x128xf32>
    %c14 = arith.constant 14 : index
    %c0_87 = arith.constant 0 : index
    %c0_88 = arith.constant 0 : index
    %85 = vector.load %arg3[%c14, %c0_87, %c0_88] : memref<16x320x128xbf16, #tpu.memory_space<vmem>>, vector<1x320x128xbf16>
    %86 = vector.shape_cast %85 : vector<1x320x128xbf16> to vector<320x128xbf16>
    %cst_89 = arith.constant dense<0.000000e+00> : vector<64x128xf32>
    %87 = tpu.matmul %80, %86, %cst_89 {dimension_numbers = #tpu.dot_dimension_numbers<[1], [0], [0], [1], [0, 0, 1, 1], [], []>} : vector<64x320xbf16>, vector<320x128xbf16>, vector<64x128xf32> -> vector<64x128xf32>
    %88 = arith.addf %70, %87 : vector<64x128xf32>
    %c0_90 = arith.constant 0 : index
    %c0_91 = arith.constant 0 : index
    %c2_92 = arith.constant 2 : index
    %c2_93 = arith.constant 2 : index
    %c0_94 = arith.constant 0 : index
    %89 = vector.load %arg2[%c0_90, %c0_91, %c2_92, %c2_93, %c0_94] : memref<1x1x10x10x320xbf16, #tpu.memory_space<vmem>>, vector<1x1x8x8x320xbf16>
    %90 = vector.shape_cast %89 : vector<1x1x8x8x320xbf16> to vector<8x8x320xbf16>
    %91 = vector.shape_cast %90 : vector<8x8x320xbf16> to vector<64x320xbf16>
    %c15 = arith.constant 15 : index
    %c0_95 = arith.constant 0 : index
    %c0_96 = arith.constant 0 : index
    %92 = vector.load %arg3[%c15, %c0_95, %c0_96] : memref<16x320x128xbf16, #tpu.memory_space<vmem>>, vector<1x320x128xbf16>
    %93 = vector.shape_cast %92 : vector<1x320x128xbf16> to vector<320x128xbf16>
    %cst_97 = arith.constant dense<0.000000e+00> : vector<64x128xf32>
    %94 = tpu.matmul %91, %93, %cst_97 {dimension_numbers = #tpu.dot_dimension_numbers<[1], [0], [0], [1], [0, 0, 1, 1], [], []>} : vector<64x320xbf16>, vector<320x128xbf16>, vector<64x128xf32> -> vector<64x128xf32>
    %95 = arith.addf %88, %94 : vector<64x128xf32>
    %96 = vector.broadcast %0 : vector<1x128xf32> to vector<64x128xf32>
    %97 = arith.addf %47, %96 : vector<64x128xf32>
    %cst_98 = arith.constant 0.000000e+00 : f32
    %98 = vector.broadcast %cst_98 : f32 to vector<64x128xf32>
    %99 = arith.maximumf %97, %98 : vector<64x128xf32>
    %c0_99 = arith.constant 0 : index
    %c0_100 = arith.constant 0 : index
    %c0_101 = arith.constant 0 : index
    %c0_102 = arith.constant 0 : index
    %c0_103 = arith.constant 0 : index
    %100 = vector.load %arg5[%c0_99, %c0_100, %c0_101, %c0_102, %c0_103] : memref<1x1x4x64x128xf32, #tpu.memory_space<vmem>>, vector<1x1x1x64x128xf32>
    %101 = vector.shape_cast %100 : vector<1x1x1x64x128xf32> to vector<64x128xf32>
    %102 = vector.shape_cast %99 : vector<64x128xf32> to vector<1x1x1x64x128xf32>
    tpu.vector_store %arg5[%c0_99, %c0_100, %c0_101, %c0_102, %c0_103], %102 {strides = array<i32>} : memref<1x1x4x64x128xf32, #tpu.memory_space<vmem>>, vector<1x1x1x64x128xf32>,
    %103 = vector.broadcast %0 : vector<1x128xf32> to vector<64x128xf32>
    %104 = arith.addf %66, %103 : vector<64x128xf32>
    %cst_104 = arith.constant 0.000000e+00 : f32
    %105 = vector.broadcast %cst_104 : f32 to vector<64x128xf32>
    %106 = arith.maximumf %104, %105 : vector<64x128xf32>
    %c0_105 = arith.constant 0 : index
    %c0_106 = arith.constant 0 : index
    %c1_107 = arith.constant 1 : index
    %c0_108 = arith.constant 0 : index
    %c0_109 = arith.constant 0 : index
    %107 = vector.load %arg5[%c0_105, %c0_106, %c1_107, %c0_108, %c0_109] : memref<1x1x4x64x128xf32, #tpu.memory_space<vmem>>, vector<1x1x1x64x128xf32>
    %108 = vector.shape_cast %107 : vector<1x1x1x64x128xf32> to vector<64x128xf32>
    %109 = vector.shape_cast %106 : vector<64x128xf32> to vector<1x1x1x64x128xf32>
    tpu.vector_store %arg5[%c0_105, %c0_106, %c1_107, %c0_108, %c0_109], %109 {strides = array<i32>} : memref<1x1x4x64x128xf32, #tpu.memory_space<vmem>>, vector<1x1x1x64x128xf32>,
    %110 = vector.broadcast %0 : vector<1x128xf32> to vector<64x128xf32>
    %111 = arith.addf %84, %110 : vector<64x128xf32>
    %cst_110 = arith.constant 0.000000e+00 : f32
    %112 = vector.broadcast %cst_110 : f32 to vector<64x128xf32>
    %113 = arith.maximumf %111, %112 : vector<64x128xf32>
    %c0_111 = arith.constant 0 : index
    %c0_112 = arith.constant 0 : index
    %c2_113 = arith.constant 2 : index
    %c0_114 = arith.constant 0 : index
    %c0_115 = arith.constant 0 : index
    %114 = vector.load %arg5[%c0_111, %c0_112, %c2_113, %c0_114, %c0_115] : memref<1x1x4x64x128xf32, #tpu.memory_space<vmem>>, vector<1x1x1x64x128xf32>
    %115 = vector.shape_cast %114 : vector<1x1x1x64x128xf32> to vector<64x128xf32>
    %116 = vector.shape_cast %113 : vector<64x128xf32> to vector<1x1x1x64x128xf32>
    tpu.vector_store %arg5[%c0_111, %c0_112, %c2_113, %c0_114, %c0_115], %116 {strides = array<i32>} : memref<1x1x4x64x128xf32, #tpu.memory_space<vmem>>, vector<1x1x1x64x128xf32>,
    %117 = vector.broadcast %0 : vector<1x128xf32> to vector<64x128xf32>
    %118 = arith.addf %95, %117 : vector<64x128xf32>
    %cst_116 = arith.constant 0.000000e+00 : f32
    %119 = vector.broadcast %cst_116 : f32 to vector<64x128xf32>
    %120 = arith.maximumf %118, %119 : vector<64x128xf32>
    %c0_117 = arith.constant 0 : index
    %c0_118 = arith.constant 0 : index
    %c3_119 = arith.constant 3 : index
    %c0_120 = arith.constant 0 : index
    %c0_121 = arith.constant 0 : index
    %121 = vector.load %arg5[%c0_117, %c0_118, %c3_119, %c0_120, %c0_121] : memref<1x1x4x64x128xf32, #tpu.memory_space<vmem>>, vector<1x1x1x64x128xf32>
    %122 = vector.shape_cast %121 : vector<1x1x1x64x128xf32> to vector<64x128xf32>
    %123 = vector.shape_cast %120 : vector<64x128xf32> to vector<1x1x1x64x128xf32>
    tpu.vector_store %arg5[%c0_117, %c0_118, %c3_119, %c0_120, %c0_121], %123 {strides = array<i32>} : memref<1x1x4x64x128xf32, #tpu.memory_space<vmem>>, vector<1x1x1x64x128xf32>,
    return
  }
  func.func @transform_0(%arg0: i32, %arg1: i32) -> (i32, i32, i32, i32, i32) {
    %c0_i32 = arith.constant 0 : i32
    %c0_i32_0 = arith.constant 0 : i32
    %c0_i32_1 = arith.constant 0 : i32
    %c0_i32_2 = arith.constant 0 : i32
    return %arg0, %arg1, %c0_i32, %c0_i32_0, %c0_i32_1 : i32, i32, i32, i32, i32
  }
  func.func @transform_1(%arg0: i32, %arg1: i32) -> (i32, i32, i32) {
    %c0_i32 = arith.constant 0 : i32
    %c0_i32_0 = arith.constant 0 : i32
    %c0_i32_1 = arith.constant 0 : i32
    %c0_i32_2 = arith.constant 0 : i32
    return %c0_i32, %c0_i32_0, %c0_i32_1 : i32, i32, i32
  }
  func.func @transform_2(%arg0: i32, %arg1: i32) -> (i32, i32) {
    %c0_i32 = arith.constant 0 : i32
    %c0_i32_0 = arith.constant 0 : i32
    %c0_i32_1 = arith.constant 0 : i32
    return %c0_i32, %c0_i32_0 : i32, i32
  }
  func.func @transform_3(%arg0: i32, %arg1: i32) -> (i32, i32, i32, i32, i32) {
    %c0_i32 = arith.constant 0 : i32
    %c0_i32_0 = arith.constant 0 : i32
    %c0_i32_1 = arith.constant 0 : i32
    %c0_i32_2 = arith.constant 0 : i32
    return %arg0, %arg1, %c0_i32, %c0_i32_0, %c0_i32_1 : i32, i32, i32, i32, i32
  }
}

</mosaic_0001>

<llo_original>
// kernel: secret_embedder_forward.1
$region0: #{secret_embedder_forward.1}
  #allocation0 [shape = 'u32[]', space=smem, size = 0x4, offset = 0x4, fixed_abs, tag = 'smem constant byte address 0x4 - core index']
  #allocation1 [shape = 'u32[72,128]{1,0:T(1,128)}', space=vmem, size = 0x9000, scoped, tag = 'internal scratch']
  %s0 = inlined_call_operand.vmem [shape: bf16[2,1,10,10,320], index: 0, kind: input, shape index: {}]
  %s1 = inlined_call_operand.hbm [shape: bf16[16,320,128], index: 1, kind: input, shape index: {}]
  %s2 = inlined_call_operand.hbm [shape: f32[1,128], index: 2, kind: input, shape index: {}]
  %s3 = inlined_call_operand.vmem [shape: f32[2,1,4,64,128], index: 3, kind: output, shape index: {}]
  %s4 = sld [smem:[#allocation0]]
  $region53: #{secret_embedder_forward.1} parent=0
    _
  %s6 = ssub.s32 1, %s4
  %s7 = scalar_select 0, %s6, %s4
  $region1: #{secret_embedder_forward.1} parent=0
    #allocation2 [shape = 'u8[1310720]{0}', space=vmem, size = 0x140000, scoped, tag = 'input window, operand 1, single buffered']
    #allocation3 [shape = 's32[2]{0}', space=sflag, size = 0x8, scoped, tag = 'scoped memory for secret_embedder_forward.1']
    #allocation4 [shape = 'u8[512]{0}', space=vmem, size = 0x400, scoped, tag = 'input window, operand 2, single buffered']
    #allocation5 [shape = 's32[1]{0}', space=sflag, size = 0x4, scoped, tag = 'scoped memory for secret_embedder_forward.1']
    %8 = vsyncpa [#allocation3], 0
    %9 = vsyncpa [#allocation5], 0
    loop: start=0, step=1, limit=4
    $region2: #{secret_embedder_forward.1} parent=1 // loop_pre_header
      _
    $region3: #{secret_embedder_forward.1} parent=1 // loop_header
      %s11 = sphi 0, %s15
      %p12 = scmp.ge.s32.totalorder %s11, 4
      %s18 = sphi 0, %s30
      %s19 = sphi 0, %s26
      %s20 = sphi 0, %s18
      %s21 = sphi 0, %s19
      %s22 = sphi 0, %s20
      %s23 = sphi 0, %s21
      %s35 = sphi 0, %s37
      %s38 = sphi 0, %s35
      %s39 = sphi 0, %s38
      %s55 = sphi 0, %s39
      %s59 = sphi 0, %s59
      %s61 = sphi 0, %s59
      %s62 = sphi 0, %s61
      %s76 = sphi 0, %s62
      %s80 = sphi 0, %s80
      %s82 = sphi 0, %s80
      %s83 = sphi 0, %s82
      %s97 = sphi 0, %s83
      %s105 = sphi 0, %s107
      %s108 = sphi 0, %s105
      %s109 = sphi 0, %s108
      %s125 = sphi 0, %s109
    $region4: #{secret_embedder_forward.1} parent=1 // loop_header_branch
      %14 = sbr.rel (%p12) target = $region8
    $region5: #{secret_embedder_forward.1} parent=1 // loop_body
      %s16 = ssub.s32 %s11, 1
      %s17 = ssub.s32 %s11, 2
      %s24 = sadd.s32 1, %s19
      %p25 = scmp.ge.s32.totalorder %s24, 1
      %s26 = scalar_select %p25, 0, %s24
      %s27 = sadd.s32 1, %s18
      %s28 = scalar_select %p25, %s27, %s18
      %p29 = scmp.ge.s32.totalorder %s28, 2
      %s30 = scalar_select %p29, 0, %s28
      %s31 = ssub.s32 %s18, %s30
      %s32 = ssub.s32 %s19, %s26
      %s33 = sor.u32 %s31, %s32
      %p34 = scmp.eq.s32.totalorder %s33, 0
      %s36 = sadd.s32 %s35, 1
      %s37 = scalar_select %p34, %s35, %s36
      %p40 = pneg %p34
      %p41 = scmp.eq.s32.totalorder %s11, 1
      %p42 = por %p40, %p41
      %p43 = scmp.ne.s32.totalorder %s35, %s38
      %p44 = scmp.eq.s32.totalorder %s11, 0
      %p45 = por %p43, %p44
      %p46 = scmp.ne.s32.totalorder %s35, %s38
      %p47 = scmp.eq.s32.totalorder %s16, 1
      %p48 = por %p46, %p47
      %p49 = scmp.ne.s32.totalorder %s38, %s39
      %p50 = scmp.eq.s32.totalorder %s16, 0
      %p51 = por %p49, %p50
      %p52 = scmp.ne.s32.totalorder %s38, %s39
      %p53 = scmp.eq.s32.totalorder %s17, 1
      %p54 = por %p52, %p53
      %p56 = scmp.ne.s32.totalorder %s39, %s55
      %p57 = scmp.eq.s32.totalorder %s17, 0
      %p58 = por %p56, %p57
      %s60 = sadd.s32 %s59, 1
      %p63 = scmp.eq.s32.totalorder %s11, 1
      %p64 = scmp.ne.s32.totalorder %s59, %s61
      %p65 = scmp.eq.s32.totalorder %s11, 0
      %p66 = por %p64, %p65
      %p67 = scmp.ne.s32.totalorder %s59, %s61
      %p68 = scmp.eq.s32.totalorder %s16, 1
      %p69 = por %p67, %p68
      %p70 = scmp.ne.s32.totalorder %s61, %s62
      %p71 = scmp.eq.s32.totalorder %s16, 0
      %p72 = por %p70, %p71
      %p73 = scmp.ne.s32.totalorder %s61, %s62
      %p74 = scmp.eq.s32.totalorder %s17, 1
      %p75 = por %p73, %p74
      %p77 = scmp.ne.s32.totalorder %s62, %s76
      %p78 = scmp.eq.s32.totalorder %s17, 0
      %p79 = por %p77, %p78
      %s81 = sadd.s32 %s80, 1
      %p84 = scmp.eq.s32.totalorder %s11, 1
      %p85 = scmp.ne.s32.totalorder %s80, %s82
      %p86 = scmp.eq.s32.totalorder %s11, 0
      %p87 = por %p85, %p86
      %p88 = scmp.ne.s32.totalorder %s80, %s82
      %p89 = scmp.eq.s32.totalorder %s16, 1
      %p90 = por %p88, %p89
      %p91 = scmp.ne.s32.totalorder %s82, %s83
      %p92 = scmp.eq.s32.totalorder %s16, 0
      %p93 = por %p91, %p92
      %p94 = scmp.ne.s32.totalorder %s82, %s83
      %p95 = scmp.eq.s32.totalorder %s17, 1
      %p96 = por %p94, %p95
      %p98 = scmp.ne.s32.totalorder %s83, %s97
      %p99 = scmp.eq.s32.totalorder %s17, 0
      %p100 = por %p98, %p99
      %s101 = ssub.s32 %s18, %s30
      %s102 = ssub.s32 %s19, %s26
      %s103 = sor.u32 %s101, %s102
      %p104 = scmp.eq.s32.totalorder %s103, 0
      %s106 = sadd.s32 %s105, 1
      %s107 = scalar_select %p104, %s105, %s106
      %p110 = pneg %p104
      %p111 = scmp.eq.s32.totalorder %s11, 1
      %p112 = por %p110, %p111
      %p113 = scmp.ne.s32.totalorder %s105, %s108
      %p114 = scmp.eq.s32.totalorder %s11, 0
      %p115 = por %p113, %p114
      %p116 = scmp.ne.s32.totalorder %s105, %s108
      %p117 = scmp.eq.s32.totalorder %s16, 1
      %p118 = por %p116, %p117
      %p119 = scmp.ne.s32.totalorder %s108, %s109
      %p120 = scmp.eq.s32.totalorder %s16, 0
      %p121 = por %p119, %p120
      %p122 = scmp.ne.s32.totalorder %s108, %s109
      %p123 = scmp.eq.s32.totalorder %s17, 1
      %p124 = por %p122, %p123
      %p126 = scmp.ne.s32.totalorder %s109, %s125
      %p127 = scmp.eq.s32.totalorder %s17, 0
      %p128 = por %p126, %p127
      %p129 = scmp.le.s32.totalorder 1, %s11
      %p130 = scmp.lt.s32.totalorder %s11, 3
      %p131 = pnand %p129, %p130
      %p132 = pneg %p131
      // Predicated region
      $region9: #{secret_embedder_forward.1} parent=5 // pred_check
        _
      $region10: #{secret_embedder_forward.1} parent=5 // pred_check_branch
        %134 = sbr.rel (%p131) target = $region12
      $region11: #{secret_embedder_forward.1} parent=5 // pred_region
        %s135 = ssub.s32 %s11, 1
        // Predicated region
        $region13: #{secret_embedder_forward.1} parent=11 // pred_check
          %p136 = pneg %p72
        $region14: #{secret_embedder_forward.1} parent=11 // pred_check_branch
          %138 = sbr.rel (%p136) target = $region16
        $region15: #{secret_embedder_forward.1} parent=11 // pred_region
          %140 = vsyncadd [#allocation3], 0
          %s141 = sshll.u32 %s1, 4
          %s142 = int_to_ptr.hbm [resolvable:$true] %s141
          %s143 = sshll.u32 [#allocation2], 4
          %s144 = int_to_ptr.vmem [resolvable:$true] %s143
          %149 = dma.hbm_to_vmem [thread:$0]  %s142, 40960, %s144, [#allocation3], 64, 64, 4
        $region16: #{secret_embedder_forward.1} parent=11 // pred_fallthru
          _
        // Predicated region
        $region17: #{secret_embedder_forward.1} parent=11 // pred_check
          %p150 = pneg %p93
        $region18: #{secret_embedder_forward.1} parent=11 // pred_check_branch
          %152 = sbr.rel (%p150) target = $region20
        $region19: #{secret_embedder_forward.1} parent=11 // pred_region
          %154 = vsyncadd [#allocation5], 0
          %s156 = sshll.u32 %s2, 4
          %s157 = int_to_ptr.hbm [resolvable:$true] %s156
          %s158 = sshll.u32 [#allocation4], 4
          %s159 = int_to_ptr.vmem [resolvable:$true] %s158
          %161 = dma.hbm_to_vmem [thread:$0]  %s157, 16, %s159, [#allocation5]
        $region20: #{secret_embedder_forward.1} parent=11 // pred_fallthru
          _
      $region12: #{secret_embedder_forward.1} parent=5 // pred_fallthru
        _
      %p162 = scmp.lt.s32.totalorder %s11, 2
      // Predicated region
      $region21: #{secret_embedder_forward.1} parent=5 // pred_check
        %p163 = pneg %p162
      $region22: #{secret_embedder_forward.1} parent=5 // pred_check_branch
        %165 = sbr.rel (%p163) target = $region24
      $region23: #{secret_embedder_forward.1} parent=5 // pred_region
        // Predicated region
        $region25: #{secret_embedder_forward.1} parent=23 // pred_check
          %p166 = pneg %p45
        $region26: #{secret_embedder_forward.1} parent=23 // pred_check_branch
          %168 = sbr.rel (%p166) target = $region28
        $region27: #{secret_embedder_forward.1} parent=23 // pred_region
          %p169 = scmp.lt.s32.totalorder %s18, 1
          %s170 = scalar_select %p169, %s18, 1
          %p171 = scmp.lt.s32.totalorder %s19, 0
          %s172 = scalar_select %p171, %s19, 0
          %s173 = smul.addr %s172, 60
          %s174 = smul.addr %s170, 60
          %s175 = sadd.s32 %s173, %s174
          %s176 = smul.addr %s175, 4
          %s177 = scalar_lea.vmem %s0, %s176
        $region28: #{secret_embedder_forward.1} parent=23 // pred_fallthru
          _
      $region24: #{secret_embedder_forward.1} parent=5 // pred_fallthru
        _
      %p178 = scmp.le.s32.totalorder 1, %s11
      %p179 = scmp.lt.s32.totalorder %s11, 3
      %p180 = pnand %p178, %p179
      %p181 = pneg %p180
      // Predicated region
      $region29: #{secret_embedder_forward.1} parent=5 // pred_check
        _
      $region30: #{secret_embedder_forward.1} parent=5 // pred_check_branch
        %183 = sbr.rel (%p180) target = $region32
      $region31: #{secret_embedder_forward.1} parent=5 // pred_region
        %s184 = ssub.s32 %s11, 1
        // Predicated region
        $region33: #{secret_embedder_forward.1} parent=31 // pred_check
          %p185 = pneg %p72
        $region34: #{secret_embedder_forward.1} parent=31 // pred_check_branch
          %187 = sbr.rel (%p185) target = $region36
        $region35: #{secret_embedder_forward.1} parent=31 // pred_region
          %189 = dma.done [#allocation3], 40960
        $region36: #{secret_embedder_forward.1} parent=31 // pred_fallthru
          _
        // Predicated region
        $region37: #{secret_embedder_forward.1} parent=31 // pred_check
          %p190 = pneg %p93
        $region38: #{secret_embedder_forward.1} parent=31 // pred_check_branch
          %192 = sbr.rel (%p190) target = $region40
        $region39: #{secret_embedder_forward.1} parent=31 // pred_region
          %194 = dma.done [#allocation5], 16
        $region40: #{secret_embedder_forward.1} parent=31 // pred_fallthru
          _
        %p195 = scmp.lt.s32.totalorder %s20, 1
        %s196 = scalar_select %p195, %s20, 1
        %p197 = scmp.lt.s32.totalorder %s21, 0
        %s198 = scalar_select %p197, %s21, 0
        %s199 = smul.addr %s198, 60
        %s200 = smul.addr %s196, 60
        %s201 = sadd.s32 %s199, %s200
        %s202 = smul.addr %s201, 4
        %s203 = scalar_lea.vmem %s0, %s202
        %p204 = pneg %p51
        %p205 = pneg %p48
        %p206 = pneg %p72
        %p207 = pneg %p69
        %p208 = pneg %p93
        %p209 = pneg %p90
        %p210 = pneg %p121
        %p211 = pneg %p118
        %p212 = scmp.lt.s32.totalorder %s20, 1
        %s213 = scalar_select %p212, %s20, 1
        %p214 = scmp.lt.s32.totalorder %s21, 0
        %s215 = scalar_select %p214, %s21, 0
        %s216 = smul.addr %s215, 32
        %s217 = smul.addr %s213, 32
        %s218 = sadd.s32 %s216, %s217
        %s219 = smul.addr %s218, 8
        %s220 = scalar_lea.vmem %s3, %s219
        %p221 = scmp.lt.s32.totalorder %s20, 1
        %s222 = scalar_select %p221, %s20, 1
        %p223 = scmp.lt.s32.totalorder %s21, 0
        %s224 = scalar_select %p223, %s21, 0
        %s225 = smul.addr %s224, 60
        %s226 = smul.addr %s222, 60
        %s227 = sadd.s32 %s225, %s226
        %s228 = smul.addr %s227, 4
        %s229 = scalar_lea.vmem %s0, %s228
        %p230 = scmp.lt.s32.totalorder %s20, 1
        %s231 = scalar_select %p230, %s20, 1
        %p232 = scmp.lt.s32.totalorder %s21, 0
        %s233 = scalar_select %p232, %s21, 0
        %s234 = smul.addr %s233, 32
        %s235 = smul.addr %s231, 32
        %s236 = sadd.s32 %s234, %s235
        %s237 = smul.addr %s236, 8
        %s238 = scalar_lea.vmem %s3, %s237
        %v240 = vld [vmem:[#allocation4] sm:$0x1]
        %v241 = vld [vmem:[%s229] sm:$0xff]
        %v242 = vld [vmem:[%s229 + $0x8] sm:$0xf]
        %v243 = vld [vmem:[%s229 + $0x18] sm:$0xff]
        %v244 = vld [vmem:[%s229 + $0x20] sm:$0xf]
        %v245 = vld [vmem:[%s229 + $0x30] sm:$0xff]
        %v246 = vld [vmem:[%s229 + $0x38] sm:$0xf]
        %v247 = vld [vmem:[%s229 + $0x48] sm:$0xff]
        %v248 = vld [vmem:[%s229 + $0x50] sm:$0xf]
        %v249 = vld [vmem:[%s229 + $0x60] sm:$0xff]
        %v250 = vld [vmem:[%s229 + $0x68] sm:$0xf]
        %v251 = vld [vmem:[%s229 + $0x78] sm:$0xff]
        %v252 = vld [vmem:[%s229 + $0x80] sm:$0xf]
        %v253 = vld [vmem:[%s229 + $0x90] sm:$0xff]
        %v254 = vld [vmem:[%s229 + $0x98] sm:$0xf]
        %v255 = vld [vmem:[%s229 + $0xa8] sm:$0xff]
        %v256 = vld [vmem:[%s229 + $0xb0] sm:$0xf]
        %v257 = vld [vmem:[#allocation2] sm:$0xf]
        %v258 = vld [vmem:[#allocation2 + $0x4] sm:$0xf]
        %v259 = vld [vmem:[#allocation2 + $0x8] sm:$0xf]
        %v260 = vld [vmem:[#allocation2 + $0xc] sm:$0xf]
        %v261 = vld [vmem:[#allocation2 + $0x10] sm:$0xf]
        %v262 = vld [vmem:[#allocation2 + $0x14] sm:$0xf]
        %v263 = vld [vmem:[#allocation2 + $0x18] sm:$0xf]
        %v264 = vld [vmem:[#allocation2 + $0x1c] sm:$0xf]
        %v265 = vld [vmem:[#allocation2 + $0x20] sm:$0xf]
        %v266 = vld [vmem:[#allocation2 + $0x24] sm:$0xf]
        %v267 = vld [vmem:[#allocation2 + $0x28] sm:$0xf]
        %v268 = vld [vmem:[#allocation2 + $0x2c] sm:$0xf]
        %v269 = vld [vmem:[#allocation2 + $0x30] sm:$0xf]
        %v270 = vld [vmem:[#allocation2 + $0x34] sm:$0xf]
        %v271 = vld [vmem:[#allocation2 + $0x38] sm:$0xf]
        %v272 = vld [vmem:[#allocation2 + $0x3c] sm:$0xf]
        %v273 = vld [vmem:[#allocation2 + $0x40] sm:$0xf]
        %v274 = vld [vmem:[#allocation2 + $0x44] sm:$0xf]
        %v275 = vld [vmem:[#allocation2 + $0x48] sm:$0xf]
        %v276 = vld [vmem:[#allocation2 + $0x4c] sm:$0xf]
        %v277 = vld [vmem:[#allocation2 + $0x50] sm:$0xf]
        %v278 = vld [vmem:[#allocation2 + $0x54] sm:$0xf]
        %v279 = vld [vmem:[#allocation2 + $0x58] sm:$0xf]
        %v280 = vld [vmem:[#allocation2 + $0x5c] sm:$0xf]
        %v281 = vld [vmem:[#allocation2 + $0x60] sm:$0xf]
        %v282 = vld [vmem:[#allocation2 + $0x64] sm:$0xf]
        %v283 = vld [vmem:[#allocation2 + $0x68] sm:$0xf]
        %v284 = vld [vmem:[#allocation2 + $0x6c] sm:$0xf]
        %v285 = vld [vmem:[#allocation2 + $0x70] sm:$0xf]
        %v286 = vld [vmem:[#allocation2 + $0x74] sm:$0xf]
        %v287 = vld [vmem:[#allocation2 + $0x78] sm:$0xf]
        %v288 = vld [vmem:[#allocation2 + $0x7c] sm:$0xf]
        %v289 = vld [vmem:[#allocation2 + $0x80] sm:$0xf]
        %v290 = vld [vmem:[#allocation2 + $0x84] sm:$0xf]
        %v291 = vld [vmem:[#allocation2 + $0x88] sm:$0xf]
        %v292 = vld [vmem:[#allocation2 + $0x8c] sm:$0xf]
        %v293 = vld [vmem:[#allocation2 + $0x90] sm:$0xf]
        %v294 = vld [vmem:[#allocation2 + $0x94] sm:$0xf]
        %v295 = vld [vmem:[#allocation2 + $0x98] sm:$0xf]
        %v296 = vld [vmem:[#allocation2 + $0x9c] sm:$0xf]
        %v297 = vld [vmem:[%s229 + $0xc] sm:$0x11]
        %v298 = vld [vmem:[%s229 + $0x14] sm:$0x1]
        %v299 = vld [vmem:[%s229 + $0x24] sm:$0x11]
        %v300 = vld [vmem:[%s229 + $0x2c] sm:$0x1]
        %v301 = vld [vmem:[%s229 + $0x3c] sm:$0x11]
        %v302 = vld [vmem:[%s229 + $0x44] sm:$0x1]
        %v303 = vld [vmem:[%s229 + $0x54] sm:$0x11]
        %v304 = vld [vmem:[%s229 + $0x5c] sm:$0x1]
        %v305 = vld [vmem:[%s229 + $0x6c] sm:$0x11]
        %v306 = vld [vmem:[%s229 + $0x74] sm:$0x1]
        %v307 = vld [vmem:[%s229 + $0x84] sm:$0x11]
        %v308 = vld [vmem:[%s229 + $0x8c] sm:$0x1]
        %v309 = vld [vmem:[%s229 + $0x9c] sm:$0x11]
        %v310 = vld [vmem:[%s229 + $0xa4] sm:$0x1]
        %v311 = vld [vmem:[%s229 + $0xb4] sm:$0x11]
        %v312 = vld [vmem:[%s229 + $0xbc] sm:$0x1]
        %vm313 = vsmask.f32 3328
        %vm314 = vsmask.f32 7440
        %vm315 = vmor %vm313, %vm314
        %v317 = vshrl.u32 %v241, 16
        %v319 = vrot.slane %v317, 4
        %v320 = vshll.u32 %v241, 16
        %v322 = vrot.slane %v320, 5
        %v323 = vor.u32 %v319, %v322
        %v324 = vrot.slane %v323, 4
        %v326 = vshll.u32 %v297, 16
        %v328 = vrot.slane %v326, 5
        %v329 = vsel %vm315, %v324, %v328
        %v331 = vshrl.u32 %v242, 16
        %v333 = vrot.slane %v331, 4
        %v334 = vshll.u32 %v242, 16
        %v336 = vrot.slane %v334, 5
        %v337 = vor.u32 %v333, %v336
        %v338 = vrot.slane %v337, 4
        %v340 = vshll.u32 %v298, 16
        %v342 = vrot.slane %v340, 5
        %v343 = vsel %vm315, %v338, %v342
        %v345 = vshrl.u32 %v243, 16
        %v347 = vrot.slane %v345, 4
        %v348 = vshll.u32 %v243, 16
        %v350 = vrot.slane %v348, 5
        %v351 = vor.u32 %v347, %v350
        %v352 = vrot.slane %v351, 4
        %v354 = vshll.u32 %v299, 16
        %v356 = vrot.slane %v354, 5
        %v357 = vsel %vm315, %v352, %v356
        %v359 = vshrl.u32 %v244, 16
        %v361 = vrot.slane %v359, 4
        %v362 = vshll.u32 %v244, 16
        %v364 = vrot.slane %v362, 5
        %v365 = vor.u32 %v361, %v364
        %v366 = vrot.slane %v365, 4
        %v368 = vshll.u32 %v300, 16
        %v370 = vrot.slane %v368, 5
        %v371 = vsel %vm315, %v366, %v370
        %v373 = vshrl.u32 %v245, 16
        %v375 = vrot.slane %v373, 4
        %v376 = vshll.u32 %v245, 16
        %v378 = vrot.slane %v376, 5
        %v379 = vor.u32 %v375, %v378
        %v380 = vrot.slane %v379, 4
        %v382 = vshll.u32 %v301, 16
        %v384 = vrot.slane %v382, 5
        %v385 = vsel %vm315, %v380, %v384
        %v387 = vshrl.u32 %v246, 16
        %v389 = vrot.slane %v387, 4
        %v390 = vshll.u32 %v246, 16
        %v392 = vrot.slane %v390, 5
        %v393 = vor.u32 %v389, %v392
        %v394 = vrot.slane %v393, 4
        %v396 = vshll.u32 %v302, 16
        %v398 = vrot.slane %v396, 5
        %v399 = vsel %vm315, %v394, %v398
        %v401 = vshrl.u32 %v247, 16
        %v403 = vrot.slane %v401, 4
        %v404 = vshll.u32 %v247, 16
        %v406 = vrot.slane %v404, 5
        %v407 = vor.u32 %v403, %v406
        %v408 = vrot.slane %v407, 4
        %v410 = vshll.u32 %v303, 16
        %v412 = vrot.slane %v410, 5
        %v413 = vsel %vm315, %v408, %v412
        %v415 = vshrl.u32 %v248, 16
        %v417 = vrot.slane %v415, 4
        %v418 = vshll.u32 %v248, 16
        %v420 = vrot.slane %v418, 5
        %v421 = vor.u32 %v417, %v420
        %v422 = vrot.slane %v421, 4
        %v424 = vshll.u32 %v304, 16
        %v426 = vrot.slane %v424, 5
        %v427 = vsel %vm315, %v422, %v426
        %v429 = vshrl.u32 %v249, 16
        %v431 = vrot.slane %v429, 4
        %v432 = vshll.u32 %v249, 16
        %v434 = vrot.slane %v432, 5
        %v435 = vor.u32 %v431, %v434
        %v436 = vrot.slane %v435, 4
        %v438 = vshll.u32 %v305, 16
        %v440 = vrot.slane %v438, 5
        %v441 = vsel %vm315, %v436, %v440
        %v443 = vshrl.u32 %v250, 16
        %v445 = vrot.slane %v443, 4
        %v446 = vshll.u32 %v250, 16
        %v448 = vrot.slane %v446, 5
        %v449 = vor.u32 %v445, %v448
        %v450 = vrot.slane %v449, 4
        %v452 = vshll.u32 %v306, 16
        %v454 = vrot.slane %v452, 5
        %v455 = vsel %vm315, %v450, %v454
        %v457 = vshrl.u32 %v251, 16
        %v459 = vrot.slane %v457, 4
        %v460 = vshll.u32 %v251, 16
        %v462 = vrot.slane %v460, 5
        %v463 = vor.u32 %v459, %v462
        %v464 = vrot.slane %v463, 4
        %v466 = vshll.u32 %v307, 16
        %v468 = vrot.slane %v466, 5
        %v469 = vsel %vm315, %v464, %v468
        %v471 = vshrl.u32 %v252, 16
        %v473 = vrot.slane %v471, 4
        %v474 = vshll.u32 %v252, 16
        %v476 = vrot.slane %v474, 5
        %v477 = vor.u32 %v473, %v476
        %v478 = vrot.slane %v477, 4
        %v480 = vshll.u32 %v308, 16
        %v482 = vrot.slane %v480, 5
        %v483 = vsel %vm315, %v478, %v482
        %v485 = vshrl.u32 %v253, 16
        %v487 = vrot.slane %v485, 4
        %v488 = vshll.u32 %v253, 16
        %v490 = vrot.slane %v488, 5
        %v491 = vor.u32 %v487, %v490
        %v492 = vrot.slane %v491, 4
        %v494 = vshll.u32 %v309, 16
        %v496 = vrot.slane %v494, 5
        %v497 = vsel %vm315, %v492, %v496
        %v499 = vshrl.u32 %v254, 16
        %v501 = vrot.slane %v499, 4
        %v502 = vshll.u32 %v254, 16
        %v504 = vrot.slane %v502, 5
        %v505 = vor.u32 %v501, %v504
        %v506 = vrot.slane %v505, 4
        %v508 = vshll.u32 %v310, 16
        %v510 = vrot.slane %v508, 5
        %v511 = vsel %vm315, %v506, %v510
        %v513 = vshrl.u32 %v255, 16
        %v515 = vrot.slane %v513, 4
        %v516 = vshll.u32 %v255, 16
        %v518 = vrot.slane %v516, 5
        %v519 = vor.u32 %v515, %v518
        %v520 = vrot.slane %v519, 4
        %v522 = vshll.u32 %v311, 16
        %v524 = vrot.slane %v522, 5
        %v525 = vsel %vm315, %v520, %v524
        %v527 = vshrl.u32 %v256, 16
        %v529 = vrot.slane %v527, 4
        %v530 = vshll.u32 %v256, 16
        %v532 = vrot.slane %v530, 5
        %v533 = vor.u32 %v529, %v532
        %v534 = vrot.slane %v533, 4
        %v536 = vshll.u32 %v312, 16
        %v538 = vrot.slane %v536, 5
        %v539 = vsel %vm315, %v534, %v538
        %s540 = scalar_lea.vmem [#allocation2], 160
        %v541 = vld [vmem:[%s540] sm:$0xf]
        %v542 = vld [vmem:[%s540 + $0x4] sm:$0xf]
        %v543 = vld [vmem:[%s540 + $0x8] sm:$0xf]
        %v544 = vld [vmem:[%s540 + $0xc] sm:$0xf]
        %v545 = vld [vmem:[%s540 + $0x10] sm:$0xf]
        %v546 = vld [vmem:[%s540 + $0x14] sm:$0xf]
        %v547 = vld [vmem:[%s540 + $0x18] sm:$0xf]
        %v548 = vld [vmem:[%s540 + $0x1c] sm:$0xf]
        %v549 = vld [vmem:[%s540 + $0x20] sm:$0xf]
        %v550 = vld [vmem:[%s540 + $0x24] sm:$0xf]
        %v551 = vld [vmem:[%s540 + $0x28] sm:$0xf]
        %v552 = vld [vmem:[%s540 + $0x2c] sm:$0xf]
        %v553 = vld [vmem:[%s540 + $0x30] sm:$0xf]
        %v554 = vld [vmem:[%s540 + $0x34] sm:$0xf]
        %v555 = vld [vmem:[%s540 + $0x38] sm:$0xf]
        %v556 = vld [vmem:[%s540 + $0x3c] sm:$0xf]
        %v557 = vld [vmem:[%s540 + $0x40] sm:$0xf]
        %v558 = vld [vmem:[%s540 + $0x44] sm:$0xf]
        %v559 = vld [vmem:[%s540 + $0x48] sm:$0xf]
        %v560 = vld [vmem:[%s540 + $0x4c] sm:$0xf]
        %v561 = vld [vmem:[%s540 + $0x50] sm:$0xf]
        %v562 = vld [vmem:[%s540 + $0x54] sm:$0xf]
        %v563 = vld [vmem:[%s540 + $0x58] sm:$0xf]
        %v564 = vld [vmem:[%s540 + $0x5c] sm:$0xf]
        %v565 = vld [vmem:[%s540 + $0x60] sm:$0xf]
        %v566 = vld [vmem:[%s540 + $0x64] sm:$0xf]
        %v567 = vld [vmem:[%s540 + $0x68] sm:$0xf]
        %v568 = vld [vmem:[%s540 + $0x6c] sm:$0xf]
        %v569 = vld [vmem:[%s540 + $0x70] sm:$0xf]
        %v570 = vld [vmem:[%s540 + $0x74] sm:$0xf]
        %v571 = vld [vmem:[%s540 + $0x78] sm:$0xf]
        %v572 = vld [vmem:[%s540 + $0x7c] sm:$0xf]
        %v573 = vld [vmem:[%s540 + $0x80] sm:$0xf]
        %v574 = vld [vmem:[%s540 + $0x84] sm:$0xf]
        %v575 = vld [vmem:[%s540 + $0x88] sm:$0xf]
        %v576 = vld [vmem:[%s540 + $0x8c] sm:$0xf]
        %v577 = vld [vmem:[%s540 + $0x90] sm:$0xf]
        %v578 = vld [vmem:[%s540 + $0x94] sm:$0xf]
        %v579 = vld [vmem:[%s540 + $0x98] sm:$0xf]
        %v580 = vld [vmem:[%s540 + $0x9c] sm:$0xf]
        %v581 = vunpack.c.l.b16 %v329
        %v582 = vunpack.c.h.b16 %v329
        %v583 = vunpack.c.l.b16 %v343
        %v584 = vunpack.c.l.b16 %v357
        %v585 = vunpack.c.h.b16 %v357
        %v586 = vunpack.c.l.b16 %v371
        %v587 = vunpack.c.l.b16 %v385
        %v588 = vunpack.c.h.b16 %v385
        %v589 = vunpack.c.l.b16 %v399
        %v590 = vunpack.c.l.b16 %v413
        %v591 = vunpack.c.h.b16 %v413
        %v592 = vunpack.c.l.b16 %v427
        %v593 = vunpack.c.l.b16 %v441
        %v594 = vunpack.c.h.b16 %v441
        %v595 = vunpack.c.l.b16 %v455
        %v596 = vunpack.c.l.b16 %v469
        %v597 = vunpack.c.h.b16 %v469
        %v598 = vunpack.c.l.b16 %v483
        %v599 = vunpack.c.l.b16 %v497
        %v600 = vunpack.c.h.b16 %v497
        %v601 = vunpack.c.l.b16 %v511
        %v602 = vunpack.c.l.b16 %v525
        %v603 = vunpack.c.h.b16 %v525
        %v604 = vunpack.c.l.b16 %v539
        %v605 = vpack.c.b16 %v584, %v581
        %v606 = vpack.c.b16 %v585, %v582
        %v607 = vpack.c.b16 %v586, %v583
        %v608 = vpack.c.b16 %v590, %v587
        %v609 = vpack.c.b16 %v591, %v588
        %v610 = vpack.c.b16 %v592, %v589
        %v611 = vpack.c.b16 %v596, %v593
        %v612 = vpack.c.b16 %v597, %v594
        %v613 = vpack.c.b16 %v598, %v595
        %v614 = vpack.c.b16 %v602, %v599
        %v615 = vpack.c.b16 %v603, %v600
        %v616 = vpack.c.b16 %v604, %v601
        %v665 = vunpack.c.l.b16 %v541
        %v666 = vunpack.c.l.b16 %v542
        %v667 = vunpack.c.l.b16 %v543
        %v668 = vunpack.c.l.b16 %v544
        %v669 = vunpack.c.l.b16 %v545
        %v670 = vunpack.c.l.b16 %v546
        %v671 = vunpack.c.l.b16 %v547
        %v672 = vunpack.c.l.b16 %v548
        %v673 = vunpack.c.l.b16 %v549
        %v674 = vunpack.c.l.b16 %v550
        %v675 = vunpack.c.l.b16 %v551
        %v676 = vunpack.c.l.b16 %v552
        %v677 = vunpack.c.l.b16 %v553
        %v678 = vunpack.c.l.b16 %v554
        %v679 = vunpack.c.l.b16 %v555
        %v680 = vunpack.c.l.b16 %v556
        %v681 = vunpack.c.l.b16 %v557
        %v682 = vunpack.c.l.b16 %v558
        %v683 = vunpack.c.l.b16 %v559
        %v684 = vunpack.c.l.b16 %v560
        %v685 = vunpack.c.l.b16 %v561
        %v686 = vunpack.c.l.b16 %v562
        %v687 = vunpack.c.l.b16 %v563
        %v688 = vunpack.c.l.b16 %v564
        %v689 = vunpack.c.l.b16 %v565
        %v690 = vunpack.c.l.b16 %v566
        %v691 = vunpack.c.l.b16 %v567
        %v692 = vunpack.c.l.b16 %v568
        %v693 = vunpack.c.l.b16 %v569
        %v694 = vunpack.c.l.b16 %v570
        %v695 = vunpack.c.l.b16 %v571
        %v696 = vunpack.c.l.b16 %v572
        %v697 = vunpack.c.l.b16 %v573
        %v698 = vunpack.c.l.b16 %v574
        %v699 = vunpack.c.l.b16 %v575
        %v700 = vunpack.c.l.b16 %v576
        %v701 = vunpack.c.l.b16 %v577
        %v702 = vunpack.c.l.b16 %v578
        %v703 = vunpack.c.l.b16 %v579
        %v704 = vunpack.c.l.b16 %v580
        %v705 = vpack.c.b16 %v666, %v665
        %v706 = vpack.c.b16 %v668, %v667
        %v707 = vpack.c.b16 %v670, %v669
        %v708 = vpack.c.b16 %v672, %v671
        %v709 = vpack.c.b16 %v674, %v673
        %v710 = vpack.c.b16 %v676, %v675
        %v711 = vpack.c.b16 %v678, %v677
        %v712 = vpack.c.b16 %v680, %v679
        %v713 = vpack.c.b16 %v682, %v681
        %v714 = vpack.c.b16 %v684, %v683
        %v715 = vpack.c.b16 %v686, %v685
        %v716 = vpack.c.b16 %v688, %v687
        %v717 = vpack.c.b16 %v690, %v689
        %v718 = vpack.c.b16 %v692, %v691
        %v719 = vpack.c.b16 %v694, %v693
        %v720 = vpack.c.b16 %v696, %v695
        %v721 = vpack.c.b16 %v698, %v697
        %v722 = vpack.c.b16 %v700, %v699
        %v723 = vpack.c.b16 %v702, %v701
        %v724 = vpack.c.b16 %v704, %v703
        %vm745 = vcmask 523264
        %v747 = vsel %vm745, %v607, 0
        %v750 = vsel %vm745, %v610, 0
        %v753 = vsel %vm745, %v613, 0
        %v756 = vsel %vm745, %v616, 0
        %758 = vmatpush.bf16.msra.mxu0 %v712
        %759 = vmatpush.bf16.msra.mxu0 %v711
        %760 = vmatpush.bf16.msra.mxu0 %v710
        %761 = vmatpush.bf16.msra.mxu0 %v709
        %762 = vmatpush.bf16.msra.mxu0 %v708
        %763 = vmatpush.bf16.msra.mxu0 %v707
        %764 = vmatpush.bf16.msra.mxu0 %v706
        %765 = vmatpush.bf16.msra.mxu0 %v705
        %766 = vmatmul.bf16.gmra.mxu0 %v605
        %v767 = vpop.f32.mrf.mxu0
        %v768 = vadd.f32 0.0, %v767
        %v769 = vpop.f32.mrf.mxu0
        %v770 = vadd.f32 0.0, %v769
        %771 = vmatmul.bf16.gmra.mxu0 %v608
        %v772 = vpop.f32.mrf.mxu0
        %v773 = vadd.f32 0.0, %v772
        %v774 = vpop.f32.mrf.mxu0
        %v775 = vadd.f32 0.0, %v774
        %776 = vmatmul.bf16.gmra.mxu0 %v611
        %v777 = vpop.f32.mrf.mxu0
        %v778 = vadd.f32 0.0, %v777
        %v779 = vpop.f32.mrf.mxu0
        %v780 = vadd.f32 0.0, %v779
        %781 = vmatmul.bf16.gmra.mxu0 %v614
        %v782 = vpop.f32.mrf.mxu0
        %v783 = vadd.f32 0.0, %v782
        %v784 = vpop.f32.mrf.mxu0
        %v785 = vadd.f32 0.0, %v784
        %786 = vdwg.mxu0
        %787 = vmatpush.bf16.msra.mxu0 %v720
        %788 = vmatpush.bf16.msra.mxu0 %v719
        %789 = vmatpush.bf16.msra.mxu0 %v718
        %790 = vmatpush.bf16.msra.mxu0 %v717
        %791 = vmatpush.bf16.msra.mxu0 %v716
        %792 = vmatpush.bf16.msra.mxu0 %v715
        %793 = vmatpush.bf16.msra.mxu0 %v714
        %794 = vmatpush.bf16.msra.mxu0 %v713
        %795 = vmatmul.bf16.gmra.mxu0 %v606
        %v796 = vpop.f32.mrf.mxu0
        %v797 = vadd.f32 %v768, %v796
        %v798 = vpop.f32.mrf.mxu0
        %v799 = vadd.f32 %v770, %v798
        %800 = vmatmul.bf16.gmra.mxu0 %v609
        %v801 = vpop.f32.mrf.mxu0
        %v802 = vadd.f32 %v773, %v801
        %v803 = vpop.f32.mrf.mxu0
        %v804 = vadd.f32 %v775, %v803
        %805 = vmatmul.bf16.gmra.mxu0 %v612
        %v806 = vpop.f32.mrf.mxu0
        %v807 = vadd.f32 %v778, %v806
        %v808 = vpop.f32.mrf.mxu0
        %v809 = vadd.f32 %v780, %v808
        %810 = vmatmul.bf16.gmra.mxu0 %v615
        %v811 = vpop.f32.mrf.mxu0
        %v812 = vadd.f32 %v783, %v811
        %v813 = vpop.f32.mrf.mxu0
        %v814 = vadd.f32 %v785, %v813
        %815 = vdwg.mxu0
        %816 = vmatpush.bf16.msra.mxu0 0
        %817 = vmatpush.bf16.msra.mxu0 0
        %818 = vmatpush.bf16.msra.mxu0 0
        %819 = vmatpush.bf16.msra.mxu0 0
        %820 = vmatpush.bf16.msra.mxu0 %v724
        %821 = vmatpush.bf16.msra.mxu0 %v723
        %822 = vmatpush.bf16.msra.mxu0 %v722
        %823 = vmatpush.bf16.msra.mxu0 %v721
        %824 = vmatmul.bf16.gmra.mxu0 %v747
        %v825 = vpop.f32.mrf.mxu0
        %v826 = vadd.f32 %v797, %v825
        %v827 = vpop.f32.mrf.mxu0
        %v828 = vadd.f32 %v799, %v827
        %829 = vmatmul.bf16.gmra.mxu0 %v750
        %v830 = vpop.f32.mrf.mxu0
        %v831 = vadd.f32 %v802, %v830
        %v832 = vpop.f32.mrf.mxu0
        %v833 = vadd.f32 %v804, %v832
        %834 = vmatmul.bf16.gmra.mxu0 %v753
        %v835 = vpop.f32.mrf.mxu0
        %v836 = vadd.f32 %v807, %v835
        %v837 = vpop.f32.mrf.mxu0
        %v838 = vadd.f32 %v809, %v837
        %839 = vmatmul.bf16.gmra.mxu0 %v756
        %v840 = vpop.f32.mrf.mxu0
        %v841 = vadd.f32 %v812, %v840
        %v842 = vpop.f32.mrf.mxu0
        %v843 = vadd.f32 %v814, %v842
        %844 = vdwg.mxu0
        %v861 = vunpack.c.l.b16 %v241
        %v862 = vunpack.c.h.b16 %v241
        %v863 = vunpack.c.l.b16 %v242
        %v864 = vunpack.c.l.b16 %v243
        %v865 = vunpack.c.h.b16 %v243
        %v866 = vunpack.c.l.b16 %v244
        %v867 = vunpack.c.l.b16 %v245
        %v868 = vunpack.c.h.b16 %v245
        %v869 = vunpack.c.l.b16 %v246
        %v870 = vunpack.c.l.b16 %v247
        %v871 = vunpack.c.h.b16 %v247
        %v872 = vunpack.c.l.b16 %v248
        %v873 = vunpack.c.l.b16 %v249
        %v874 = vunpack.c.h.b16 %v249
        %v875 = vunpack.c.l.b16 %v250
        %v876 = vunpack.c.l.b16 %v251
        %v877 = vunpack.c.h.b16 %v251
        %v878 = vunpack.c.l.b16 %v252
        %v879 = vunpack.c.l.b16 %v253
        %v880 = vunpack.c.h.b16 %v253
        %v881 = vunpack.c.l.b16 %v254
        %v882 = vunpack.c.l.b16 %v255
        %v883 = vunpack.c.h.b16 %v255
        %v884 = vunpack.c.l.b16 %v256
        %v885 = vpack.c.b16 %v864, %v861
        %v886 = vpack.c.b16 %v865, %v862
        %v887 = vpack.c.b16 %v866, %v863
        %v888 = vpack.c.b16 %v870, %v867
        %v889 = vpack.c.b16 %v871, %v868
        %v890 = vpack.c.b16 %v872, %v869
        %v891 = vpack.c.b16 %v876, %v873
        %v892 = vpack.c.b16 %v877, %v874
        %v893 = vpack.c.b16 %v878, %v875
        %v894 = vpack.c.b16 %v882, %v879
        %v895 = vpack.c.b16 %v883, %v880
        %v896 = vpack.c.b16 %v884, %v881
        %v945 = vunpack.c.l.b16 %v257
        %v946 = vunpack.c.l.b16 %v258
        %v947 = vunpack.c.l.b16 %v259
        %v948 = vunpack.c.l.b16 %v260
        %v949 = vunpack.c.l.b16 %v261
        %v950 = vunpack.c.l.b16 %v262
        %v951 = vunpack.c.l.b16 %v263
        %v952 = vunpack.c.l.b16 %v264
        %v953 = vunpack.c.l.b16 %v265
        %v954 = vunpack.c.l.b16 %v266
        %v955 = vunpack.c.l.b16 %v267
        %v956 = vunpack.c.l.b16 %v268
        %v957 = vunpack.c.l.b16 %v269
        %v958 = vunpack.c.l.b16 %v270
        %v959 = vunpack.c.l.b16 %v271
        %v960 = vunpack.c.l.b16 %v272
        %v961 = vunpack.c.l.b16 %v273
        %v962 = vunpack.c.l.b16 %v274
        %v963 = vunpack.c.l.b16 %v275
        %v964 = vunpack.c.l.b16 %v276
        %v965 = vunpack.c.l.b16 %v277
        %v966 = vunpack.c.l.b16 %v278
        %v967 = vunpack.c.l.b16 %v279
        %v968 = vunpack.c.l.b16 %v280
        %v969 = vunpack.c.l.b16 %v281
        %v970 = vunpack.c.l.b16 %v282
        %v971 = vunpack.c.l.b16 %v283
        %v972 = vunpack.c.l.b16 %v284
        %v973 = vunpack.c.l.b16 %v285
        %v974 = vunpack.c.l.b16 %v286
        %v975 = vunpack.c.l.b16 %v287
        %v976 = vunpack.c.l.b16 %v288
        %v977 = vunpack.c.l.b16 %v289
        %v978 = vunpack.c.l.b16 %v290
        %v979 = vunpack.c.l.b16 %v291
        %v980 = vunpack.c.l.b16 %v292
        %v981 = vunpack.c.l.b16 %v293
        %v982 = vunpack.c.l.b16 %v294
        %v983 = vunpack.c.l.b16 %v295
        %v984 = vunpack.c.l.b16 %v296
        %v985 = vpack.c.b16 %v946, %v945
        %v986 = vpack.c.b16 %v948, %v947
        %v987 = vpack.c.b16 %v950, %v949
        %v988 = vpack.c.b16 %v952, %v951
        %v989 = vpack.c.b16 %v954, %v953
        %v990 = vpack.c.b16 %v956, %v955
        %v991 = vpack.c.b16 %v958, %v957
        %v992 = vpack.c.b16 %v960, %v959
        %v993 = vpack.c.b16 %v962, %v961
        %v994 = vpack.c.b16 %v964, %v963
        %v995 = vpack.c.b16 %v966, %v965
        %v996 = vpack.c.b16 %v968, %v967
        %v997 = vpack.c.b16 %v970, %v969
        %v998 = vpack.c.b16 %v972, %v971
        %v999 = vpack.c.b16 %v974, %v973
        %v1000 = vpack.c.b16 %v976, %v975
        %v1001 = vpack.c.b16 %v978, %v977
        %v1002 = vpack.c.b16 %v980, %v979
        %v1003 = vpack.c.b16 %v982, %v981
        %v1004 = vpack.c.b16 %v984, %v983
        %v1026 = vsel %vm745, %v887, 0
        %v1029 = vsel %vm745, %v890, 0
        %v1032 = vsel %vm745, %v893, 0
        %v1035 = vsel %vm745, %v896, 0
        %1037 = vmatpush.bf16.msra.mxu0 %v992
        %1038 = vmatpush.bf16.msra.mxu0 %v991
        %1039 = vmatpush.bf16.msra.mxu0 %v990
        %1040 = vmatpush.bf16.msra.mxu0 %v989
        %1041 = vmatpush.bf16.msra.mxu0 %v988
        %1042 = vmatpush.bf16.msra.mxu0 %v987
        %1043 = vmatpush.bf16.msra.mxu0 %v986
        %1044 = vmatpush.bf16.msra.mxu0 %v985
        %1045 = vmatmul.bf16.gmra.mxu0 %v885
        %v1046 = vpop.f32.mrf.mxu0
        %v1047 = vadd.f32 %v826, %v1046
        %v1048 = vpop.f32.mrf.mxu0
        %v1049 = vadd.f32 %v828, %v1048
        %1050 = vmatmul.bf16.gmra.mxu0 %v888
        %v1051 = vpop.f32.mrf.mxu0
        %v1052 = vadd.f32 %v831, %v1051
        %v1053 = vpop.f32.mrf.mxu0
        %v1054 = vadd.f32 %v833, %v1053
        %1055 = vmatmul.bf16.gmra.mxu0 %v891
        %v1056 = vpop.f32.mrf.mxu0
        %v1057 = vadd.f32 %v836, %v1056
        %v1058 = vpop.f32.mrf.mxu0
        %v1059 = vadd.f32 %v838, %v1058
        %1060 = vmatmul.bf16.gmra.mxu0 %v894
        %v1061 = vpop.f32.mrf.mxu0
        %v1062 = vadd.f32 %v841, %v1061
        %v1063 = vpop.f32.mrf.mxu0
        %v1064 = vadd.f32 %v843, %v1063
        %1065 = vdwg.mxu0
        %1066 = vmatpush.bf16.msra.mxu0 %v1000
        %1067 = vmatpush.bf16.msra.mxu0 %v999
        %1068 = vmatpush.bf16.msra.mxu0 %v998
        %1069 = vmatpush.bf16.msra.mxu0 %v997
        %1070 = vmatpush.bf16.msra.mxu0 %v996
        %1071 = vmatpush.bf16.msra.mxu0 %v995
        %1072 = vmatpush.bf16.msra.mxu0 %v994
        %1073 = vmatpush.bf16.msra.mxu0 %v993
        %1074 = vmatmul.bf16.gmra.mxu0 %v886
        %v1075 = vpop.f32.mrf.mxu0
        %v1076 = vadd.f32 %v1047, %v1075
        %v1077 = vpop.f32.mrf.mxu0
        %v1078 = vadd.f32 %v1049, %v1077
        %1079 = vmatmul.bf16.gmra.mxu0 %v889
        %v1080 = vpop.f32.mrf.mxu0
        %v1081 = vadd.f32 %v1052, %v1080
        %v1082 = vpop.f32.mrf.mxu0
        %v1083 = vadd.f32 %v1054, %v1082
        %1084 = vmatmul.bf16.gmra.mxu0 %v892
        %v1085 = vpop.f32.mrf.mxu0
        %v1086 = vadd.f32 %v1057, %v1085
        %v1087 = vpop.f32.mrf.mxu0
        %v1088 = vadd.f32 %v1059, %v1087
        %1089 = vmatmul.bf16.gmra.mxu0 %v895
        %v1090 = vpop.f32.mrf.mxu0
        %v1091 = vadd.f32 %v1062, %v1090
        %v1092 = vpop.f32.mrf.mxu0
        %v1093 = vadd.f32 %v1064, %v1092
        %1094 = vdwg.mxu0
        %1095 = vmatpush.bf16.msra.mxu0 0
        %1096 = vmatpush.bf16.msra.mxu0 0
        %1097 = vmatpush.bf16.msra.mxu0 0
        %1098 = vmatpush.bf16.msra.mxu0 0
        %1099 = vmatpush.bf16.msra.mxu0 %v1004
        %1100 = vmatpush.bf16.msra.mxu0 %v1003
        %1101 = vmatpush.bf16.msra.mxu0 %v1002
        %1102 = vmatpush.bf16.msra.mxu0 %v1001
        %1103 = vmatmul.bf16.gmra.mxu0 %v1026
        %v1104 = vpop.f32.mrf.mxu0
        %v1105 = vadd.f32 %v1076, %v1104
        %v1106 = vpop.f32.mrf.mxu0
        %v1107 = vadd.f32 %v1078, %v1106
        %1108 = vmatmul.bf16.gmra.mxu0 %v1029
        %v1109 = vpop.f32.mrf.mxu0
        %v1110 = vadd.f32 %v1081, %v1109
        %v1111 = vpop.f32.mrf.mxu0
        %v1112 = vadd.f32 %v1083, %v1111
        %1113 = vmatmul.bf16.gmra.mxu0 %v1032
        %v1114 = vpop.f32.mrf.mxu0
        %v1115 = vadd.f32 %v1086, %v1114
        %v1116 = vpop.f32.mrf.mxu0
        %v1117 = vadd.f32 %v1088, %v1116
        %1118 = vmatmul.bf16.gmra.mxu0 %v1035
        %v1119 = vpop.f32.mrf.mxu0
        %v1120 = vadd.f32 %v1091, %v1119
        %v1121 = vpop.f32.mrf.mxu0
        %v1122 = vadd.f32 %v1093, %v1121
        %1123 = vdwg.mxu0
        %s1124 = scalar_lea.vmem [#allocation2], 640
        %v1125 = vld [vmem:[%s1124] sm:$0xf]
        %v1126 = vld [vmem:[%s1124 + $0x4] sm:$0xf]
        %v1127 = vld [vmem:[%s1124 + $0x8] sm:$0xf]
        %v1128 = vld [vmem:[%s1124 + $0xc] sm:$0xf]
        %v1129 = vld [vmem:[%s1124 + $0x10] sm:$0xf]
        %v1130 = vld [vmem:[%s1124 + $0x14] sm:$0xf]
        %v1131 = vld [vmem:[%s1124 + $0x18] sm:$0xf]
        %v1132 = vld [vmem:[%s1124 + $0x1c] sm:$0xf]
        %v1133 = vld [vmem:[%s1124 + $0x20] sm:$0xf]
        %v1134 = vld [vmem:[%s1124 + $0x24] sm:$0xf]
        %v1135 = vld [vmem:[%s1124 + $0x28] sm:$0xf]
        %v1136 = vld [vmem:[%s1124 + $0x2c] sm:$0xf]
        %v1137 = vld [vmem:[%s1124 + $0x30] sm:$0xf]
        %v1138 = vld [vmem:[%s1124 + $0x34] sm:$0xf]
        %v1139 = vld [vmem:[%s1124 + $0x38] sm:$0xf]
        %v1140 = vld [vmem:[%s1124 + $0x3c] sm:$0xf]
        %v1141 = vld [vmem:[%s1124 + $0x40] sm:$0xf]
        %v1142 = vld [vmem:[%s1124 + $0x44] sm:$0xf]
        %v1143 = vld [vmem:[%s1124 + $0x48] sm:$0xf]
        %v1144 = vld [vmem:[%s1124 + $0x4c] sm:$0xf]
        %v1145 = vld [vmem:[%s1124 + $0x50] sm:$0xf]
        %v1146 = vld [vmem:[%s1124 + $0x54] sm:$0xf]
        %v1147 = vld [vmem:[%s1124 + $0x58] sm:$0xf]
        %v1148 = vld [vmem:[%s1124 + $0x5c] sm:$0xf]
        %v1149 = vld [vmem:[%s1124 + $0x60] sm:$0xf]
        %v1150 = vld [vmem:[%s1124 + $0x64] sm:$0xf]
        %v1151 = vld [vmem:[%s1124 + $0x68] sm:$0xf]
        %v1152 = vld [vmem:[%s1124 + $0x6c] sm:$0xf]
        %v1153 = vld [vmem:[%s1124 + $0x70] sm:$0xf]
        %v1154 = vld [vmem:[%s1124 + $0x74] sm:$0xf]
        %v1155 = vld [vmem:[%s1124 + $0x78] sm:$0xf]
        %v1156 = vld [vmem:[%s1124 + $0x7c] sm:$0xf]
        %v1157 = vld [vmem:[%s1124 + $0x80] sm:$0xf]
        %v1158 = vld [vmem:[%s1124 + $0x84] sm:$0xf]
        %v1159 = vld [vmem:[%s1124 + $0x88] sm:$0xf]
        %v1160 = vld [vmem:[%s1124 + $0x8c] sm:$0xf]
        %v1161 = vld [vmem:[%s1124 + $0x90] sm:$0xf]
        %v1162 = vld [vmem:[%s1124 + $0x94] sm:$0xf]
        %v1163 = vld [vmem:[%s1124 + $0x98] sm:$0xf]
        %v1164 = vld [vmem:[%s1124 + $0x9c] sm:$0xf]
        %v1165 = vld [vmem:[%s229] sm:$0xee]
        %v1166 = vld [vmem:[%s229 + $0x8] sm:$0xe]
        %v1167 = vld [vmem:[%s229 + $0x18] sm:$0xee]
        %v1168 = vld [vmem:[%s229 + $0x20] sm:$0xe]
        %v1169 = vld [vmem:[%s229 + $0x30] sm:$0xee]
        %v1170 = vld [vmem:[%s229 + $0x38] sm:$0xe]
        %v1171 = vld [vmem:[%s229 + $0x48] sm:$0xee]
        %v1172 = vld [vmem:[%s229 + $0x50] sm:$0xe]
        %v1173 = vld [vmem:[%s229 + $0x60] sm:$0xee]
        %v1174 = vld [vmem:[%s229 + $0x68] sm:$0xe]
        %v1175 = vld [vmem:[%s229 + $0x78] sm:$0xee]
        %v1176 = vld [vmem:[%s229 + $0x80] sm:$0xe]
        %v1177 = vld [vmem:[%s229 + $0x90] sm:$0xee]
        %v1178 = vld [vmem:[%s229 + $0x98] sm:$0xe]
        %v1179 = vld [vmem:[%s229 + $0xa8] sm:$0xee]
        %v1180 = vld [vmem:[%s229 + $0xb0] sm:$0xe]
        %vm1213 = vcmask 1042432
        %vm1214 = vcmask 1046532
        %vm1215 = vmor %vm1213, %vm1214
        %v1216 = vrot.slane %v1165, 5
        %v1217 = vrot.slane %v1216, 4
        %v1218 = vrot.slane %v297, 5
        %v1219 = vsel %vm1215, %v1217, %v1218
        %v1220 = vrot.slane %v1166, 5
        %v1221 = vrot.slane %v1220, 4
        %v1222 = vrot.slane %v298, 5
        %v1223 = vsel %vm1215, %v1221, %v1222
        %v1224 = vrot.slane %v1167, 5
        %v1225 = vrot.slane %v1224, 4
        %v1226 = vrot.slane %v299, 5
        %v1227 = vsel %vm1215, %v1225, %v1226
        %v1228 = vrot.slane %v1168, 5
        %v1229 = vrot.slane %v1228, 4
        %v1230 = vrot.slane %v300, 5
        %v1231 = vsel %vm1215, %v1229, %v1230
        %v1232 = vrot.slane %v1169, 5
        %v1233 = vrot.slane %v1232, 4
        %v1234 = vrot.slane %v301, 5
        %v1235 = vsel %vm1215, %v1233, %v1234
        %v1236 = vrot.slane %v1170, 5
        %v1237 = vrot.slane %v1236, 4
        %v1238 = vrot.slane %v302, 5
        %v1239 = vsel %vm1215, %v1237, %v1238
        %v1240 = vrot.slane %v1171, 5
        %v1241 = vrot.slane %v1240, 4
        %v1242 = vrot.slane %v303, 5
        %v1243 = vsel %vm1215, %v1241, %v1242
        %v1244 = vrot.slane %v1172, 5
        %v1245 = vrot.slane %v1244, 4
        %v1246 = vrot.slane %v304, 5
        %v1247 = vsel %vm1215, %v1245, %v1246
        %v1248 = vrot.slane %v1173, 5
        %v1249 = vrot.slane %v1248, 4
        %v1250 = vrot.slane %v305, 5
        %v1251 = vsel %vm1215, %v1249, %v1250
        %v1252 = vrot.slane %v1174, 5
        %v1253 = vrot.slane %v1252, 4
        %v1254 = vrot.slane %v306, 5
        %v1255 = vsel %vm1215, %v1253, %v1254
        %v1256 = vrot.slane %v1175, 5
        %v1257 = vrot.slane %v1256, 4
        %v1258 = vrot.slane %v307, 5
        %v1259 = vsel %vm1215, %v1257, %v1258
        %v1260 = vrot.slane %v1176, 5
        %v1261 = vrot.slane %v1260, 4
        %v1262 = vrot.slane %v308, 5
        %v1263 = vsel %vm1215, %v1261, %v1262
        %v1264 = vrot.slane %v1177, 5
        %v1265 = vrot.slane %v1264, 4
        %v1266 = vrot.slane %v309, 5
        %v1267 = vsel %vm1215, %v1265, %v1266
        %v1268 = vrot.slane %v1178, 5
        %v1269 = vrot.slane %v1268, 4
        %v1270 = vrot.slane %v310, 5
        %v1271 = vsel %vm1215, %v1269, %v1270
        %v1272 = vrot.slane %v1179, 5
        %v1273 = vrot.slane %v1272, 4
        %v1274 = vrot.slane %v311, 5
        %v1275 = vsel %vm1215, %v1273, %v1274
        %v1276 = vrot.slane %v1180, 5
        %v1277 = vrot.slane %v1276, 4
        %v1278 = vrot.slane %v312, 5
        %v1279 = vsel %vm1215, %v1277, %v1278
        %s1280 = scalar_lea.vmem [#allocation2], 800
        %v1281 = vld [vmem:[%s1280] sm:$0xf]
        %v1282 = vld [vmem:[%s1280 + $0x4] sm:$0xf]
        %v1283 = vld [vmem:[%s1280 + $0x8] sm:$0xf]
        %v1284 = vld [vmem:[%s1280 + $0xc] sm:$0xf]
        %v1285 = vld [vmem:[%s1280 + $0x10] sm:$0xf]
        %v1286 = vld [vmem:[%s1280 + $0x14] sm:$0xf]
        %v1287 = vld [vmem:[%s1280 + $0x18] sm:$0xf]
        %v1288 = vld [vmem:[%s1280 + $0x1c] sm:$0xf]
        %v1289 = vld [vmem:[%s1280 + $0x20] sm:$0xf]
        %v1290 = vld [vmem:[%s1280 + $0x24] sm:$0xf]
        %v1291 = vld [vmem:[%s1280 + $0x28] sm:$0xf]
        %v1292 = vld [vmem:[%s1280 + $0x2c] sm:$0xf]
        %v1293 = vld [vmem:[%s1280 + $0x30] sm:$0xf]
        %v1294 = vld [vmem:[%s1280 + $0x34] sm:$0xf]
        %v1295 = vld [vmem:[%s1280 + $0x38] sm:$0xf]
        %v1296 = vld [vmem:[%s1280 + $0x3c] sm:$0xf]
        %v1297 = vld [vmem:[%s1280 + $0x40] sm:$0xf]
        %v1298 = vld [vmem:[%s1280 + $0x44] sm:$0xf]
        %v1299 = vld [vmem:[%s1280 + $0x48] sm:$0xf]
        %v1300 = vld [vmem:[%s1280 + $0x4c] sm:$0xf]
        %v1301 = vld [vmem:[%s1280 + $0x50] sm:$0xf]
        %v1302 = vld [vmem:[%s1280 + $0x54] sm:$0xf]
        %v1303 = vld [vmem:[%s1280 + $0x58] sm:$0xf]
        %v1304 = vld [vmem:[%s1280 + $0x5c] sm:$0xf]
        %v1305 = vld [vmem:[%s1280 + $0x60] sm:$0xf]
        %v1306 = vld [vmem:[%s1280 + $0x64] sm:$0xf]
        %v1307 = vld [vmem:[%s1280 + $0x68] sm:$0xf]
        %v1308 = vld [vmem:[%s1280 + $0x6c] sm:$0xf]
        %v1309 = vld [vmem:[%s1280 + $0x70] sm:$0xf]
        %v1310 = vld [vmem:[%s1280 + $0x74] sm:$0xf]
        %v1311 = vld [vmem:[%s1280 + $0x78] sm:$0xf]
        %v1312 = vld [vmem:[%s1280 + $0x7c] sm:$0xf]
        %v1313 = vld [vmem:[%s1280 + $0x80] sm:$0xf]
        %v1314 = vld [vmem:[%s1280 + $0x84] sm:$0xf]
        %v1315 = vld [vmem:[%s1280 + $0x88] sm:$0xf]
        %v1316 = vld [vmem:[%s1280 + $0x8c] sm:$0xf]
        %v1317 = vld [vmem:[%s1280 + $0x90] sm:$0xf]
        %v1318 = vld [vmem:[%s1280 + $0x94] sm:$0xf]
        %v1319 = vld [vmem:[%s1280 + $0x98] sm:$0xf]
        %v1320 = vld [vmem:[%s1280 + $0x9c] sm:$0xf]
        %v1321 = vunpack.c.l.b16 %v1219
        %v1322 = vunpack.c.h.b16 %v1219
        %v1323 = vunpack.c.l.b16 %v1223
        %v1324 = vunpack.c.l.b16 %v1227
        %v1325 = vunpack.c.h.b16 %v1227
        %v1326 = vunpack.c.l.b16 %v1231
        %v1327 = vunpack.c.l.b16 %v1235
        %v1328 = vunpack.c.h.b16 %v1235
        %v1329 = vunpack.c.l.b16 %v1239
        %v1330 = vunpack.c.l.b16 %v1243
        %v1331 = vunpack.c.h.b16 %v1243
        %v1332 = vunpack.c.l.b16 %v1247
        %v1333 = vunpack.c.l.b16 %v1251
        %v1334 = vunpack.c.h.b16 %v1251
        %v1335 = vunpack.c.l.b16 %v1255
        %v1336 = vunpack.c.l.b16 %v1259
        %v1337 = vunpack.c.h.b16 %v1259
        %v1338 = vunpack.c.l.b16 %v1263
        %v1339 = vunpack.c.l.b16 %v1267
        %v1340 = vunpack.c.h.b16 %v1267
        %v1341 = vunpack.c.l.b16 %v1271
        %v1342 = vunpack.c.l.b16 %v1275
        %v1343 = vunpack.c.h.b16 %v1275
        %v1344 = vunpack.c.l.b16 %v1279
        %v1345 = vpack.c.b16 %v1324, %v1321
        %v1346 = vpack.c.b16 %v1325, %v1322
        %v1347 = vpack.c.b16 %v1326, %v1323
        %v1348 = vpack.c.b16 %v1330, %v1327
        %v1349 = vpack.c.b16 %v1331, %v1328
        %v1350 = vpack.c.b16 %v1332, %v1329
        %v1351 = vpack.c.b16 %v1336, %v1333
        %v1352 = vpack.c.b16 %v1337, %v1334
        %v1353 = vpack.c.b16 %v1338, %v1335
        %v1354 = vpack.c.b16 %v1342, %v1339
        %v1355 = vpack.c.b16 %v1343, %v1340
        %v1356 = vpack.c.b16 %v1344, %v1341
        %v1405 = vunpack.c.l.b16 %v1281
        %v1406 = vunpack.c.l.b16 %v1282
        %v1407 = vunpack.c.l.b16 %v1283
        %v1408 = vunpack.c.l.b16 %v1284
        %v1409 = vunpack.c.l.b16 %v1285
        %v1410 = vunpack.c.l.b16 %v1286
        %v1411 = vunpack.c.l.b16 %v1287
        %v1412 = vunpack.c.l.b16 %v1288
        %v1413 = vunpack.c.l.b16 %v1289
        %v1414 = vunpack.c.l.b16 %v1290
        %v1415 = vunpack.c.l.b16 %v1291
        %v1416 = vunpack.c.l.b16 %v1292
        %v1417 = vunpack.c.l.b16 %v1293
        %v1418 = vunpack.c.l.b16 %v1294
        %v1419 = vunpack.c.l.b16 %v1295
        %v1420 = vunpack.c.l.b16 %v1296
        %v1421 = vunpack.c.l.b16 %v1297
        %v1422 = vunpack.c.l.b16 %v1298
        %v1423 = vunpack.c.l.b16 %v1299
        %v1424 = vunpack.c.l.b16 %v1300
        %v1425 = vunpack.c.l.b16 %v1301
        %v1426 = vunpack.c.l.b16 %v1302
        %v1427 = vunpack.c.l.b16 %v1303
        %v1428 = vunpack.c.l.b16 %v1304
        %v1429 = vunpack.c.l.b16 %v1305
        %v1430 = vunpack.c.l.b16 %v1306
        %v1431 = vunpack.c.l.b16 %v1307
        %v1432 = vunpack.c.l.b16 %v1308
        %v1433 = vunpack.c.l.b16 %v1309
        %v1434 = vunpack.c.l.b16 %v1310
        %v1435 = vunpack.c.l.b16 %v1311
        %v1436 = vunpack.c.l.b16 %v1312
        %v1437 = vunpack.c.l.b16 %v1313
        %v1438 = vunpack.c.l.b16 %v1314
        %v1439 = vunpack.c.l.b16 %v1315
        %v1440 = vunpack.c.l.b16 %v1316
        %v1441 = vunpack.c.l.b16 %v1317
        %v1442 = vunpack.c.l.b16 %v1318
        %v1443 = vunpack.c.l.b16 %v1319
        %v1444 = vunpack.c.l.b16 %v1320
        %v1445 = vpack.c.b16 %v1406, %v1405
        %v1446 = vpack.c.b16 %v1408, %v1407
        %v1447 = vpack.c.b16 %v1410, %v1409
        %v1448 = vpack.c.b16 %v1412, %v1411
        %v1449 = vpack.c.b16 %v1414, %v1413
        %v1450 = vpack.c.b16 %v1416, %v1415
        %v1451 = vpack.c.b16 %v1418, %v1417
        %v1452 = vpack.c.b16 %v1420, %v1419
        %v1453 = vpack.c.b16 %v1422, %v1421
        %v1454 = vpack.c.b16 %v1424, %v1423
        %v1455 = vpack.c.b16 %v1426, %v1425
        %v1456 = vpack.c.b16 %v1428, %v1427
        %v1457 = vpack.c.b16 %v1430, %v1429
        %v1458 = vpack.c.b16 %v1432, %v1431
        %v1459 = vpack.c.b16 %v1434, %v1433
        %v1460 = vpack.c.b16 %v1436, %v1435
        %v1461 = vpack.c.b16 %v1438, %v1437
        %v1462 = vpack.c.b16 %v1440, %v1439
        %v1463 = vpack.c.b16 %v1442, %v1441
        %v1464 = vpack.c.b16 %v1444, %v1443
        %v1486 = vsel %vm745, %v1347, 0
        %v1489 = vsel %vm745, %v1350, 0
        %v1492 = vsel %vm745, %v1353, 0
        %v1495 = vsel %vm745, %v1356, 0
        %1497 = vmatpush.bf16.msra.mxu0 %v1452
        %1498 = vmatpush.bf16.msra.mxu0 %v1451
        %1499 = vmatpush.bf16.msra.mxu0 %v1450
        %1500 = vmatpush.bf16.msra.mxu0 %v1449
        %1501 = vmatpush.bf16.msra.mxu0 %v1448
        %1502 = vmatpush.bf16.msra.mxu0 %v1447
        %1503 = vmatpush.bf16.msra.mxu0 %v1446
        %1504 = vmatpush.bf16.msra.mxu0 %v1445
        %1505 = vmatmul.bf16.gmra.mxu0 %v1345
        %v1506 = vpop.f32.mrf.mxu0
        %v1507 = vadd.f32 0.0, %v1506
        %v1508 = vpop.f32.mrf.mxu0
        %v1509 = vadd.f32 0.0, %v1508
        %1510 = vmatmul.bf16.gmra.mxu0 %v1348
        %v1511 = vpop.f32.mrf.mxu0
        %v1512 = vadd.f32 0.0, %v1511
        %v1513 = vpop.f32.mrf.mxu0
        %v1514 = vadd.f32 0.0, %v1513
        %1515 = vmatmul.bf16.gmra.mxu0 %v1351
        %v1516 = vpop.f32.mrf.mxu0
        %v1517 = vadd.f32 0.0, %v1516
        %v1518 = vpop.f32.mrf.mxu0
        %v1519 = vadd.f32 0.0, %v1518
        %1520 = vmatmul.bf16.gmra.mxu0 %v1354
        %v1521 = vpop.f32.mrf.mxu0
        %v1522 = vadd.f32 0.0, %v1521
        %v1523 = vpop.f32.mrf.mxu0
        %v1524 = vadd.f32 0.0, %v1523
        %1525 = vdwg.mxu0
        %1526 = vmatpush.bf16.msra.mxu0 %v1460
        %1527 = vmatpush.bf16.msra.mxu0 %v1459
        %1528 = vmatpush.bf16.msra.mxu0 %v1458
        %1529 = vmatpush.bf16.msra.mxu0 %v1457
        %1530 = vmatpush.bf16.msra.mxu0 %v1456
        %1531 = vmatpush.bf16.msra.mxu0 %v1455
        %1532 = vmatpush.bf16.msra.mxu0 %v1454
        %1533 = vmatpush.bf16.msra.mxu0 %v1453
        %1534 = vmatmul.bf16.gmra.mxu0 %v1346
        %v1535 = vpop.f32.mrf.mxu0
        %v1536 = vadd.f32 %v1507, %v1535
        %v1537 = vpop.f32.mrf.mxu0
        %v1538 = vadd.f32 %v1509, %v1537
        %1539 = vmatmul.bf16.gmra.mxu0 %v1349
        %v1540 = vpop.f32.mrf.mxu0
        %v1541 = vadd.f32 %v1512, %v1540
        %v1542 = vpop.f32.mrf.mxu0
        %v1543 = vadd.f32 %v1514, %v1542
        %1544 = vmatmul.bf16.gmra.mxu0 %v1352
        %v1545 = vpop.f32.mrf.mxu0
        %v1546 = vadd.f32 %v1517, %v1545
        %v1547 = vpop.f32.mrf.mxu0
        %v1548 = vadd.f32 %v1519, %v1547
        %1549 = vmatmul.bf16.gmra.mxu0 %v1355
        %v1550 = vpop.f32.mrf.mxu0
        %v1551 = vadd.f32 %v1522, %v1550
        %v1552 = vpop.f32.mrf.mxu0
        %v1553 = vadd.f32 %v1524, %v1552
        %1554 = vdwg.mxu0
        %1555 = vmatpush.bf16.msra.mxu0 0
        %1556 = vmatpush.bf16.msra.mxu0 0
        %1557 = vmatpush.bf16.msra.mxu0 0
        %1558 = vmatpush.bf16.msra.mxu0 0
        %1559 = vmatpush.bf16.msra.mxu0 %v1464
        %1560 = vmatpush.bf16.msra.mxu0 %v1463
        %1561 = vmatpush.bf16.msra.mxu0 %v1462
        %1562 = vmatpush.bf16.msra.mxu0 %v1461
        %1563 = vmatmul.bf16.gmra.mxu0 %v1486
        %v1564 = vpop.f32.mrf.mxu0
        %v1565 = vadd.f32 %v1536, %v1564
        %v1566 = vpop.f32.mrf.mxu0
        %v1567 = vadd.f32 %v1538, %v1566
        %1568 = vmatmul.bf16.gmra.mxu0 %v1489
        %v1569 = vpop.f32.mrf.mxu0
        %v1570 = vadd.f32 %v1541, %v1569
        %v1571 = vpop.f32.mrf.mxu0
        %v1572 = vadd.f32 %v1543, %v1571
        %1573 = vmatmul.bf16.gmra.mxu0 %v1492
        %v1574 = vpop.f32.mrf.mxu0
        %v1575 = vadd.f32 %v1546, %v1574
        %v1576 = vpop.f32.mrf.mxu0
        %v1577 = vadd.f32 %v1548, %v1576
        %1578 = vmatmul.bf16.gmra.mxu0 %v1495
        %v1579 = vpop.f32.mrf.mxu0
        %v1580 = vadd.f32 %v1551, %v1579
        %v1581 = vpop.f32.mrf.mxu0
        %v1582 = vadd.f32 %v1553, %v1581
        %1583 = vdwg.mxu0
        %v1624 = vunpack.c.l.b16 %v1125
        %v1625 = vunpack.c.l.b16 %v1126
        %v1626 = vunpack.c.l.b16 %v1127
        %v1627 = vunpack.c.l.b16 %v1128
        %v1628 = vunpack.c.l.b16 %v1129
        %v1629 = vunpack.c.l.b16 %v1130
        %v1630 = vunpack.c.l.b16 %v1131
        %v1631 = vunpack.c.l.b16 %v1132
        %v1632 = vunpack.c.l.b16 %v1133
        %v1633 = vunpack.c.l.b16 %v1134
        %v1634 = vunpack.c.l.b16 %v1135
        %v1635 = vunpack.c.l.b16 %v1136
        %v1636 = vunpack.c.l.b16 %v1137
        %v1637 = vunpack.c.l.b16 %v1138
        %v1638 = vunpack.c.l.b16 %v1139
        %v1639 = vunpack.c.l.b16 %v1140
        %v1640 = vunpack.c.l.b16 %v1141
        %v1641 = vunpack.c.l.b16 %v1142
        %v1642 = vunpack.c.l.b16 %v1143
        %v1643 = vunpack.c.l.b16 %v1144
        %v1644 = vunpack.c.l.b16 %v1145
        %v1645 = vunpack.c.l.b16 %v1146
        %v1646 = vunpack.c.l.b16 %v1147
        %v1647 = vunpack.c.l.b16 %v1148
        %v1648 = vunpack.c.l.b16 %v1149
        %v1649 = vunpack.c.l.b16 %v1150
        %v1650 = vunpack.c.l.b16 %v1151
        %v1651 = vunpack.c.l.b16 %v1152
        %v1652 = vunpack.c.l.b16 %v1153
        %v1653 = vunpack.c.l.b16 %v1154
        %v1654 = vunpack.c.l.b16 %v1155
        %v1655 = vunpack.c.l.b16 %v1156
        %v1656 = vunpack.c.l.b16 %v1157
        %v1657 = vunpack.c.l.b16 %v1158
        %v1658 = vunpack.c.l.b16 %v1159
        %v1659 = vunpack.c.l.b16 %v1160
        %v1660 = vunpack.c.l.b16 %v1161
        %v1661 = vunpack.c.l.b16 %v1162
        %v1662 = vunpack.c.l.b16 %v1163
        %v1663 = vunpack.c.l.b16 %v1164
        %v1664 = vpack.c.b16 %v1625, %v1624
        %v1665 = vpack.c.b16 %v1627, %v1626
        %v1666 = vpack.c.b16 %v1629, %v1628
        %v1667 = vpack.c.b16 %v1631, %v1630
        %v1668 = vpack.c.b16 %v1633, %v1632
        %v1669 = vpack.c.b16 %v1635, %v1634
        %v1670 = vpack.c.b16 %v1637, %v1636
        %v1671 = vpack.c.b16 %v1639, %v1638
        %v1672 = vpack.c.b16 %v1641, %v1640
        %v1673 = vpack.c.b16 %v1643, %v1642
        %v1674 = vpack.c.b16 %v1645, %v1644
        %v1675 = vpack.c.b16 %v1647, %v1646
        %v1676 = vpack.c.b16 %v1649, %v1648
        %v1677 = vpack.c.b16 %v1651, %v1650
        %v1678 = vpack.c.b16 %v1653, %v1652
        %v1679 = vpack.c.b16 %v1655, %v1654
        %v1680 = vpack.c.b16 %v1657, %v1656
        %v1681 = vpack.c.b16 %v1659, %v1658
        %v1682 = vpack.c.b16 %v1661, %v1660
        %v1683 = vpack.c.b16 %v1663, %v1662
        %1704 = vmatpush.bf16.msra.mxu0 %v1671
        %1705 = vmatpush.bf16.msra.mxu0 %v1670
        %1706 = vmatpush.bf16.msra.mxu0 %v1669
        %1707 = vmatpush.bf16.msra.mxu0 %v1668
        %1708 = vmatpush.bf16.msra.mxu0 %v1667
        %1709 = vmatpush.bf16.msra.mxu0 %v1666
        %1710 = vmatpush.bf16.msra.mxu0 %v1665
        %1711 = vmatpush.bf16.msra.mxu0 %v1664
        %1712 = vmatmul.bf16.gmra.mxu0 %v605
        %v1713 = vpop.f32.mrf.mxu0
        %v1714 = vadd.f32 %v1565, %v1713
        %v1715 = vpop.f32.mrf.mxu0
        %v1716 = vadd.f32 %v1567, %v1715
        %1717 = vmatmul.bf16.gmra.mxu0 %v608
        %v1718 = vpop.f32.mrf.mxu0
        %v1719 = vadd.f32 %v1570, %v1718
        %v1720 = vpop.f32.mrf.mxu0
        %v1721 = vadd.f32 %v1572, %v1720
        %1722 = vmatmul.bf16.gmra.mxu0 %v611
        %v1723 = vpop.f32.mrf.mxu0
        %v1724 = vadd.f32 %v1575, %v1723
        %v1725 = vpop.f32.mrf.mxu0
        %v1726 = vadd.f32 %v1577, %v1725
        %1727 = vmatmul.bf16.gmra.mxu0 %v614
        %v1728 = vpop.f32.mrf.mxu0
        %v1729 = vadd.f32 %v1580, %v1728
        %v1730 = vpop.f32.mrf.mxu0
        %v1731 = vadd.f32 %v1582, %v1730
        %1732 = vdwg.mxu0
        %1733 = vmatpush.bf16.msra.mxu0 %v1679
        %1734 = vmatpush.bf16.msra.mxu0 %v1678
        %1735 = vmatpush.bf16.msra.mxu0 %v1677
        %1736 = vmatpush.bf16.msra.mxu0 %v1676
        %1737 = vmatpush.bf16.msra.mxu0 %v1675
        %1738 = vmatpush.bf16.msra.mxu0 %v1674
        %1739 = vmatpush.bf16.msra.mxu0 %v1673
        %1740 = vmatpush.bf16.msra.mxu0 %v1672
        %1741 = vmatmul.bf16.gmra.mxu0 %v606
        %v1742 = vpop.f32.mrf.mxu0
        %v1743 = vadd.f32 %v1714, %v1742
        %v1744 = vpop.f32.mrf.mxu0
        %v1745 = vadd.f32 %v1716, %v1744
        %1746 = vmatmul.bf16.gmra.mxu0 %v609
        %v1747 = vpop.f32.mrf.mxu0
        %v1748 = vadd.f32 %v1719, %v1747
        %v1749 = vpop.f32.mrf.mxu0
        %v1750 = vadd.f32 %v1721, %v1749
        %1751 = vmatmul.bf16.gmra.mxu0 %v612
        %v1752 = vpop.f32.mrf.mxu0
        %v1753 = vadd.f32 %v1724, %v1752
        %v1754 = vpop.f32.mrf.mxu0
        %v1755 = vadd.f32 %v1726, %v1754
        %1756 = vmatmul.bf16.gmra.mxu0 %v615
        %v1757 = vpop.f32.mrf.mxu0
        %v1758 = vadd.f32 %v1729, %v1757
        %v1759 = vpop.f32.mrf.mxu0
        %v1760 = vadd.f32 %v1731, %v1759
        %1761 = vdwg.mxu0
        %1762 = vmatpush.bf16.msra.mxu0 0
        %1763 = vmatpush.bf16.msra.mxu0 0
        %1764 = vmatpush.bf16.msra.mxu0 0
        %1765 = vmatpush.bf16.msra.mxu0 0
        %1766 = vmatpush.bf16.msra.mxu0 %v1683
        %1767 = vmatpush.bf16.msra.mxu0 %v1682
        %1768 = vmatpush.bf16.msra.mxu0 %v1681
        %1769 = vmatpush.bf16.msra.mxu0 %v1680
        %1770 = vmatmul.bf16.gmra.mxu0 %v747
        %v1771 = vpop.f32.mrf.mxu0
        %v1772 = vadd.f32 %v1743, %v1771
        %v1773 = vpop.f32.mrf.mxu0
        %v1774 = vadd.f32 %v1745, %v1773
        %1775 = vmatmul.bf16.gmra.mxu0 %v750
        %v1776 = vpop.f32.mrf.mxu0
        %v1777 = vadd.f32 %v1748, %v1776
        %v1778 = vpop.f32.mrf.mxu0
        %v1779 = vadd.f32 %v1750, %v1778
        %1780 = vmatmul.bf16.gmra.mxu0 %v753
        %v1781 = vpop.f32.mrf.mxu0
        %v1782 = vadd.f32 %v1753, %v1781
        %v1783 = vpop.f32.mrf.mxu0
        %v1784 = vadd.f32 %v1755, %v1783
        %1785 = vmatmul.bf16.gmra.mxu0 %v756
        %v1786 = vpop.f32.mrf.mxu0
        %v1787 = vadd.f32 %v1758, %v1786
        %v1788 = vpop.f32.mrf.mxu0
        %v1789 = vadd.f32 %v1760, %v1788
        %1790 = vdwg.mxu0
        %s1791 = scalar_lea.vmem %s229, 24
        %v1792 = vld [vmem:[%s1791] sm:$0xff]
        %v1793 = vld [vmem:[%s1791 + $0x8] sm:$0xf]
        %v1794 = vld [vmem:[%s1791 + $0x18] sm:$0xff]
        %v1795 = vld [vmem:[%s1791 + $0x20] sm:$0xf]
        %v1796 = vld [vmem:[%s1791 + $0x30] sm:$0xff]
        %v1797 = vld [vmem:[%s1791 + $0x38] sm:$0xf]
        %v1798 = vld [vmem:[%s1791 + $0x48] sm:$0xff]
        %v1799 = vld [vmem:[%s1791 + $0x50] sm:$0xf]
        %v1800 = vld [vmem:[%s1791 + $0x60] sm:$0xff]
        %v1801 = vld [vmem:[%s1791 + $0x68] sm:$0xf]
        %v1802 = vld [vmem:[%s1791 + $0x78] sm:$0xff]
        %v1803 = vld [vmem:[%s1791 + $0x80] sm:$0xf]
        %v1804 = vld [vmem:[%s1791 + $0x90] sm:$0xff]
        %v1805 = vld [vmem:[%s1791 + $0x98] sm:$0xf]
        %v1806 = vld [vmem:[%s1791 + $0xa8] sm:$0xff]
        %v1807 = vld [vmem:[%s1791 + $0xb0] sm:$0xf]
        %s1808 = scalar_lea.vmem [#allocation2], 320
        %v1809 = vld [vmem:[%s1808] sm:$0xf]
        %v1810 = vld [vmem:[%s1808 + $0x4] sm:$0xf]
        %v1811 = vld [vmem:[%s1808 + $0x8] sm:$0xf]
        %v1812 = vld [vmem:[%s1808 + $0xc] sm:$0xf]
        %v1813 = vld [vmem:[%s1808 + $0x10] sm:$0xf]
        %v1814 = vld [vmem:[%s1808 + $0x14] sm:$0xf]
        %v1815 = vld [vmem:[%s1808 + $0x18] sm:$0xf]
        %v1816 = vld [vmem:[%s1808 + $0x1c] sm:$0xf]
        %v1817 = vld [vmem:[%s1808 + $0x20] sm:$0xf]
        %v1818 = vld [vmem:[%s1808 + $0x24] sm:$0xf]
        %v1819 = vld [vmem:[%s1808 + $0x28] sm:$0xf]
        %v1820 = vld [vmem:[%s1808 + $0x2c] sm:$0xf]
        %v1821 = vld [vmem:[%s1808 + $0x30] sm:$0xf]
        %v1822 = vld [vmem:[%s1808 + $0x34] sm:$0xf]
        %v1823 = vld [vmem:[%s1808 + $0x38] sm:$0xf]
        %v1824 = vld [vmem:[%s1808 + $0x3c] sm:$0xf]
        %v1825 = vld [vmem:[%s1808 + $0x40] sm:$0xf]
        %v1826 = vld [vmem:[%s1808 + $0x44] sm:$0xf]
        %v1827 = vld [vmem:[%s1808 + $0x48] sm:$0xf]
        %v1828 = vld [vmem:[%s1808 + $0x4c] sm:$0xf]
        %v1829 = vld [vmem:[%s1808 + $0x50] sm:$0xf]
        %v1830 = vld [vmem:[%s1808 + $0x54] sm:$0xf]
        %v1831 = vld [vmem:[%s1808 + $0x58] sm:$0xf]
        %v1832 = vld [vmem:[%s1808 + $0x5c] sm:$0xf]
        %v1833 = vld [vmem:[%s1808 + $0x60] sm:$0xf]
        %v1834 = vld [vmem:[%s1808 + $0x64] sm:$0xf]
        %v1835 = vld [vmem:[%s1808 + $0x68] sm:$0xf]
        %v1836 = vld [vmem:[%s1808 + $0x6c] sm:$0xf]
        %v1837 = vld [vmem:[%s1808 + $0x70] sm:$0xf]
        %v1838 = vld [vmem:[%s1808 + $0x74] sm:$0xf]
        %v1839 = vld [vmem:[%s1808 + $0x78] sm:$0xf]
        %v1840 = vld [vmem:[%s1808 + $0x7c] sm:$0xf]
        %v1841 = vld [vmem:[%s1808 + $0x80] sm:$0xf]
        %v1842 = vld [vmem:[%s1808 + $0x84] sm:$0xf]
        %v1843 = vld [vmem:[%s1808 + $0x88] sm:$0xf]
        %v1844 = vld [vmem:[%s1808 + $0x8c] sm:$0xf]
        %v1845 = vld [vmem:[%s1808 + $0x90] sm:$0xf]
        %v1846 = vld [vmem:[%s1808 + $0x94] sm:$0xf]
        %v1847 = vld [vmem:[%s1808 + $0x98] sm:$0xf]
        %v1848 = vld [vmem:[%s1808 + $0x9c] sm:$0xf]
        %v1865 = vunpack.c.l.b16 %v1792
        %v1866 = vunpack.c.h.b16 %v1792
        %v1867 = vunpack.c.l.b16 %v1793
        %v1868 = vunpack.c.l.b16 %v1794
        %v1869 = vunpack.c.h.b16 %v1794
        %v1870 = vunpack.c.l.b16 %v1795
        %v1871 = vunpack.c.l.b16 %v1796
        %v1872 = vunpack.c.h.b16 %v1796
        %v1873 = vunpack.c.l.b16 %v1797
        %v1874 = vunpack.c.l.b16 %v1798
        %v1875 = vunpack.c.h.b16 %v1798
        %v1876 = vunpack.c.l.b16 %v1799
        %v1877 = vunpack.c.l.b16 %v1800
        %v1878 = vunpack.c.h.b16 %v1800
        %v1879 = vunpack.c.l.b16 %v1801
        %v1880 = vunpack.c.l.b16 %v1802
        %v1881 = vunpack.c.h.b16 %v1802
        %v1882 = vunpack.c.l.b16 %v1803
        %v1883 = vunpack.c.l.b16 %v1804
        %v1884 = vunpack.c.h.b16 %v1804
        %v1885 = vunpack.c.l.b16 %v1805
        %v1886 = vunpack.c.l.b16 %v1806
        %v1887 = vunpack.c.h.b16 %v1806
        %v1888 = vunpack.c.l.b16 %v1807
        %v1889 = vpack.c.b16 %v1868, %v1865
        %v1890 = vpack.c.b16 %v1869, %v1866
        %v1891 = vpack.c.b16 %v1870, %v1867
        %v1892 = vpack.c.b16 %v1874, %v1871
        %v1893 = vpack.c.b16 %v1875, %v1872
        %v1894 = vpack.c.b16 %v1876, %v1873
        %v1895 = vpack.c.b16 %v1880, %v1877
        %v1896 = vpack.c.b16 %v1881, %v1878
        %v1897 = vpack.c.b16 %v1882, %v1879
        %v1898 = vpack.c.b16 %v1886, %v1883
        %v1899 = vpack.c.b16 %v1887, %v1884
        %v1900 = vpack.c.b16 %v1888, %v1885
        %v1949 = vunpack.c.l.b16 %v1809
        %v1950 = vunpack.c.l.b16 %v1810
        %v1951 = vunpack.c.l.b16 %v1811
        %v1952 = vunpack.c.l.b16 %v1812
        %v1953 = vunpack.c.l.b16 %v1813
        %v1954 = vunpack.c.l.b16 %v1814
        %v1955 = vunpack.c.l.b16 %v1815
        %v1956 = vunpack.c.l.b16 %v1816
        %v1957 = vunpack.c.l.b16 %v1817
        %v1958 = vunpack.c.l.b16 %v1818
        %v1959 = vunpack.c.l.b16 %v1819
        %v1960 = vunpack.c.l.b16 %v1820
        %v1961 = vunpack.c.l.b16 %v1821
        %v1962 = vunpack.c.l.b16 %v1822
        %v1963 = vunpack.c.l.b16 %v1823
        %v1964 = vunpack.c.l.b16 %v1824
        %v1965 = vunpack.c.l.b16 %v1825
        %v1966 = vunpack.c.l.b16 %v1826
        %v1967 = vunpack.c.l.b16 %v1827
        %v1968 = vunpack.c.l.b16 %v1828
        %v1969 = vunpack.c.l.b16 %v1829
        %v1970 = vunpack.c.l.b16 %v1830
        %v1971 = vunpack.c.l.b16 %v1831
        %v1972 = vunpack.c.l.b16 %v1832
        %v1973 = vunpack.c.l.b16 %v1833
        %v1974 = vunpack.c.l.b16 %v1834
        %v1975 = vunpack.c.l.b16 %v1835
        %v1976 = vunpack.c.l.b16 %v1836
        %v1977 = vunpack.c.l.b16 %v1837
        %v1978 = vunpack.c.l.b16 %v1838
        %v1979 = vunpack.c.l.b16 %v1839
        %v1980 = vunpack.c.l.b16 %v1840
        %v1981 = vunpack.c.l.b16 %v1841
        %v1982 = vunpack.c.l.b16 %v1842
        %v1983 = vunpack.c.l.b16 %v1843
        %v1984 = vunpack.c.l.b16 %v1844
        %v1985 = vunpack.c.l.b16 %v1845
        %v1986 = vunpack.c.l.b16 %v1846
        %v1987 = vunpack.c.l.b16 %v1847
        %v1988 = vunpack.c.l.b16 %v1848
        %v1989 = vpack.c.b16 %v1950, %v1949
        %v1990 = vpack.c.b16 %v1952, %v1951
        %v1991 = vpack.c.b16 %v1954, %v1953
        %v1992 = vpack.c.b16 %v1956, %v1955
        %v1993 = vpack.c.b16 %v1958, %v1957
        %v1994 = vpack.c.b16 %v1960, %v1959
        %v1995 = vpack.c.b16 %v1962, %v1961
        %v1996 = vpack.c.b16 %v1964, %v1963
        %v1997 = vpack.c.b16 %v1966, %v1965
        %v1998 = vpack.c.b16 %v1968, %v1967
        %v1999 = vpack.c.b16 %v1970, %v1969
        %v2000 = vpack.c.b16 %v1972, %v1971
        %v2001 = vpack.c.b16 %v1974, %v1973
        %v2002 = vpack.c.b16 %v1976, %v1975
        %v2003 = vpack.c.b16 %v1978, %v1977
        %v2004 = vpack.c.b16 %v1980, %v1979
        %v2005 = vpack.c.b16 %v1982, %v1981
        %v2006 = vpack.c.b16 %v1984, %v1983
        %v2007 = vpack.c.b16 %v1986, %v1985
        %v2008 = vpack.c.b16 %v1988, %v1987
        %v2030 = vsel %vm745, %v1891, 0
        %v2033 = vsel %vm745, %v1894, 0
        %v2036 = vsel %vm745, %v1897, 0
        %v2039 = vsel %vm745, %v1900, 0
        %2041 = vmatpush.bf16.msra.mxu0 %v1996
        %2042 = vmatpush.bf16.msra.mxu0 %v1995
        %2043 = vmatpush.bf16.msra.mxu0 %v1994
        %2044 = vmatpush.bf16.msra.mxu0 %v1993
        %2045 = vmatpush.bf16.msra.mxu0 %v1992
        %2046 = vmatpush.bf16.msra.mxu0 %v1991
        %2047 = vmatpush.bf16.msra.mxu0 %v1990
        %2048 = vmatpush.bf16.msra.mxu0 %v1989
        %2049 = vmatmul.bf16.gmra.mxu0 %v1889
        %v2050 = vpop.f32.mrf.mxu0
        %v2051 = vadd.f32 0.0, %v2050
        %v2052 = vpop.f32.mrf.mxu0
        %v2053 = vadd.f32 0.0, %v2052
        %2054 = vmatmul.bf16.gmra.mxu0 %v1892
        %v2055 = vpop.f32.mrf.mxu0
        %v2056 = vadd.f32 0.0, %v2055
        %v2057 = vpop.f32.mrf.mxu0
        %v2058 = vadd.f32 0.0, %v2057
        %2059 = vmatmul.bf16.gmra.mxu0 %v1895
        %v2060 = vpop.f32.mrf.mxu0
        %v2061 = vadd.f32 0.0, %v2060
        %v2062 = vpop.f32.mrf.mxu0
        %v2063 = vadd.f32 0.0, %v2062
        %2064 = vmatmul.bf16.gmra.mxu0 %v1898
        %v2065 = vpop.f32.mrf.mxu0
        %v2066 = vadd.f32 0.0, %v2065
        %v2067 = vpop.f32.mrf.mxu0
        %v2068 = vadd.f32 0.0, %v2067
        %2069 = vdwg.mxu0
        %2070 = vmatpush.bf16.msra.mxu0 %v2004
        %2071 = vmatpush.bf16.msra.mxu0 %v2003
        %2072 = vmatpush.bf16.msra.mxu0 %v2002
        %2073 = vmatpush.bf16.msra.mxu0 %v2001
        %2074 = vmatpush.bf16.msra.mxu0 %v2000
        %2075 = vmatpush.bf16.msra.mxu0 %v1999
        %2076 = vmatpush.bf16.msra.mxu0 %v1998
        %2077 = vmatpush.bf16.msra.mxu0 %v1997
        %2078 = vmatmul.bf16.gmra.mxu0 %v1890
        %v2079 = vpop.f32.mrf.mxu0
        %v2080 = vadd.f32 %v2051, %v2079
        %v2081 = vpop.f32.mrf.mxu0
        %v2082 = vadd.f32 %v2053, %v2081
        %2083 = vmatmul.bf16.gmra.mxu0 %v1893
        %v2084 = vpop.f32.mrf.mxu0
        %v2085 = vadd.f32 %v2056, %v2084
        %v2086 = vpop.f32.mrf.mxu0
        %v2087 = vadd.f32 %v2058, %v2086
        %2088 = vmatmul.bf16.gmra.mxu0 %v1896
        %v2089 = vpop.f32.mrf.mxu0
        %v2090 = vadd.f32 %v2061, %v2089
        %v2091 = vpop.f32.mrf.mxu0
        %v2092 = vadd.f32 %v2063, %v2091
        %2093 = vmatmul.bf16.gmra.mxu0 %v1899
        %v2094 = vpop.f32.mrf.mxu0
        %v2095 = vadd.f32 %v2066, %v2094
        %v2096 = vpop.f32.mrf.mxu0
        %v2097 = vadd.f32 %v2068, %v2096
        %2098 = vdwg.mxu0
        %2099 = vmatpush.bf16.msra.mxu0 0
        %2100 = vmatpush.bf16.msra.mxu0 0
        %2101 = vmatpush.bf16.msra.mxu0 0
        %2102 = vmatpush.bf16.msra.mxu0 0
        %2103 = vmatpush.bf16.msra.mxu0 %v2008
        %2104 = vmatpush.bf16.msra.mxu0 %v2007
        %2105 = vmatpush.bf16.msra.mxu0 %v2006
        %2106 = vmatpush.bf16.msra.mxu0 %v2005
        %2107 = vmatmul.bf16.gmra.mxu0 %v2030
        %v2108 = vpop.f32.mrf.mxu0
        %v2109 = vadd.f32 %v2080, %v2108
        %v2110 = vpop.f32.mrf.mxu0
        %v2111 = vadd.f32 %v2082, %v2110
        %2112 = vmatmul.bf16.gmra.mxu0 %v2033
        %v2113 = vpop.f32.mrf.mxu0
        %v2114 = vadd.f32 %v2085, %v2113
        %v2115 = vpop.f32.mrf.mxu0
        %v2116 = vadd.f32 %v2087, %v2115
        %2117 = vmatmul.bf16.gmra.mxu0 %v2036
        %v2118 = vpop.f32.mrf.mxu0
        %v2119 = vadd.f32 %v2090, %v2118
        %v2120 = vpop.f32.mrf.mxu0
        %v2121 = vadd.f32 %v2092, %v2120
        %2122 = vmatmul.bf16.gmra.mxu0 %v2039
        %v2123 = vpop.f32.mrf.mxu0
        %v2124 = vadd.f32 %v2095, %v2123
        %v2125 = vpop.f32.mrf.mxu0
        %v2126 = vadd.f32 %v2097, %v2125
        %2127 = vdwg.mxu0
        %v2128 = vadd.f32 %v1105, %v2109
        %v2129 = vadd.f32 %v1107, %v2111
        %v2130 = vadd.f32 %v1110, %v2114
        %v2131 = vadd.f32 %v1112, %v2116
        %v2132 = vadd.f32 %v1115, %v2119
        %v2133 = vadd.f32 %v1117, %v2121
        %v2134 = vadd.f32 %v1120, %v2124
        %v2135 = vadd.f32 %v1122, %v2126
        %s2136 = scalar_lea.vmem [#allocation2], 1280
        %v2137 = vld [vmem:[%s2136] sm:$0xf]
        %v2138 = vld [vmem:[%s2136 + $0x4] sm:$0xf]
        %v2139 = vld [vmem:[%s2136 + $0x8] sm:$0xf]
        %v2140 = vld [vmem:[%s2136 + $0xc] sm:$0xf]
        %v2141 = vld [vmem:[%s2136 + $0x10] sm:$0xf]
        %v2142 = vld [vmem:[%s2136 + $0x14] sm:$0xf]
        %v2143 = vld [vmem:[%s2136 + $0x18] sm:$0xf]
        %v2144 = vld [vmem:[%s2136 + $0x1c] sm:$0xf]
        %v2145 = vld [vmem:[%s2136 + $0x20] sm:$0xf]
        %v2146 = vld [vmem:[%s2136 + $0x24] sm:$0xf]
        %v2147 = vld [vmem:[%s2136 + $0x28] sm:$0xf]
        %v2148 = vld [vmem:[%s2136 + $0x2c] sm:$0xf]
        %v2149 = vld [vmem:[%s2136 + $0x30] sm:$0xf]
        %v2150 = vld [vmem:[%s2136 + $0x34] sm:$0xf]
        %v2151 = vld [vmem:[%s2136 + $0x38] sm:$0xf]
        %v2152 = vld [vmem:[%s2136 + $0x3c] sm:$0xf]
        %v2153 = vld [vmem:[%s2136 + $0x40] sm:$0xf]
        %v2154 = vld [vmem:[%s2136 + $0x44] sm:$0xf]
        %v2155 = vld [vmem:[%s2136 + $0x48] sm:$0xf]
        %v2156 = vld [vmem:[%s2136 + $0x4c] sm:$0xf]
        %v2157 = vld [vmem:[%s2136 + $0x50] sm:$0xf]
        %v2158 = vld [vmem:[%s2136 + $0x54] sm:$0xf]
        %v2159 = vld [vmem:[%s2136 + $0x58] sm:$0xf]
        %v2160 = vld [vmem:[%s2136 + $0x5c] sm:$0xf]
        %v2161 = vld [vmem:[%s2136 + $0x60] sm:$0xf]
        %v2162 = vld [vmem:[%s2136 + $0x64] sm:$0xf]
        %v2163 = vld [vmem:[%s2136 + $0x68] sm:$0xf]
        %v2164 = vld [vmem:[%s2136 + $0x6c] sm:$0xf]
        %v2165 = vld [vmem:[%s2136 + $0x70] sm:$0xf]
        %v2166 = vld [vmem:[%s2136 + $0x74] sm:$0xf]
        %v2167 = vld [vmem:[%s2136 + $0x78] sm:$0xf]
        %v2168 = vld [vmem:[%s2136 + $0x7c] sm:$0xf]
        %v2169 = vld [vmem:[%s2136 + $0x80] sm:$0xf]
        %v2170 = vld [vmem:[%s2136 + $0x84] sm:$0xf]
        %v2171 = vld [vmem:[%s2136 + $0x88] sm:$0xf]
        %v2172 = vld [vmem:[%s2136 + $0x8c] sm:$0xf]
        %v2173 = vld [vmem:[%s2136 + $0x90] sm:$0xf]
        %v2174 = vld [vmem:[%s2136 + $0x94] sm:$0xf]
        %v2175 = vld [vmem:[%s2136 + $0x98] sm:$0xf]
        %v2176 = vld [vmem:[%s2136 + $0x9c] sm:$0xf]
        %v2177 = vld [vmem:[%s1791] sm:$0xff]
        %v2178 = vld [vmem:[%s1791 + $0x8] sm:$0xf]
        %v2179 = vld [vmem:[%s1791 + $0xc] sm:$0x11]
        %v2180 = vld [vmem:[%s1791 + $0x14] sm:$0x1]
        %v2181 = vld [vmem:[%s1791 + $0x18] sm:$0xff]
        %v2182 = vld [vmem:[%s1791 + $0x20] sm:$0xf]
        %v2183 = vld [vmem:[%s1791 + $0x24] sm:$0x11]
        %v2184 = vld [vmem:[%s1791 + $0x2c] sm:$0x1]
        %v2185 = vld [vmem:[%s1791 + $0x30] sm:$0xff]
        %v2186 = vld [vmem:[%s1791 + $0x38] sm:$0xf]
        %v2187 = vld [vmem:[%s1791 + $0x3c] sm:$0x11]
        %v2188 = vld [vmem:[%s1791 + $0x44] sm:$0x1]
        %v2189 = vld [vmem:[%s1791 + $0x48] sm:$0xff]
        %v2190 = vld [vmem:[%s1791 + $0x50] sm:$0xf]
        %v2191 = vld [vmem:[%s1791 + $0x54] sm:$0x11]
        %v2192 = vld [vmem:[%s1791 + $0x5c] sm:$0x1]
        %v2193 = vld [vmem:[%s1791 + $0x60] sm:$0xff]
        %v2194 = vld [vmem:[%s1791 + $0x68] sm:$0xf]
        %v2195 = vld [vmem:[%s1791 + $0x6c] sm:$0x11]
        %v2196 = vld [vmem:[%s1791 + $0x74] sm:$0x1]
        %v2197 = vld [vmem:[%s1791 + $0x78] sm:$0xff]
        %v2198 = vld [vmem:[%s1791 + $0x80] sm:$0xf]
        %v2199 = vld [vmem:[%s1791 + $0x84] sm:$0x11]
        %v2200 = vld [vmem:[%s1791 + $0x8c] sm:$0x1]
        %v2201 = vld [vmem:[%s1791 + $0x90] sm:$0xff]
        %v2202 = vld [vmem:[%s1791 + $0x98] sm:$0xf]
        %v2203 = vld [vmem:[%s1791 + $0x9c] sm:$0x11]
        %v2204 = vld [vmem:[%s1791 + $0xa4] sm:$0x1]
        %v2205 = vld [vmem:[%s1791 + $0xa8] sm:$0xff]
        %v2206 = vld [vmem:[%s1791 + $0xb0] sm:$0xf]
        %v2207 = vld [vmem:[%s1791 + $0xb4] sm:$0x11]
        %v2208 = vld [vmem:[%s1791 + $0xbc] sm:$0x1]
        %v2210 = vshrl.u32 %v2177, 16
        %v2212 = vrot.slane %v2210, 4
        %v2213 = vshll.u32 %v2177, 16
        %v2215 = vrot.slane %v2213, 5
        %v2216 = vor.u32 %v2212, %v2215
        %v2217 = vrot.slane %v2216, 4
        %v2219 = vshll.u32 %v2179, 16
        %v2221 = vrot.slane %v2219, 5
        %v2222 = vsel %vm315, %v2217, %v2221
        %v2224 = vshrl.u32 %v2178, 16
        %v2226 = vrot.slane %v2224, 4
        %v2227 = vshll.u32 %v2178, 16
        %v2229 = vrot.slane %v2227, 5
        %v2230 = vor.u32 %v2226, %v2229
        %v2231 = vrot.slane %v2230, 4
        %v2233 = vshll.u32 %v2180, 16
        %v2235 = vrot.slane %v2233, 5
        %v2236 = vsel %vm315, %v2231, %v2235
        %v2238 = vshrl.u32 %v2181, 16
        %v2240 = vrot.slane %v2238, 4
        %v2241 = vshll.u32 %v2181, 16
        %v2243 = vrot.slane %v2241, 5
        %v2244 = vor.u32 %v2240, %v2243
        %v2245 = vrot.slane %v2244, 4
        %v2247 = vshll.u32 %v2183, 16
        %v2249 = vrot.slane %v2247, 5
        %v2250 = vsel %vm315, %v2245, %v2249
        %v2252 = vshrl.u32 %v2182, 16
        %v2254 = vrot.slane %v2252, 4
        %v2255 = vshll.u32 %v2182, 16
        %v2257 = vrot.slane %v2255, 5
        %v2258 = vor.u32 %v2254, %v2257
        %v2259 = vrot.slane %v2258, 4
        %v2261 = vshll.u32 %v2184, 16
        %v2263 = vrot.slane %v2261, 5
        %v2264 = vsel %vm315, %v2259, %v2263
        %v2266 = vshrl.u32 %v2185, 16
        %v2268 = vrot.slane %v2266, 4
        %v2269 = vshll.u32 %v2185, 16
        %v2271 = vrot.slane %v2269, 5
        %v2272 = vor.u32 %v2268, %v2271
        %v2273 = vrot.slane %v2272, 4
        %v2275 = vshll.u32 %v2187, 16
        %v2277 = vrot.slane %v2275, 5
        %v2278 = vsel %vm315, %v2273, %v2277
        %v2280 = vshrl.u32 %v2186, 16
        %v2282 = vrot.slane %v2280, 4
        %v2283 = vshll.u32 %v2186, 16
        %v2285 = vrot.slane %v2283, 5
        %v2286 = vor.u32 %v2282, %v2285
        %v2287 = vrot.slane %v2286, 4
        %v2289 = vshll.u32 %v2188, 16
        %v2291 = vrot.slane %v2289, 5
        %v2292 = vsel %vm315, %v2287, %v2291
        %v2294 = vshrl.u32 %v2189, 16
        %v2296 = vrot.slane %v2294, 4
        %v2297 = vshll.u32 %v2189, 16
        %v2299 = vrot.slane %v2297, 5
        %v2300 = vor.u32 %v2296, %v2299
        %v2301 = vrot.slane %v2300, 4
        %v2303 = vshll.u32 %v2191, 16
        %v2305 = vrot.slane %v2303, 5
        %v2306 = vsel %vm315, %v2301, %v2305
        %v2308 = vshrl.u32 %v2190, 16
        %v2310 = vrot.slane %v2308, 4
        %v2311 = vshll.u32 %v2190, 16
        %v2313 = vrot.slane %v2311, 5
        %v2314 = vor.u32 %v2310, %v2313
        %v2315 = vrot.slane %v2314, 4
        %v2317 = vshll.u32 %v2192, 16
        %v2319 = vrot.slane %v2317, 5
        %v2320 = vsel %vm315, %v2315, %v2319
        %v2322 = vshrl.u32 %v2193, 16
        %v2324 = vrot.slane %v2322, 4
        %v2325 = vshll.u32 %v2193, 16
        %v2327 = vrot.slane %v2325, 5
        %v2328 = vor.u32 %v2324, %v2327
        %v2329 = vrot.slane %v2328, 4
        %v2331 = vshll.u32 %v2195, 16
        %v2333 = vrot.slane %v2331, 5
        %v2334 = vsel %vm315, %v2329, %v2333
        %v2336 = vshrl.u32 %v2194, 16
        %v2338 = vrot.slane %v2336, 4
        %v2339 = vshll.u32 %v2194, 16
        %v2341 = vrot.slane %v2339, 5
        %v2342 = vor.u32 %v2338, %v2341
        %v2343 = vrot.slane %v2342, 4
        %v2345 = vshll.u32 %v2196, 16
        %v2347 = vrot.slane %v2345, 5
        %v2348 = vsel %vm315, %v2343, %v2347
        %v2350 = vshrl.u32 %v2197, 16
        %v2352 = vrot.slane %v2350, 4
        %v2353 = vshll.u32 %v2197, 16
        %v2355 = vrot.slane %v2353, 5
        %v2356 = vor.u32 %v2352, %v2355
        %v2357 = vrot.slane %v2356, 4
        %v2359 = vshll.u32 %v2199, 16
        %v2361 = vrot.slane %v2359, 5
        %v2362 = vsel %vm315, %v2357, %v2361
        %v2364 = vshrl.u32 %v2198, 16
        %v2366 = vrot.slane %v2364, 4
        %v2367 = vshll.u32 %v2198, 16
        %v2369 = vrot.slane %v2367, 5
        %v2370 = vor.u32 %v2366, %v2369
        %v2371 = vrot.slane %v2370, 4
        %v2373 = vshll.u32 %v2200, 16
        %v2375 = vrot.slane %v2373, 5
        %v2376 = vsel %vm315, %v2371, %v2375
        %v2378 = vshrl.u32 %v2201, 16
        %v2380 = vrot.slane %v2378, 4
        %v2381 = vshll.u32 %v2201, 16
        %v2383 = vrot.slane %v2381, 5
        %v2384 = vor.u32 %v2380, %v2383
        %v2385 = vrot.slane %v2384, 4
        %v2387 = vshll.u32 %v2203, 16
        %v2389 = vrot.slane %v2387, 5
        %v2390 = vsel %vm315, %v2385, %v2389
        %v2392 = vshrl.u32 %v2202, 16
        %v2394 = vrot.slane %v2392, 4
        %v2395 = vshll.u32 %v2202, 16
        %v2397 = vrot.slane %v2395, 5
        %v2398 = vor.u32 %v2394, %v2397
        %v2399 = vrot.slane %v2398, 4
        %v2401 = vshll.u32 %v2204, 16
        %v2403 = vrot.slane %v2401, 5
        %v2404 = vsel %vm315, %v2399, %v2403
        %v2406 = vshrl.u32 %v2205, 16
        %v2408 = vrot.slane %v2406, 4
        %v2409 = vshll.u32 %v2205, 16
        %v2411 = vrot.slane %v2409, 5
        %v2412 = vor.u32 %v2408, %v2411
        %v2413 = vrot.slane %v2412, 4
        %v2415 = vshll.u32 %v2207, 16
        %v2417 = vrot.slane %v2415, 5
        %v2418 = vsel %vm315, %v2413, %v2417
        %v2420 = vshrl.u32 %v2206, 16
        %v2422 = vrot.slane %v2420, 4
        %v2423 = vshll.u32 %v2206, 16
        %v2425 = vrot.slane %v2423, 5
        %v2426 = vor.u32 %v2422, %v2425
        %v2427 = vrot.slane %v2426, 4
        %v2429 = vshll.u32 %v2208, 16
        %v2431 = vrot.slane %v2429, 5
        %v2432 = vsel %vm315, %v2427, %v2431
        %s2433 = scalar_lea.vmem [#allocation2], 480
        %v2434 = vld [vmem:[%s2433] sm:$0xf]
        %v2435 = vld [vmem:[%s2433 + $0x4] sm:$0xf]
        %v2436 = vld [vmem:[%s2433 + $0x8] sm:$0xf]
        %v2437 = vld [vmem:[%s2433 + $0xc] sm:$0xf]
        %v2438 = vld [vmem:[%s2433 + $0x10] sm:$0xf]
        %v2439 = vld [vmem:[%s2433 + $0x14] sm:$0xf]
        %v2440 = vld [vmem:[%s2433 + $0x18] sm:$0xf]
        %v2441 = vld [vmem:[%s2433 + $0x1c] sm:$0xf]
        %v2442 = vld [vmem:[%s2433 + $0x20] sm:$0xf]
        %v2443 = vld [vmem:[%s2433 + $0x24] sm:$0xf]
        %v2444 = vld [vmem:[%s2433 + $0x28] sm:$0xf]
        %v2445 = vld [vmem:[%s2433 + $0x2c] sm:$0xf]
        %v2446 = vld [vmem:[%s2433 + $0x30] sm:$0xf]
        %v2447 = vld [vmem:[%s2433 + $0x34] sm:$0xf]
        %v2448 = vld [vmem:[%s2433 + $0x38] sm:$0xf]
        %v2449 = vld [vmem:[%s2433 + $0x3c] sm:$0xf]
        %v2450 = vld [vmem:[%s2433 + $0x40] sm:$0xf]
        %v2451 = vld [vmem:[%s2433 + $0x44] sm:$0xf]
        %v2452 = vld [vmem:[%s2433 + $0x48] sm:$0xf]
        %v2453 = vld [vmem:[%s2433 + $0x4c] sm:$0xf]
        %v2454 = vld [vmem:[%s2433 + $0x50] sm:$0xf]
        %v2455 = vld [vmem:[%s2433 + $0x54] sm:$0xf]
        %v2456 = vld [vmem:[%s2433 + $0x58] sm:$0xf]
        %v2457 = vld [vmem:[%s2433 + $0x5c] sm:$0xf]
        %v2458 = vld [vmem:[%s2433 + $0x60] sm:$0xf]
        %v2459 = vld [vmem:[%s2433 + $0x64] sm:$0xf]
        %v2460 = vld [vmem:[%s2433 + $0x68] sm:$0xf]
        %v2461 = vld [vmem:[%s2433 + $0x6c] sm:$0xf]
        %v2462 = vld [vmem:[%s2433 + $0x70] sm:$0xf]
        %v2463 = vld [vmem:[%s2433 + $0x74] sm:$0xf]
        %v2464 = vld [vmem:[%s2433 + $0x78] sm:$0xf]
        %v2465 = vld [vmem:[%s2433 + $0x7c] sm:$0xf]
        %v2466 = vld [vmem:[%s2433 + $0x80] sm:$0xf]
        %v2467 = vld [vmem:[%s2433 + $0x84] sm:$0xf]
        %v2468 = vld [vmem:[%s2433 + $0x88] sm:$0xf]
        %v2469 = vld [vmem:[%s2433 + $0x8c] sm:$0xf]
        %v2470 = vld [vmem:[%s2433 + $0x90] sm:$0xf]
        %v2471 = vld [vmem:[%s2433 + $0x94] sm:$0xf]
        %v2472 = vld [vmem:[%s2433 + $0x98] sm:$0xf]
        %v2473 = vld [vmem:[%s2433 + $0x9c] sm:$0xf]
        %v2474 = vunpack.c.l.b16 %v2222
        %v2475 = vunpack.c.h.b16 %v2222
        %v2476 = vunpack.c.l.b16 %v2236
        %v2477 = vunpack.c.l.b16 %v2250
        %v2478 = vunpack.c.h.b16 %v2250
        %v2479 = vunpack.c.l.b16 %v2264
        %v2480 = vunpack.c.l.b16 %v2278
        %v2481 = vunpack.c.h.b16 %v2278
        %v2482 = vunpack.c.l.b16 %v2292
        %v2483 = vunpack.c.l.b16 %v2306
        %v2484 = vunpack.c.h.b16 %v2306
        %v2485 = vunpack.c.l.b16 %v2320
        %v2486 = vunpack.c.l.b16 %v2334
        %v2487 = vunpack.c.h.b16 %v2334
        %v2488 = vunpack.c.l.b16 %v2348
        %v2489 = vunpack.c.l.b16 %v2362
        %v2490 = vunpack.c.h.b16 %v2362
        %v2491 = vunpack.c.l.b16 %v2376
        %v2492 = vunpack.c.l.b16 %v2390
        %v2493 = vunpack.c.h.b16 %v2390
        %v2494 = vunpack.c.l.b16 %v2404
        %v2495 = vunpack.c.l.b16 %v2418
        %v2496 = vunpack.c.h.b16 %v2418
        %v2497 = vunpack.c.l.b16 %v2432
        %v2498 = vpack.c.b16 %v2477, %v2474
        %v2499 = vpack.c.b16 %v2478, %v2475
        %v2500 = vpack.c.b16 %v2479, %v2476
        %v2501 = vpack.c.b16 %v2483, %v2480
        %v2502 = vpack.c.b16 %v2484, %v2481
        %v2503 = vpack.c.b16 %v2485, %v2482
        %v2504 = vpack.c.b16 %v2489, %v2486
        %v2505 = vpack.c.b16 %v2490, %v2487
        %v2506 = vpack.c.b16 %v2491, %v2488
        %v2507 = vpack.c.b16 %v2495, %v2492
        %v2508 = vpack.c.b16 %v2496, %v2493
        %v2509 = vpack.c.b16 %v2497, %v2494
        %v2558 = vunpack.c.l.b16 %v2434
        %v2559 = vunpack.c.l.b16 %v2435
        %v2560 = vunpack.c.l.b16 %v2436
        %v2561 = vunpack.c.l.b16 %v2437
        %v2562 = vunpack.c.l.b16 %v2438
        %v2563 = vunpack.c.l.b16 %v2439
        %v2564 = vunpack.c.l.b16 %v2440
        %v2565 = vunpack.c.l.b16 %v2441
        %v2566 = vunpack.c.l.b16 %v2442
        %v2567 = vunpack.c.l.b16 %v2443
        %v2568 = vunpack.c.l.b16 %v2444
        %v2569 = vunpack.c.l.b16 %v2445
        %v2570 = vunpack.c.l.b16 %v2446
        %v2571 = vunpack.c.l.b16 %v2447
        %v2572 = vunpack.c.l.b16 %v2448
        %v2573 = vunpack.c.l.b16 %v2449
        %v2574 = vunpack.c.l.b16 %v2450
        %v2575 = vunpack.c.l.b16 %v2451
        %v2576 = vunpack.c.l.b16 %v2452
        %v2577 = vunpack.c.l.b16 %v2453
        %v2578 = vunpack.c.l.b16 %v2454
        %v2579 = vunpack.c.l.b16 %v2455
        %v2580 = vunpack.c.l.b16 %v2456
        %v2581 = vunpack.c.l.b16 %v2457
        %v2582 = vunpack.c.l.b16 %v2458
        %v2583 = vunpack.c.l.b16 %v2459
        %v2584 = vunpack.c.l.b16 %v2460
        %v2585 = vunpack.c.l.b16 %v2461
        %v2586 = vunpack.c.l.b16 %v2462
        %v2587 = vunpack.c.l.b16 %v2463
        %v2588 = vunpack.c.l.b16 %v2464
        %v2589 = vunpack.c.l.b16 %v2465
        %v2590 = vunpack.c.l.b16 %v2466
        %v2591 = vunpack.c.l.b16 %v2467
        %v2592 = vunpack.c.l.b16 %v2468
        %v2593 = vunpack.c.l.b16 %v2469
        %v2594 = vunpack.c.l.b16 %v2470
        %v2595 = vunpack.c.l.b16 %v2471
        %v2596 = vunpack.c.l.b16 %v2472
        %v2597 = vunpack.c.l.b16 %v2473
        %v2598 = vpack.c.b16 %v2559, %v2558
        %v2599 = vpack.c.b16 %v2561, %v2560
        %v2600 = vpack.c.b16 %v2563, %v2562
        %v2601 = vpack.c.b16 %v2565, %v2564
        %v2602 = vpack.c.b16 %v2567, %v2566
        %v2603 = vpack.c.b16 %v2569, %v2568
        %v2604 = vpack.c.b16 %v2571, %v2570
        %v2605 = vpack.c.b16 %v2573, %v2572
        %v2606 = vpack.c.b16 %v2575, %v2574
        %v2607 = vpack.c.b16 %v2577, %v2576
        %v2608 = vpack.c.b16 %v2579, %v2578
        %v2609 = vpack.c.b16 %v2581, %v2580
        %v2610 = vpack.c.b16 %v2583, %v2582
        %v2611 = vpack.c.b16 %v2585, %v2584
        %v2612 = vpack.c.b16 %v2587, %v2586
        %v2613 = vpack.c.b16 %v2589, %v2588
        %v2614 = vpack.c.b16 %v2591, %v2590
        %v2615 = vpack.c.b16 %v2593, %v2592
        %v2616 = vpack.c.b16 %v2595, %v2594
        %v2617 = vpack.c.b16 %v2597, %v2596
        %v2639 = vsel %vm745, %v2500, 0
        %v2642 = vsel %vm745, %v2503, 0
        %v2645 = vsel %vm745, %v2506, 0
        %v2648 = vsel %vm745, %v2509, 0
        %2650 = vmatpush.bf16.msra.mxu0 %v2605
        %2651 = vmatpush.bf16.msra.mxu0 %v2604
        %2652 = vmatpush.bf16.msra.mxu0 %v2603
        %2653 = vmatpush.bf16.msra.mxu0 %v2602
        %2654 = vmatpush.bf16.msra.mxu0 %v2601
        %2655 = vmatpush.bf16.msra.mxu0 %v2600
        %2656 = vmatpush.bf16.msra.mxu0 %v2599
        %2657 = vmatpush.bf16.msra.mxu0 %v2598
        %2658 = vmatmul.bf16.gmra.mxu0 %v2498
        %v2659 = vpop.f32.mrf.mxu0
        %v2660 = vadd.f32 0.0, %v2659
        %v2661 = vpop.f32.mrf.mxu0
        %v2662 = vadd.f32 0.0, %v2661
        %2663 = vmatmul.bf16.gmra.mxu0 %v2501
        %v2664 = vpop.f32.mrf.mxu0
        %v2665 = vadd.f32 0.0, %v2664
        %v2666 = vpop.f32.mrf.mxu0
        %v2667 = vadd.f32 0.0, %v2666
        %2668 = vmatmul.bf16.gmra.mxu0 %v2504
        %v2669 = vpop.f32.mrf.mxu0
        %v2670 = vadd.f32 0.0, %v2669
        %v2671 = vpop.f32.mrf.mxu0
        %v2672 = vadd.f32 0.0, %v2671
        %2673 = vmatmul.bf16.gmra.mxu0 %v2507
        %v2674 = vpop.f32.mrf.mxu0
        %v2675 = vadd.f32 0.0, %v2674
        %v2676 = vpop.f32.mrf.mxu0
        %v2677 = vadd.f32 0.0, %v2676
        %2678 = vdwg.mxu0
        %2679 = vmatpush.bf16.msra.mxu0 %v2613
        %2680 = vmatpush.bf16.msra.mxu0 %v2612
        %2681 = vmatpush.bf16.msra.mxu0 %v2611
        %2682 = vmatpush.bf16.msra.mxu0 %v2610
        %2683 = vmatpush.bf16.msra.mxu0 %v2609
        %2684 = vmatpush.bf16.msra.mxu0 %v2608
        %2685 = vmatpush.bf16.msra.mxu0 %v2607
        %2686 = vmatpush.bf16.msra.mxu0 %v2606
        %2687 = vmatmul.bf16.gmra.mxu0 %v2499
        %v2688 = vpop.f32.mrf.mxu0
        %v2689 = vadd.f32 %v2660, %v2688
        %v2690 = vpop.f32.mrf.mxu0
        %v2691 = vadd.f32 %v2662, %v2690
        %2692 = vmatmul.bf16.gmra.mxu0 %v2502
        %v2693 = vpop.f32.mrf.mxu0
        %v2694 = vadd.f32 %v2665, %v2693
        %v2695 = vpop.f32.mrf.mxu0
        %v2696 = vadd.f32 %v2667, %v2695
        %2697 = vmatmul.bf16.gmra.mxu0 %v2505
        %v2698 = vpop.f32.mrf.mxu0
        %v2699 = vadd.f32 %v2670, %v2698
        %v2700 = vpop.f32.mrf.mxu0
        %v2701 = vadd.f32 %v2672, %v2700
        %2702 = vmatmul.bf16.gmra.mxu0 %v2508
        %v2703 = vpop.f32.mrf.mxu0
        %v2704 = vadd.f32 %v2675, %v2703
        %v2705 = vpop.f32.mrf.mxu0
        %v2706 = vadd.f32 %v2677, %v2705
        %2707 = vdwg.mxu0
        %2708 = vmatpush.bf16.msra.mxu0 0
        %2709 = vmatpush.bf16.msra.mxu0 0
        %2710 = vmatpush.bf16.msra.mxu0 0
        %2711 = vmatpush.bf16.msra.mxu0 0
        %2712 = vmatpush.bf16.msra.mxu0 %v2617
        %2713 = vmatpush.bf16.msra.mxu0 %v2616
        %2714 = vmatpush.bf16.msra.mxu0 %v2615
        %2715 = vmatpush.bf16.msra.mxu0 %v2614
        %2716 = vmatmul.bf16.gmra.mxu0 %v2639
        %v2717 = vpop.f32.mrf.mxu0
        %v2718 = vadd.f32 %v2689, %v2717
        %v2719 = vpop.f32.mrf.mxu0
        %v2720 = vadd.f32 %v2691, %v2719
        %2721 = vmatmul.bf16.gmra.mxu0 %v2642
        %v2722 = vpop.f32.mrf.mxu0
        %v2723 = vadd.f32 %v2694, %v2722
        %v2724 = vpop.f32.mrf.mxu0
        %v2725 = vadd.f32 %v2696, %v2724
        %2726 = vmatmul.bf16.gmra.mxu0 %v2645
        %v2727 = vpop.f32.mrf.mxu0
        %v2728 = vadd.f32 %v2699, %v2727
        %v2729 = vpop.f32.mrf.mxu0
        %v2730 = vadd.f32 %v2701, %v2729
        %2731 = vmatmul.bf16.gmra.mxu0 %v2648
        %v2732 = vpop.f32.mrf.mxu0
        %v2733 = vadd.f32 %v2704, %v2732
        %v2734 = vpop.f32.mrf.mxu0
        %v2735 = vadd.f32 %v2706, %v2734
        %2736 = vdwg.mxu0
        %v2737 = vadd.f32 %v2128, %v2718
        %v2738 = vadd.f32 %v2129, %v2720
        %v2739 = vadd.f32 %v2130, %v2723
        %v2740 = vadd.f32 %v2131, %v2725
        %v2741 = vadd.f32 %v2132, %v2728
        %v2742 = vadd.f32 %v2133, %v2730
        %v2743 = vadd.f32 %v2134, %v2733
        %v2744 = vadd.f32 %v2135, %v2735
        %s2745 = scalar_lea.vmem [#allocation2], 960
        %v2746 = vld [vmem:[%s2745] sm:$0xf]
        %v2747 = vld [vmem:[%s2745 + $0x4] sm:$0xf]
        %v2748 = vld [vmem:[%s2745 + $0x8] sm:$0xf]
        %v2749 = vld [vmem:[%s2745 + $0xc] sm:$0xf]
        %v2750 = vld [vmem:[%s2745 + $0x10] sm:$0xf]
        %v2751 = vld [vmem:[%s2745 + $0x14] sm:$0xf]
        %v2752 = vld [vmem:[%s2745 + $0x18] sm:$0xf]
        %v2753 = vld [vmem:[%s2745 + $0x1c] sm:$0xf]
        %v2754 = vld [vmem:[%s2745 + $0x20] sm:$0xf]
        %v2755 = vld [vmem:[%s2745 + $0x24] sm:$0xf]
        %v2756 = vld [vmem:[%s2745 + $0x28] sm:$0xf]
        %v2757 = vld [vmem:[%s2745 + $0x2c] sm:$0xf]
        %v2758 = vld [vmem:[%s2745 + $0x30] sm:$0xf]
        %v2759 = vld [vmem:[%s2745 + $0x34] sm:$0xf]
        %v2760 = vld [vmem:[%s2745 + $0x38] sm:$0xf]
        %v2761 = vld [vmem:[%s2745 + $0x3c] sm:$0xf]
        %v2762 = vld [vmem:[%s2745 + $0x40] sm:$0xf]
        %v2763 = vld [vmem:[%s2745 + $0x44] sm:$0xf]
        %v2764 = vld [vmem:[%s2745 + $0x48] sm:$0xf]
        %v2765 = vld [vmem:[%s2745 + $0x4c] sm:$0xf]
        %v2766 = vld [vmem:[%s2745 + $0x50] sm:$0xf]
        %v2767 = vld [vmem:[%s2745 + $0x54] sm:$0xf]
        %v2768 = vld [vmem:[%s2745 + $0x58] sm:$0xf]
        %v2769 = vld [vmem:[%s2745 + $0x5c] sm:$0xf]
        %v2770 = vld [vmem:[%s2745 + $0x60] sm:$0xf]
        %v2771 = vld [vmem:[%s2745 + $0x64] sm:$0xf]
        %v2772 = vld [vmem:[%s2745 + $0x68] sm:$0xf]
        %v2773 = vld [vmem:[%s2745 + $0x6c] sm:$0xf]
        %v2774 = vld [vmem:[%s2745 + $0x70] sm:$0xf]
        %v2775 = vld [vmem:[%s2745 + $0x74] sm:$0xf]
        %v2776 = vld [vmem:[%s2745 + $0x78] sm:$0xf]
        %v2777 = vld [vmem:[%s2745 + $0x7c] sm:$0xf]
        %v2778 = vld [vmem:[%s2745 + $0x80] sm:$0xf]
        %v2779 = vld [vmem:[%s2745 + $0x84] sm:$0xf]
        %v2780 = vld [vmem:[%s2745 + $0x88] sm:$0xf]
        %v2781 = vld [vmem:[%s2745 + $0x8c] sm:$0xf]
        %v2782 = vld [vmem:[%s2745 + $0x90] sm:$0xf]
        %v2783 = vld [vmem:[%s2745 + $0x94] sm:$0xf]
        %v2784 = vld [vmem:[%s2745 + $0x98] sm:$0xf]
        %v2785 = vld [vmem:[%s2745 + $0x9c] sm:$0xf]
        %v2826 = vunpack.c.l.b16 %v2746
        %v2827 = vunpack.c.l.b16 %v2747
        %v2828 = vunpack.c.l.b16 %v2748
        %v2829 = vunpack.c.l.b16 %v2749
        %v2830 = vunpack.c.l.b16 %v2750
        %v2831 = vunpack.c.l.b16 %v2751
        %v2832 = vunpack.c.l.b16 %v2752
        %v2833 = vunpack.c.l.b16 %v2753
        %v2834 = vunpack.c.l.b16 %v2754
        %v2835 = vunpack.c.l.b16 %v2755
        %v2836 = vunpack.c.l.b16 %v2756
        %v2837 = vunpack.c.l.b16 %v2757
        %v2838 = vunpack.c.l.b16 %v2758
        %v2839 = vunpack.c.l.b16 %v2759
        %v2840 = vunpack.c.l.b16 %v2760
        %v2841 = vunpack.c.l.b16 %v2761
        %v2842 = vunpack.c.l.b16 %v2762
        %v2843 = vunpack.c.l.b16 %v2763
        %v2844 = vunpack.c.l.b16 %v2764
        %v2845 = vunpack.c.l.b16 %v2765
        %v2846 = vunpack.c.l.b16 %v2766
        %v2847 = vunpack.c.l.b16 %v2767
        %v2848 = vunpack.c.l.b16 %v2768
        %v2849 = vunpack.c.l.b16 %v2769
        %v2850 = vunpack.c.l.b16 %v2770
        %v2851 = vunpack.c.l.b16 %v2771
        %v2852 = vunpack.c.l.b16 %v2772
        %v2853 = vunpack.c.l.b16 %v2773
        %v2854 = vunpack.c.l.b16 %v2774
        %v2855 = vunpack.c.l.b16 %v2775
        %v2856 = vunpack.c.l.b16 %v2776
        %v2857 = vunpack.c.l.b16 %v2777
        %v2858 = vunpack.c.l.b16 %v2778
        %v2859 = vunpack.c.l.b16 %v2779
        %v2860 = vunpack.c.l.b16 %v2780
        %v2861 = vunpack.c.l.b16 %v2781
        %v2862 = vunpack.c.l.b16 %v2782
        %v2863 = vunpack.c.l.b16 %v2783
        %v2864 = vunpack.c.l.b16 %v2784
        %v2865 = vunpack.c.l.b16 %v2785
        %v2866 = vpack.c.b16 %v2827, %v2826
        %v2867 = vpack.c.b16 %v2829, %v2828
        %v2868 = vpack.c.b16 %v2831, %v2830
        %v2869 = vpack.c.b16 %v2833, %v2832
        %v2870 = vpack.c.b16 %v2835, %v2834
        %v2871 = vpack.c.b16 %v2837, %v2836
        %v2872 = vpack.c.b16 %v2839, %v2838
        %v2873 = vpack.c.b16 %v2841, %v2840
        %v2874 = vpack.c.b16 %v2843, %v2842
        %v2875 = vpack.c.b16 %v2845, %v2844
        %v2876 = vpack.c.b16 %v2847, %v2846
        %v2877 = vpack.c.b16 %v2849, %v2848
        %v2878 = vpack.c.b16 %v2851, %v2850
        %v2879 = vpack.c.b16 %v2853, %v2852
        %v2880 = vpack.c.b16 %v2855, %v2854
        %v2881 = vpack.c.b16 %v2857, %v2856
        %v2882 = vpack.c.b16 %v2859, %v2858
        %v2883 = vpack.c.b16 %v2861, %v2860
        %v2884 = vpack.c.b16 %v2863, %v2862
        %v2885 = vpack.c.b16 %v2865, %v2864
        %2906 = vmatpush.bf16.msra.mxu0 %v2873
        %2907 = vmatpush.bf16.msra.mxu0 %v2872
        %2908 = vmatpush.bf16.msra.mxu0 %v2871
        %2909 = vmatpush.bf16.msra.mxu0 %v2870
        %2910 = vmatpush.bf16.msra.mxu0 %v2869
        %2911 = vmatpush.bf16.msra.mxu0 %v2868
        %2912 = vmatpush.bf16.msra.mxu0 %v2867
        %2913 = vmatpush.bf16.msra.mxu0 %v2866
        %2914 = vmatmul.bf16.gmra.mxu0 %v2498
        %v2915 = vpop.f32.mrf.mxu0
        %v2916 = vadd.f32 0.0, %v2915
        %v2917 = vpop.f32.mrf.mxu0
        %v2918 = vadd.f32 0.0, %v2917
        %2919 = vmatmul.bf16.gmra.mxu0 %v2501
        %v2920 = vpop.f32.mrf.mxu0
        %v2921 = vadd.f32 0.0, %v2920
        %v2922 = vpop.f32.mrf.mxu0
        %v2923 = vadd.f32 0.0, %v2922
        %2924 = vmatmul.bf16.gmra.mxu0 %v2504
        %v2925 = vpop.f32.mrf.mxu0
        %v2926 = vadd.f32 0.0, %v2925
        %v2927 = vpop.f32.mrf.mxu0
        %v2928 = vadd.f32 0.0, %v2927
        %2929 = vmatmul.bf16.gmra.mxu0 %v2507
        %v2930 = vpop.f32.mrf.mxu0
        %v2931 = vadd.f32 0.0, %v2930
        %v2932 = vpop.f32.mrf.mxu0
        %v2933 = vadd.f32 0.0, %v2932
        %2934 = vdwg.mxu0
        %2935 = vmatpush.bf16.msra.mxu0 %v2881
        %2936 = vmatpush.bf16.msra.mxu0 %v2880
        %2937 = vmatpush.bf16.msra.mxu0 %v2879
        %2938 = vmatpush.bf16.msra.mxu0 %v2878
        %2939 = vmatpush.bf16.msra.mxu0 %v2877
        %2940 = vmatpush.bf16.msra.mxu0 %v2876
        %2941 = vmatpush.bf16.msra.mxu0 %v2875
        %2942 = vmatpush.bf16.msra.mxu0 %v2874
        %2943 = vmatmul.bf16.gmra.mxu0 %v2499
        %v2944 = vpop.f32.mrf.mxu0
        %v2945 = vadd.f32 %v2916, %v2944
        %v2946 = vpop.f32.mrf.mxu0
        %v2947 = vadd.f32 %v2918, %v2946
        %2948 = vmatmul.bf16.gmra.mxu0 %v2502
        %v2949 = vpop.f32.mrf.mxu0
        %v2950 = vadd.f32 %v2921, %v2949
        %v2951 = vpop.f32.mrf.mxu0
        %v2952 = vadd.f32 %v2923, %v2951
        %2953 = vmatmul.bf16.gmra.mxu0 %v2505
        %v2954 = vpop.f32.mrf.mxu0
        %v2955 = vadd.f32 %v2926, %v2954
        %v2956 = vpop.f32.mrf.mxu0
        %v2957 = vadd.f32 %v2928, %v2956
        %2958 = vmatmul.bf16.gmra.mxu0 %v2508
        %v2959 = vpop.f32.mrf.mxu0
        %v2960 = vadd.f32 %v2931, %v2959
        %v2961 = vpop.f32.mrf.mxu0
        %v2962 = vadd.f32 %v2933, %v2961
        %2963 = vdwg.mxu0
        %2964 = vmatpush.bf16.msra.mxu0 0
        %2965 = vmatpush.bf16.msra.mxu0 0
        %2966 = vmatpush.bf16.msra.mxu0 0
        %2967 = vmatpush.bf16.msra.mxu0 0
        %2968 = vmatpush.bf16.msra.mxu0 %v2885
        %2969 = vmatpush.bf16.msra.mxu0 %v2884
        %2970 = vmatpush.bf16.msra.mxu0 %v2883
        %2971 = vmatpush.bf16.msra.mxu0 %v2882
        %2972 = vmatmul.bf16.gmra.mxu0 %v2639
        %v2973 = vpop.f32.mrf.mxu0
        %v2974 = vadd.f32 %v2945, %v2973
        %v2975 = vpop.f32.mrf.mxu0
        %v2976 = vadd.f32 %v2947, %v2975
        %2977 = vmatmul.bf16.gmra.mxu0 %v2642
        %v2978 = vpop.f32.mrf.mxu0
        %v2979 = vadd.f32 %v2950, %v2978
        %v2980 = vpop.f32.mrf.mxu0
        %v2981 = vadd.f32 %v2952, %v2980
        %2982 = vmatmul.bf16.gmra.mxu0 %v2645
        %v2983 = vpop.f32.mrf.mxu0
        %v2984 = vadd.f32 %v2955, %v2983
        %v2985 = vpop.f32.mrf.mxu0
        %v2986 = vadd.f32 %v2957, %v2985
        %2987 = vmatmul.bf16.gmra.mxu0 %v2648
        %v2988 = vpop.f32.mrf.mxu0
        %v2989 = vadd.f32 %v2960, %v2988
        %v2990 = vpop.f32.mrf.mxu0
        %v2991 = vadd.f32 %v2962, %v2990
        %2992 = vdwg.mxu0
        %v2993 = vadd.f32 %v1772, %v2974
        %v2994 = vadd.f32 %v1774, %v2976
        %v2995 = vadd.f32 %v1777, %v2979
        %v2996 = vadd.f32 %v1779, %v2981
        %v2997 = vadd.f32 %v1782, %v2984
        %v2998 = vadd.f32 %v1784, %v2986
        %v2999 = vadd.f32 %v1787, %v2989
        %v3000 = vadd.f32 %v1789, %v2991
        %s3001 = scalar_lea.vmem [#allocation2], 1440
        %v3002 = vld [vmem:[%s3001] sm:$0xf]
        %v3003 = vld [vmem:[%s3001 + $0x4] sm:$0xf]
        %v3004 = vld [vmem:[%s3001 + $0x8] sm:$0xf]
        %v3005 = vld [vmem:[%s3001 + $0xc] sm:$0xf]
        %v3006 = vld [vmem:[%s3001 + $0x10] sm:$0xf]
        %v3007 = vld [vmem:[%s3001 + $0x14] sm:$0xf]
        %v3008 = vld [vmem:[%s3001 + $0x18] sm:$0xf]
        %v3009 = vld [vmem:[%s3001 + $0x1c] sm:$0xf]
        %v3010 = vld [vmem:[%s3001 + $0x20] sm:$0xf]
        %v3011 = vld [vmem:[%s3001 + $0x24] sm:$0xf]
        %v3012 = vld [vmem:[%s3001 + $0x28] sm:$0xf]
        %v3013 = vld [vmem:[%s3001 + $0x2c] sm:$0xf]
        %v3014 = vld [vmem:[%s3001 + $0x30] sm:$0xf]
        %v3015 = vld [vmem:[%s3001 + $0x34] sm:$0xf]
        %v3016 = vld [vmem:[%s3001 + $0x38] sm:$0xf]
        %v3017 = vld [vmem:[%s3001 + $0x3c] sm:$0xf]
        %v3018 = vld [vmem:[%s3001 + $0x40] sm:$0xf]
        %v3019 = vld [vmem:[%s3001 + $0x44] sm:$0xf]
        %v3020 = vld [vmem:[%s3001 + $0x48] sm:$0xf]
        %v3021 = vld [vmem:[%s3001 + $0x4c] sm:$0xf]
        %v3022 = vld [vmem:[%s3001 + $0x50] sm:$0xf]
        %v3023 = vld [vmem:[%s3001 + $0x54] sm:$0xf]
        %v3024 = vld [vmem:[%s3001 + $0x58] sm:$0xf]
        %v3025 = vld [vmem:[%s3001 + $0x5c] sm:$0xf]
        %v3026 = vld [vmem:[%s3001 + $0x60] sm:$0xf]
        %v3027 = vld [vmem:[%s3001 + $0x64] sm:$0xf]
        %v3028 = vld [vmem:[%s3001 + $0x68] sm:$0xf]
        %v3029 = vld [vmem:[%s3001 + $0x6c] sm:$0xf]
        %v3030 = vld [vmem:[%s3001 + $0x70] sm:$0xf]
        %v3031 = vld [vmem:[%s3001 + $0x74] sm:$0xf]
        %v3032 = vld [vmem:[%s3001 + $0x78] sm:$0xf]
        %v3033 = vld [vmem:[%s3001 + $0x7c] sm:$0xf]
        %v3034 = vld [vmem:[%s3001 + $0x80] sm:$0xf]
        %v3035 = vld [vmem:[%s3001 + $0x84] sm:$0xf]
        %v3036 = vld [vmem:[%s3001 + $0x88] sm:$0xf]
        %v3037 = vld [vmem:[%s3001 + $0x8c] sm:$0xf]
        %v3038 = vld [vmem:[%s3001 + $0x90] sm:$0xf]
        %v3039 = vld [vmem:[%s3001 + $0x94] sm:$0xf]
        %v3040 = vld [vmem:[%s3001 + $0x98] sm:$0xf]
        %v3041 = vld [vmem:[%s3001 + $0x9c] sm:$0xf]
        %v3082 = vunpack.c.l.b16 %v3002
        %v3083 = vunpack.c.l.b16 %v3003
        %v3084 = vunpack.c.l.b16 %v3004
        %v3085 = vunpack.c.l.b16 %v3005
        %v3086 = vunpack.c.l.b16 %v3006
        %v3087 = vunpack.c.l.b16 %v3007
        %v3088 = vunpack.c.l.b16 %v3008
        %v3089 = vunpack.c.l.b16 %v3009
        %v3090 = vunpack.c.l.b16 %v3010
        %v3091 = vunpack.c.l.b16 %v3011
        %v3092 = vunpack.c.l.b16 %v3012
        %v3093 = vunpack.c.l.b16 %v3013
        %v3094 = vunpack.c.l.b16 %v3014
        %v3095 = vunpack.c.l.b16 %v3015
        %v3096 = vunpack.c.l.b16 %v3016
        %v3097 = vunpack.c.l.b16 %v3017
        %v3098 = vunpack.c.l.b16 %v3018
        %v3099 = vunpack.c.l.b16 %v3019
        %v3100 = vunpack.c.l.b16 %v3020
        %v3101 = vunpack.c.l.b16 %v3021
        %v3102 = vunpack.c.l.b16 %v3022
        %v3103 = vunpack.c.l.b16 %v3023
        %v3104 = vunpack.c.l.b16 %v3024
        %v3105 = vunpack.c.l.b16 %v3025
        %v3106 = vunpack.c.l.b16 %v3026
        %v3107 = vunpack.c.l.b16 %v3027
        %v3108 = vunpack.c.l.b16 %v3028
        %v3109 = vunpack.c.l.b16 %v3029
        %v3110 = vunpack.c.l.b16 %v3030
        %v3111 = vunpack.c.l.b16 %v3031
        %v3112 = vunpack.c.l.b16 %v3032
        %v3113 = vunpack.c.l.b16 %v3033
        %v3114 = vunpack.c.l.b16 %v3034
        %v3115 = vunpack.c.l.b16 %v3035
        %v3116 = vunpack.c.l.b16 %v3036
        %v3117 = vunpack.c.l.b16 %v3037
        %v3118 = vunpack.c.l.b16 %v3038
        %v3119 = vunpack.c.l.b16 %v3039
        %v3120 = vunpack.c.l.b16 %v3040
        %v3121 = vunpack.c.l.b16 %v3041
        %v3122 = vpack.c.b16 %v3083, %v3082
        %v3123 = vpack.c.b16 %v3085, %v3084
        %v3124 = vpack.c.b16 %v3087, %v3086
        %v3125 = vpack.c.b16 %v3089, %v3088
        %v3126 = vpack.c.b16 %v3091, %v3090
        %v3127 = vpack.c.b16 %v3093, %v3092
        %v3128 = vpack.c.b16 %v3095, %v3094
        %v3129 = vpack.c.b16 %v3097, %v3096
        %v3130 = vpack.c.b16 %v3099, %v3098
        %v3131 = vpack.c.b16 %v3101, %v3100
        %v3132 = vpack.c.b16 %v3103, %v3102
        %v3133 = vpack.c.b16 %v3105, %v3104
        %v3134 = vpack.c.b16 %v3107, %v3106
        %v3135 = vpack.c.b16 %v3109, %v3108
        %v3136 = vpack.c.b16 %v3111, %v3110
        %v3137 = vpack.c.b16 %v3113, %v3112
        %v3138 = vpack.c.b16 %v3115, %v3114
        %v3139 = vpack.c.b16 %v3117, %v3116
        %v3140 = vpack.c.b16 %v3119, %v3118
        %v3141 = vpack.c.b16 %v3121, %v3120
        %3162 = vmatpush.bf16.msra.mxu0 %v3129
        %3163 = vmatpush.bf16.msra.mxu0 %v3128
        %3164 = vmatpush.bf16.msra.mxu0 %v3127
        %3165 = vmatpush.bf16.msra.mxu0 %v3126
        %3166 = vmatpush.bf16.msra.mxu0 %v3125
        %3167 = vmatpush.bf16.msra.mxu0 %v3124
        %3168 = vmatpush.bf16.msra.mxu0 %v3123
        %3169 = vmatpush.bf16.msra.mxu0 %v3122
        %3170 = vmatmul.bf16.gmra.mxu0 %v2498
        %v3171 = vpop.f32.mrf.mxu0
        %v3172 = vadd.f32 0.0, %v3171
        %v3173 = vpop.f32.mrf.mxu0
        %v3174 = vadd.f32 0.0, %v3173
        %3175 = vmatmul.bf16.gmra.mxu0 %v2501
        %v3176 = vpop.f32.mrf.mxu0
        %v3177 = vadd.f32 0.0, %v3176
        %v3178 = vpop.f32.mrf.mxu0
        %v3179 = vadd.f32 0.0, %v3178
        %3180 = vmatmul.bf16.gmra.mxu0 %v2504
        %v3181 = vpop.f32.mrf.mxu0
        %v3182 = vadd.f32 0.0, %v3181
        %v3183 = vpop.f32.mrf.mxu0
        %v3184 = vadd.f32 0.0, %v3183
        %3185 = vmatmul.bf16.gmra.mxu0 %v2507
        %v3186 = vpop.f32.mrf.mxu0
        %v3187 = vadd.f32 0.0, %v3186
        %v3188 = vpop.f32.mrf.mxu0
        %v3189 = vadd.f32 0.0, %v3188
        %3190 = vdwg.mxu0
        %3191 = vmatpush.bf16.msra.mxu0 %v3137
        %3192 = vmatpush.bf16.msra.mxu0 %v3136
        %3193 = vmatpush.bf16.msra.mxu0 %v3135
        %3194 = vmatpush.bf16.msra.mxu0 %v3134
        %3195 = vmatpush.bf16.msra.mxu0 %v3133
        %3196 = vmatpush.bf16.msra.mxu0 %v3132
        %3197 = vmatpush.bf16.msra.mxu0 %v3131
        %3198 = vmatpush.bf16.msra.mxu0 %v3130
        %3199 = vmatmul.bf16.gmra.mxu0 %v2499
        %v3200 = vpop.f32.mrf.mxu0
        %v3201 = vadd.f32 %v3172, %v3200
        %v3202 = vpop.f32.mrf.mxu0
        %v3203 = vadd.f32 %v3174, %v3202
        %3204 = vmatmul.bf16.gmra.mxu0 %v2502
        %v3205 = vpop.f32.mrf.mxu0
        %v3206 = vadd.f32 %v3177, %v3205
        %v3207 = vpop.f32.mrf.mxu0
        %v3208 = vadd.f32 %v3179, %v3207
        %3209 = vmatmul.bf16.gmra.mxu0 %v2505
        %v3210 = vpop.f32.mrf.mxu0
        %v3211 = vadd.f32 %v3182, %v3210
        %v3212 = vpop.f32.mrf.mxu0
        %v3213 = vadd.f32 %v3184, %v3212
        %3214 = vmatmul.bf16.gmra.mxu0 %v2508
        %v3215 = vpop.f32.mrf.mxu0
        %v3216 = vadd.f32 %v3187, %v3215
        %v3217 = vpop.f32.mrf.mxu0
        %v3218 = vadd.f32 %v3189, %v3217
        %3219 = vdwg.mxu0
        %3220 = vmatpush.bf16.msra.mxu0 0
        %3221 = vmatpush.bf16.msra.mxu0 0
        %3222 = vmatpush.bf16.msra.mxu0 0
        %3223 = vmatpush.bf16.msra.mxu0 0
        %3224 = vmatpush.bf16.msra.mxu0 %v3141
        %3225 = vmatpush.bf16.msra.mxu0 %v3140
        %3226 = vmatpush.bf16.msra.mxu0 %v3139
        %3227 = vmatpush.bf16.msra.mxu0 %v3138
        %3228 = vmatmul.bf16.gmra.mxu0 %v2639
        %v3229 = vpop.f32.mrf.mxu0
        %v3230 = vadd.f32 %v3201, %v3229
        %v3231 = vpop.f32.mrf.mxu0
        %v3232 = vadd.f32 %v3203, %v3231
        %3233 = vmatmul.bf16.gmra.mxu0 %v2642
        %v3234 = vpop.f32.mrf.mxu0
        %v3235 = vadd.f32 %v3206, %v3234
        %v3236 = vpop.f32.mrf.mxu0
        %v3237 = vadd.f32 %v3208, %v3236
        %3238 = vmatmul.bf16.gmra.mxu0 %v2645
        %v3239 = vpop.f32.mrf.mxu0
        %v3240 = vadd.f32 %v3211, %v3239
        %v3241 = vpop.f32.mrf.mxu0
        %v3242 = vadd.f32 %v3213, %v3241
        %3243 = vmatmul.bf16.gmra.mxu0 %v2648
        %v3244 = vpop.f32.mrf.mxu0
        %v3245 = vadd.f32 %v3216, %v3244
        %v3246 = vpop.f32.mrf.mxu0
        %v3247 = vadd.f32 %v3218, %v3246
        %3248 = vdwg.mxu0
        %v3289 = vunpack.c.l.b16 %v2137
        %v3290 = vunpack.c.l.b16 %v2138
        %v3291 = vunpack.c.l.b16 %v2139
        %v3292 = vunpack.c.l.b16 %v2140
        %v3293 = vunpack.c.l.b16 %v2141
        %v3294 = vunpack.c.l.b16 %v2142
        %v3295 = vunpack.c.l.b16 %v2143
        %v3296 = vunpack.c.l.b16 %v2144
        %v3297 = vunpack.c.l.b16 %v2145
        %v3298 = vunpack.c.l.b16 %v2146
        %v3299 = vunpack.c.l.b16 %v2147
        %v3300 = vunpack.c.l.b16 %v2148
        %v3301 = vunpack.c.l.b16 %v2149
        %v3302 = vunpack.c.l.b16 %v2150
        %v3303 = vunpack.c.l.b16 %v2151
        %v3304 = vunpack.c.l.b16 %v2152
        %v3305 = vunpack.c.l.b16 %v2153
        %v3306 = vunpack.c.l.b16 %v2154
        %v3307 = vunpack.c.l.b16 %v2155
        %v3308 = vunpack.c.l.b16 %v2156
        %v3309 = vunpack.c.l.b16 %v2157
        %v3310 = vunpack.c.l.b16 %v2158
        %v3311 = vunpack.c.l.b16 %v2159
        %v3312 = vunpack.c.l.b16 %v2160
        %v3313 = vunpack.c.l.b16 %v2161
        %v3314 = vunpack.c.l.b16 %v2162
        %v3315 = vunpack.c.l.b16 %v2163
        %v3316 = vunpack.c.l.b16 %v2164
        %v3317 = vunpack.c.l.b16 %v2165
        %v3318 = vunpack.c.l.b16 %v2166
        %v3319 = vunpack.c.l.b16 %v2167
        %v3320 = vunpack.c.l.b16 %v2168
        %v3321 = vunpack.c.l.b16 %v2169
        %v3322 = vunpack.c.l.b16 %v2170
        %v3323 = vunpack.c.l.b16 %v2171
        %v3324 = vunpack.c.l.b16 %v2172
        %v3325 = vunpack.c.l.b16 %v2173
        %v3326 = vunpack.c.l.b16 %v2174
        %v3327 = vunpack.c.l.b16 %v2175
        %v3328 = vunpack.c.l.b16 %v2176
        %v3329 = vpack.c.b16 %v3290, %v3289
        %v3330 = vpack.c.b16 %v3292, %v3291
        %v3331 = vpack.c.b16 %v3294, %v3293
        %v3332 = vpack.c.b16 %v3296, %v3295
        %v3333 = vpack.c.b16 %v3298, %v3297
        %v3334 = vpack.c.b16 %v3300, %v3299
        %v3335 = vpack.c.b16 %v3302, %v3301
        %v3336 = vpack.c.b16 %v3304, %v3303
        %v3337 = vpack.c.b16 %v3306, %v3305
        %v3338 = vpack.c.b16 %v3308, %v3307
        %v3339 = vpack.c.b16 %v3310, %v3309
        %v3340 = vpack.c.b16 %v3312, %v3311
        %v3341 = vpack.c.b16 %v3314, %v3313
        %v3342 = vpack.c.b16 %v3316, %v3315
        %v3343 = vpack.c.b16 %v3318, %v3317
        %v3344 = vpack.c.b16 %v3320, %v3319
        %v3345 = vpack.c.b16 %v3322, %v3321
        %v3346 = vpack.c.b16 %v3324, %v3323
        %v3347 = vpack.c.b16 %v3326, %v3325
        %v3348 = vpack.c.b16 %v3328, %v3327
        %3369 = vmatpush.bf16.msra.mxu0 %v3336
        %3370 = vmatpush.bf16.msra.mxu0 %v3335
        %3371 = vmatpush.bf16.msra.mxu0 %v3334
        %3372 = vmatpush.bf16.msra.mxu0 %v3333
        %3373 = vmatpush.bf16.msra.mxu0 %v3332
        %3374 = vmatpush.bf16.msra.mxu0 %v3331
        %3375 = vmatpush.bf16.msra.mxu0 %v3330
        %3376 = vmatpush.bf16.msra.mxu0 %v3329
        %3377 = vmatmul.bf16.gmra.mxu0 %v1889
        %v3378 = vpop.f32.mrf.mxu0
        %v3379 = vadd.f32 %v3230, %v3378
        %v3380 = vpop.f32.mrf.mxu0
        %v3381 = vadd.f32 %v3232, %v3380
        %3382 = vmatmul.bf16.gmra.mxu0 %v1892
        %v3383 = vpop.f32.mrf.mxu0
        %v3384 = vadd.f32 %v3235, %v3383
        %v3385 = vpop.f32.mrf.mxu0
        %v3386 = vadd.f32 %v3237, %v3385
        %3387 = vmatmul.bf16.gmra.mxu0 %v1895
        %v3388 = vpop.f32.mrf.mxu0
        %v3389 = vadd.f32 %v3240, %v3388
        %v3390 = vpop.f32.mrf.mxu0
        %v3391 = vadd.f32 %v3242, %v3390
        %3392 = vmatmul.bf16.gmra.mxu0 %v1898
        %v3393 = vpop.f32.mrf.mxu0
        %v3394 = vadd.f32 %v3245, %v3393
        %v3395 = vpop.f32.mrf.mxu0
        %v3396 = vadd.f32 %v3247, %v3395
        %3397 = vdwg.mxu0
        %3398 = vmatpush.bf16.msra.mxu0 %v3344
        %3399 = vmatpush.bf16.msra.mxu0 %v3343
        %3400 = vmatpush.bf16.msra.mxu0 %v3342
        %3401 = vmatpush.bf16.msra.mxu0 %v3341
        %3402 = vmatpush.bf16.msra.mxu0 %v3340
        %3403 = vmatpush.bf16.msra.mxu0 %v3339
        %3404 = vmatpush.bf16.msra.mxu0 %v3338
        %3405 = vmatpush.bf16.msra.mxu0 %v3337
        %3406 = vmatmul.bf16.gmra.mxu0 %v1890
        %v3407 = vpop.f32.mrf.mxu0
        %v3408 = vadd.f32 %v3379, %v3407
        %v3409 = vpop.f32.mrf.mxu0
        %v3410 = vadd.f32 %v3381, %v3409
        %3411 = vmatmul.bf16.gmra.mxu0 %v1893
        %v3412 = vpop.f32.mrf.mxu0
        %v3413 = vadd.f32 %v3384, %v3412
        %v3414 = vpop.f32.mrf.mxu0
        %v3415 = vadd.f32 %v3386, %v3414
        %3416 = vmatmul.bf16.gmra.mxu0 %v1896
        %v3417 = vpop.f32.mrf.mxu0
        %v3418 = vadd.f32 %v3389, %v3417
        %v3419 = vpop.f32.mrf.mxu0
        %v3420 = vadd.f32 %v3391, %v3419
        %3421 = vmatmul.bf16.gmra.mxu0 %v1899
        %v3422 = vpop.f32.mrf.mxu0
        %v3423 = vadd.f32 %v3394, %v3422
        %v3424 = vpop.f32.mrf.mxu0
        %v3425 = vadd.f32 %v3396, %v3424
        %3426 = vdwg.mxu0
        %3427 = vmatpush.bf16.msra.mxu0 0
        %3428 = vmatpush.bf16.msra.mxu0 0
        %3429 = vmatpush.bf16.msra.mxu0 0
        %3430 = vmatpush.bf16.msra.mxu0 0
        %3431 = vmatpush.bf16.msra.mxu0 %v3348
        %3432 = vmatpush.bf16.msra.mxu0 %v3347
        %3433 = vmatpush.bf16.msra.mxu0 %v3346
        %3434 = vmatpush.bf16.msra.mxu0 %v3345
        %3435 = vmatmul.bf16.gmra.mxu0 %v2030
        %v3436 = vpop.f32.mrf.mxu0
        %v3437 = vadd.f32 %v3408, %v3436
        %v3438 = vpop.f32.mrf.mxu0
        %v3439 = vadd.f32 %v3410, %v3438
        %3440 = vmatmul.bf16.gmra.mxu0 %v2033
        %v3441 = vpop.f32.mrf.mxu0
        %v3442 = vadd.f32 %v3413, %v3441
        %v3443 = vpop.f32.mrf.mxu0
        %v3444 = vadd.f32 %v3415, %v3443
        %3445 = vmatmul.bf16.gmra.mxu0 %v2036
        %v3446 = vpop.f32.mrf.mxu0
        %v3447 = vadd.f32 %v3418, %v3446
        %v3448 = vpop.f32.mrf.mxu0
        %v3449 = vadd.f32 %v3420, %v3448
        %3450 = vmatmul.bf16.gmra.mxu0 %v2039
        %v3451 = vpop.f32.mrf.mxu0
        %v3452 = vadd.f32 %v3423, %v3451
        %v3453 = vpop.f32.mrf.mxu0
        %v3454 = vadd.f32 %v3425, %v3453
        %3455 = vdwg.mxu0
        %s3456 = scalar_lea.vmem [#allocation2], 1920
        %v3457 = vld [vmem:[%s3456] sm:$0xf]
        %v3458 = vld [vmem:[%s3456 + $0x4] sm:$0xf]
        %v3459 = vld [vmem:[%s3456 + $0x8] sm:$0xf]
        %v3460 = vld [vmem:[%s3456 + $0xc] sm:$0xf]
        %v3461 = vld [vmem:[%s3456 + $0x10] sm:$0xf]
        %v3462 = vld [vmem:[%s3456 + $0x14] sm:$0xf]
        %v3463 = vld [vmem:[%s3456 + $0x18] sm:$0xf]
        %v3464 = vld [vmem:[%s3456 + $0x1c] sm:$0xf]
        %v3465 = vld [vmem:[%s3456 + $0x20] sm:$0xf]
        %v3466 = vld [vmem:[%s3456 + $0x24] sm:$0xf]
        %v3467 = vld [vmem:[%s3456 + $0x28] sm:$0xf]
        %v3468 = vld [vmem:[%s3456 + $0x2c] sm:$0xf]
        %v3469 = vld [vmem:[%s3456 + $0x30] sm:$0xf]
        %v3470 = vld [vmem:[%s3456 + $0x34] sm:$0xf]
        %v3471 = vld [vmem:[%s3456 + $0x38] sm:$0xf]
        %v3472 = vld [vmem:[%s3456 + $0x3c] sm:$0xf]
        %v3473 = vld [vmem:[%s3456 + $0x40] sm:$0xf]
        %v3474 = vld [vmem:[%s3456 + $0x44] sm:$0xf]
        %v3475 = vld [vmem:[%s3456 + $0x48] sm:$0xf]
        %v3476 = vld [vmem:[%s3456 + $0x4c] sm:$0xf]
        %v3477 = vld [vmem:[%s3456 + $0x50] sm:$0xf]
        %v3478 = vld [vmem:[%s3456 + $0x54] sm:$0xf]
        %v3479 = vld [vmem:[%s3456 + $0x58] sm:$0xf]
        %v3480 = vld [vmem:[%s3456 + $0x5c] sm:$0xf]
        %v3481 = vld [vmem:[%s3456 + $0x60] sm:$0xf]
        %v3482 = vld [vmem:[%s3456 + $0x64] sm:$0xf]
        %v3483 = vld [vmem:[%s3456 + $0x68] sm:$0xf]
        %v3484 = vld [vmem:[%s3456 + $0x6c] sm:$0xf]
        %v3485 = vld [vmem:[%s3456 + $0x70] sm:$0xf]
        %v3486 = vld [vmem:[%s3456 + $0x74] sm:$0xf]
        %v3487 = vld [vmem:[%s3456 + $0x78] sm:$0xf]
        %v3488 = vld [vmem:[%s3456 + $0x7c] sm:$0xf]
        %v3489 = vld [vmem:[%s3456 + $0x80] sm:$0xf]
        %v3490 = vld [vmem:[%s3456 + $0x84] sm:$0xf]
        %v3491 = vld [vmem:[%s3456 + $0x88] sm:$0xf]
        %v3492 = vld [vmem:[%s3456 + $0x8c] sm:$0xf]
        %v3493 = vld [vmem:[%s3456 + $0x90] sm:$0xf]
        %v3494 = vld [vmem:[%s3456 + $0x94] sm:$0xf]
        %v3495 = vld [vmem:[%s3456 + $0x98] sm:$0xf]
        %v3496 = vld [vmem:[%s3456 + $0x9c] sm:$0xf]
        %v3497 = vld [vmem:[%s1791] sm:$0xee]
        %v3498 = vld [vmem:[%s1791 + $0x8] sm:$0xe]
        %v3499 = vld [vmem:[%s1791 + $0x18] sm:$0xee]
        %v3500 = vld [vmem:[%s1791 + $0x20] sm:$0xe]
        %v3501 = vld [vmem:[%s1791 + $0x30] sm:$0xee]
        %v3502 = vld [vmem:[%s1791 + $0x38] sm:$0xe]
        %v3503 = vld [vmem:[%s1791 + $0x48] sm:$0xee]
        %v3504 = vld [vmem:[%s1791 + $0x50] sm:$0xe]
        %v3505 = vld [vmem:[%s1791 + $0x60] sm:$0xee]
        %v3506 = vld [vmem:[%s1791 + $0x68] sm:$0xe]
        %v3507 = vld [vmem:[%s1791 + $0x78] sm:$0xee]
        %v3508 = vld [vmem:[%s1791 + $0x80] sm:$0xe]
        %v3509 = vld [vmem:[%s1791 + $0x90] sm:$0xee]
        %v3510 = vld [vmem:[%s1791 + $0x98] sm:$0xe]
        %v3511 = vld [vmem:[%s1791 + $0xa8] sm:$0xee]
        %v3512 = vld [vmem:[%s1791 + $0xb0] sm:$0xe]
        %v3545 = vrot.slane %v3497, 5
        %v3546 = vrot.slane %v3545, 4
        %v3547 = vrot.slane %v2179, 5
        %v3548 = vsel %vm1215, %v3546, %v3547
        %v3549 = vrot.slane %v3498, 5
        %v3550 = vrot.slane %v3549, 4
        %v3551 = vrot.slane %v2180, 5
        %v3552 = vsel %vm1215, %v3550, %v3551
        %v3553 = vrot.slane %v3499, 5
        %v3554 = vrot.slane %v3553, 4
        %v3555 = vrot.slane %v2183, 5
        %v3556 = vsel %vm1215, %v3554, %v3555
        %v3557 = vrot.slane %v3500, 5
        %v3558 = vrot.slane %v3557, 4
        %v3559 = vrot.slane %v2184, 5
        %v3560 = vsel %vm1215, %v3558, %v3559
        %v3561 = vrot.slane %v3501, 5
        %v3562 = vrot.slane %v3561, 4
        %v3563 = vrot.slane %v2187, 5
        %v3564 = vsel %vm1215, %v3562, %v3563
        %v3565 = vrot.slane %v3502, 5
        %v3566 = vrot.slane %v3565, 4
        %v3567 = vrot.slane %v2188, 5
        %v3568 = vsel %vm1215, %v3566, %v3567
        %v3569 = vrot.slane %v3503, 5
        %v3570 = vrot.slane %v3569, 4
        %v3571 = vrot.slane %v2191, 5
        %v3572 = vsel %vm1215, %v3570, %v3571
        %v3573 = vrot.slane %v3504, 5
        %v3574 = vrot.slane %v3573, 4
        %v3575 = vrot.slane %v2192, 5
        %v3576 = vsel %vm1215, %v3574, %v3575
        %v3577 = vrot.slane %v3505, 5
        %v3578 = vrot.slane %v3577, 4
        %v3579 = vrot.slane %v2195, 5
        %v3580 = vsel %vm1215, %v3578, %v3579
        %v3581 = vrot.slane %v3506, 5
        %v3582 = vrot.slane %v3581, 4
        %v3583 = vrot.slane %v2196, 5
        %v3584 = vsel %vm1215, %v3582, %v3583
        %v3585 = vrot.slane %v3507, 5
        %v3586 = vrot.slane %v3585, 4
        %v3587 = vrot.slane %v2199, 5
        %v3588 = vsel %vm1215, %v3586, %v3587
        %v3589 = vrot.slane %v3508, 5
        %v3590 = vrot.slane %v3589, 4
        %v3591 = vrot.slane %v2200, 5
        %v3592 = vsel %vm1215, %v3590, %v3591
        %v3593 = vrot.slane %v3509, 5
        %v3594 = vrot.slane %v3593, 4
        %v3595 = vrot.slane %v2203, 5
        %v3596 = vsel %vm1215, %v3594, %v3595
        %v3597 = vrot.slane %v3510, 5
        %v3598 = vrot.slane %v3597, 4
        %v3599 = vrot.slane %v2204, 5
        %v3600 = vsel %vm1215, %v3598, %v3599
        %v3601 = vrot.slane %v3511, 5
        %v3602 = vrot.slane %v3601, 4
        %v3603 = vrot.slane %v2207, 5
        %v3604 = vsel %vm1215, %v3602, %v3603
        %v3605 = vrot.slane %v3512, 5
        %v3606 = vrot.slane %v3605, 4
        %v3607 = vrot.slane %v2208, 5
        %v3608 = vsel %vm1215, %v3606, %v3607
        %s3609 = scalar_lea.vmem [#allocation2], 1120
        %v3610 = vld [vmem:[%s3609] sm:$0xf]
        %v3611 = vld [vmem:[%s3609 + $0x4] sm:$0xf]
        %v3612 = vld [vmem:[%s3609 + $0x8] sm:$0xf]
        %v3613 = vld [vmem:[%s3609 + $0xc] sm:$0xf]
        %v3614 = vld [vmem:[%s3609 + $0x10] sm:$0xf]
        %v3615 = vld [vmem:[%s3609 + $0x14] sm:$0xf]
        %v3616 = vld [vmem:[%s3609 + $0x18] sm:$0xf]
        %v3617 = vld [vmem:[%s3609 + $0x1c] sm:$0xf]
        %v3618 = vld [vmem:[%s3609 + $0x20] sm:$0xf]
        %v3619 = vld [vmem:[%s3609 + $0x24] sm:$0xf]
        %v3620 = vld [vmem:[%s3609 + $0x28] sm:$0xf]
        %v3621 = vld [vmem:[%s3609 + $0x2c] sm:$0xf]
        %v3622 = vld [vmem:[%s3609 + $0x30] sm:$0xf]
        %v3623 = vld [vmem:[%s3609 + $0x34] sm:$0xf]
        %v3624 = vld [vmem:[%s3609 + $0x38] sm:$0xf]
        %v3625 = vld [vmem:[%s3609 + $0x3c] sm:$0xf]
        %v3626 = vld [vmem:[%s3609 + $0x40] sm:$0xf]
        %v3627 = vld [vmem:[%s3609 + $0x44] sm:$0xf]
        %v3628 = vld [vmem:[%s3609 + $0x48] sm:$0xf]
        %v3629 = vld [vmem:[%s3609 + $0x4c] sm:$0xf]
        %v3630 = vld [vmem:[%s3609 + $0x50] sm:$0xf]
        %v3631 = vld [vmem:[%s3609 + $0x54] sm:$0xf]
        %v3632 = vld [vmem:[%s3609 + $0x58] sm:$0xf]
        %v3633 = vld [vmem:[%s3609 + $0x5c] sm:$0xf]
        %v3634 = vld [vmem:[%s3609 + $0x60] sm:$0xf]
        %v3635 = vld [vmem:[%s3609 + $0x64] sm:$0xf]
        %v3636 = vld [vmem:[%s3609 + $0x68] sm:$0xf]
        %v3637 = vld [vmem:[%s3609 + $0x6c] sm:$0xf]
        %v3638 = vld [vmem:[%s3609 + $0x70] sm:$0xf]
        %v3639 = vld [vmem:[%s3609 + $0x74] sm:$0xf]
        %v3640 = vld [vmem:[%s3609 + $0x78] sm:$0xf]
        %v3641 = vld [vmem:[%s3609 + $0x7c] sm:$0xf]
        %v3642 = vld [vmem:[%s3609 + $0x80] sm:$0xf]
        %v3643 = vld [vmem:[%s3609 + $0x84] sm:$0xf]
        %v3644 = vld [vmem:[%s3609 + $0x88] sm:$0xf]
        %v3645 = vld [vmem:[%s3609 + $0x8c] sm:$0xf]
        %v3646 = vld [vmem:[%s3609 + $0x90] sm:$0xf]
        %v3647 = vld [vmem:[%s3609 + $0x94] sm:$0xf]
        %v3648 = vld [vmem:[%s3609 + $0x98] sm:$0xf]
        %v3649 = vld [vmem:[%s3609 + $0x9c] sm:$0xf]
        %v3650 = vunpack.c.l.b16 %v3548
        %v3651 = vunpack.c.h.b16 %v3548
        %v3652 = vunpack.c.l.b16 %v3552
        %v3653 = vunpack.c.l.b16 %v3556
        %v3654 = vunpack.c.h.b16 %v3556
        %v3655 = vunpack.c.l.b16 %v3560
        %v3656 = vunpack.c.l.b16 %v3564
        %v3657 = vunpack.c.h.b16 %v3564
        %v3658 = vunpack.c.l.b16 %v3568
        %v3659 = vunpack.c.l.b16 %v3572
        %v3660 = vunpack.c.h.b16 %v3572
        %v3661 = vunpack.c.l.b16 %v3576
        %v3662 = vunpack.c.l.b16 %v3580
        %v3663 = vunpack.c.h.b16 %v3580
        %v3664 = vunpack.c.l.b16 %v3584
        %v3665 = vunpack.c.l.b16 %v3588
        %v3666 = vunpack.c.h.b16 %v3588
        %v3667 = vunpack.c.l.b16 %v3592
        %v3668 = vunpack.c.l.b16 %v3596
        %v3669 = vunpack.c.h.b16 %v3596
        %v3670 = vunpack.c.l.b16 %v3600
        %v3671 = vunpack.c.l.b16 %v3604
        %v3672 = vunpack.c.h.b16 %v3604
        %v3673 = vunpack.c.l.b16 %v3608
        %v3674 = vpack.c.b16 %v3653, %v3650
        %v3675 = vpack.c.b16 %v3654, %v3651
        %v3676 = vpack.c.b16 %v3655, %v3652
        %v3677 = vpack.c.b16 %v3659, %v3656
        %v3678 = vpack.c.b16 %v3660, %v3657
        %v3679 = vpack.c.b16 %v3661, %v3658
        %v3680 = vpack.c.b16 %v3665, %v3662
        %v3681 = vpack.c.b16 %v3666, %v3663
        %v3682 = vpack.c.b16 %v3667, %v3664
        %v3683 = vpack.c.b16 %v3671, %v3668
        %v3684 = vpack.c.b16 %v3672, %v3669
        %v3685 = vpack.c.b16 %v3673, %v3670
        %v3734 = vunpack.c.l.b16 %v3610
        %v3735 = vunpack.c.l.b16 %v3611
        %v3736 = vunpack.c.l.b16 %v3612
        %v3737 = vunpack.c.l.b16 %v3613
        %v3738 = vunpack.c.l.b16 %v3614
        %v3739 = vunpack.c.l.b16 %v3615
        %v3740 = vunpack.c.l.b16 %v3616
        %v3741 = vunpack.c.l.b16 %v3617
        %v3742 = vunpack.c.l.b16 %v3618
        %v3743 = vunpack.c.l.b16 %v3619
        %v3744 = vunpack.c.l.b16 %v3620
        %v3745 = vunpack.c.l.b16 %v3621
        %v3746 = vunpack.c.l.b16 %v3622
        %v3747 = vunpack.c.l.b16 %v3623
        %v3748 = vunpack.c.l.b16 %v3624
        %v3749 = vunpack.c.l.b16 %v3625
        %v3750 = vunpack.c.l.b16 %v3626
        %v3751 = vunpack.c.l.b16 %v3627
        %v3752 = vunpack.c.l.b16 %v3628
        %v3753 = vunpack.c.l.b16 %v3629
        %v3754 = vunpack.c.l.b16 %v3630
        %v3755 = vunpack.c.l.b16 %v3631
        %v3756 = vunpack.c.l.b16 %v3632
        %v3757 = vunpack.c.l.b16 %v3633
        %v3758 = vunpack.c.l.b16 %v3634
        %v3759 = vunpack.c.l.b16 %v3635
        %v3760 = vunpack.c.l.b16 %v3636
        %v3761 = vunpack.c.l.b16 %v3637
        %v3762 = vunpack.c.l.b16 %v3638
        %v3763 = vunpack.c.l.b16 %v3639
        %v3764 = vunpack.c.l.b16 %v3640
        %v3765 = vunpack.c.l.b16 %v3641
        %v3766 = vunpack.c.l.b16 %v3642
        %v3767 = vunpack.c.l.b16 %v3643
        %v3768 = vunpack.c.l.b16 %v3644
        %v3769 = vunpack.c.l.b16 %v3645
        %v3770 = vunpack.c.l.b16 %v3646
        %v3771 = vunpack.c.l.b16 %v3647
        %v3772 = vunpack.c.l.b16 %v3648
        %v3773 = vunpack.c.l.b16 %v3649
        %v3774 = vpack.c.b16 %v3735, %v3734
        %v3775 = vpack.c.b16 %v3737, %v3736
        %v3776 = vpack.c.b16 %v3739, %v3738
        %v3777 = vpack.c.b16 %v3741, %v3740
        %v3778 = vpack.c.b16 %v3743, %v3742
        %v3779 = vpack.c.b16 %v3745, %v3744
        %v3780 = vpack.c.b16 %v3747, %v3746
        %v3781 = vpack.c.b16 %v3749, %v3748
        %v3782 = vpack.c.b16 %v3751, %v3750
        %v3783 = vpack.c.b16 %v3753, %v3752
        %v3784 = vpack.c.b16 %v3755, %v3754
        %v3785 = vpack.c.b16 %v3757, %v3756
        %v3786 = vpack.c.b16 %v3759, %v3758
        %v3787 = vpack.c.b16 %v3761, %v3760
        %v3788 = vpack.c.b16 %v3763, %v3762
        %v3789 = vpack.c.b16 %v3765, %v3764
        %v3790 = vpack.c.b16 %v3767, %v3766
        %v3791 = vpack.c.b16 %v3769, %v3768
        %v3792 = vpack.c.b16 %v3771, %v3770
        %v3793 = vpack.c.b16 %v3773, %v3772
        %v3815 = vsel %vm745, %v3676, 0
        %v3818 = vsel %vm745, %v3679, 0
        %v3821 = vsel %vm745, %v3682, 0
        %v3824 = vsel %vm745, %v3685, 0
        %3826 = vmatpush.bf16.msra.mxu0 %v3781
        %3827 = vmatpush.bf16.msra.mxu0 %v3780
        %3828 = vmatpush.bf16.msra.mxu0 %v3779
        %3829 = vmatpush.bf16.msra.mxu0 %v3778
        %3830 = vmatpush.bf16.msra.mxu0 %v3777
        %3831 = vmatpush.bf16.msra.mxu0 %v3776
        %3832 = vmatpush.bf16.msra.mxu0 %v3775
        %3833 = vmatpush.bf16.msra.mxu0 %v3774
        %3834 = vmatmul.bf16.gmra.mxu0 %v3674
        %v3835 = vpop.f32.mrf.mxu0
        %v3836 = vadd.f32 0.0, %v3835
        %v3837 = vpop.f32.mrf.mxu0
        %v3838 = vadd.f32 0.0, %v3837
        %3839 = vmatmul.bf16.gmra.mxu0 %v3677
        %v3840 = vpop.f32.mrf.mxu0
        %v3841 = vadd.f32 0.0, %v3840
        %v3842 = vpop.f32.mrf.mxu0
        %v3843 = vadd.f32 0.0, %v3842
        %3844 = vmatmul.bf16.gmra.mxu0 %v3680
        %v3845 = vpop.f32.mrf.mxu0
        %v3846 = vadd.f32 0.0, %v3845
        %v3847 = vpop.f32.mrf.mxu0
        %v3848 = vadd.f32 0.0, %v3847
        %3849 = vmatmul.bf16.gmra.mxu0 %v3683
        %v3850 = vpop.f32.mrf.mxu0
        %v3851 = vadd.f32 0.0, %v3850
        %v3852 = vpop.f32.mrf.mxu0
        %v3853 = vadd.f32 0.0, %v3852
        %3854 = vdwg.mxu0
        %3855 = vmatpush.bf16.msra.mxu0 %v3789
        %3856 = vmatpush.bf16.msra.mxu0 %v3788
        %3857 = vmatpush.bf16.msra.mxu0 %v3787
        %3858 = vmatpush.bf16.msra.mxu0 %v3786
        %3859 = vmatpush.bf16.msra.mxu0 %v3785
        %3860 = vmatpush.bf16.msra.mxu0 %v3784
        %3861 = vmatpush.bf16.msra.mxu0 %v3783
        %3862 = vmatpush.bf16.msra.mxu0 %v3782
        %3863 = vmatmul.bf16.gmra.mxu0 %v3675
        %v3864 = vpop.f32.mrf.mxu0
        %v3865 = vadd.f32 %v3836, %v3864
        %v3866 = vpop.f32.mrf.mxu0
        %v3867 = vadd.f32 %v3838, %v3866
        %3868 = vmatmul.bf16.gmra.mxu0 %v3678
        %v3869 = vpop.f32.mrf.mxu0
        %v3870 = vadd.f32 %v3841, %v3869
        %v3871 = vpop.f32.mrf.mxu0
        %v3872 = vadd.f32 %v3843, %v3871
        %3873 = vmatmul.bf16.gmra.mxu0 %v3681
        %v3874 = vpop.f32.mrf.mxu0
        %v3875 = vadd.f32 %v3846, %v3874
        %v3876 = vpop.f32.mrf.mxu0
        %v3877 = vadd.f32 %v3848, %v3876
        %3878 = vmatmul.bf16.gmra.mxu0 %v3684
        %v3879 = vpop.f32.mrf.mxu0
        %v3880 = vadd.f32 %v3851, %v3879
        %v3881 = vpop.f32.mrf.mxu0
        %v3882 = vadd.f32 %v3853, %v3881
        %3883 = vdwg.mxu0
        %3884 = vmatpush.bf16.msra.mxu0 0
        %3885 = vmatpush.bf16.msra.mxu0 0
        %3886 = vmatpush.bf16.msra.mxu0 0
        %3887 = vmatpush.bf16.msra.mxu0 0
        %3888 = vmatpush.bf16.msra.mxu0 %v3793
        %3889 = vmatpush.bf16.msra.mxu0 %v3792
        %3890 = vmatpush.bf16.msra.mxu0 %v3791
        %3891 = vmatpush.bf16.msra.mxu0 %v3790
        %3892 = vmatmul.bf16.gmra.mxu0 %v3815
        %v3893 = vpop.f32.mrf.mxu0
        %v3894 = vadd.f32 %v3865, %v3893
        %v3895 = vpop.f32.mrf.mxu0
        %v3896 = vadd.f32 %v3867, %v3895
        %3897 = vmatmul.bf16.gmra.mxu0 %v3818
        %v3898 = vpop.f32.mrf.mxu0
        %v3899 = vadd.f32 %v3870, %v3898
        %v3900 = vpop.f32.mrf.mxu0
        %v3901 = vadd.f32 %v3872, %v3900
        %3902 = vmatmul.bf16.gmra.mxu0 %v3821
        %v3903 = vpop.f32.mrf.mxu0
        %v3904 = vadd.f32 %v3875, %v3903
        %v3905 = vpop.f32.mrf.mxu0
        %v3906 = vadd.f32 %v3877, %v3905
        %3907 = vmatmul.bf16.gmra.mxu0 %v3824
        %v3908 = vpop.f32.mrf.mxu0
        %v3909 = vadd.f32 %v3880, %v3908
        %v3910 = vpop.f32.mrf.mxu0
        %v3911 = vadd.f32 %v3882, %v3910
        %3912 = vdwg.mxu0
        %v3913 = vadd.f32 %v2993, %v3894
        %v3914 = vadd.f32 %v2994, %v3896
        %v3915 = vadd.f32 %v2995, %v3899
        %v3916 = vadd.f32 %v2996, %v3901
        %v3917 = vadd.f32 %v2997, %v3904
        %v3918 = vadd.f32 %v2998, %v3906
        %v3919 = vadd.f32 %v2999, %v3909
        %v3920 = vadd.f32 %v3000, %v3911
        %s3921 = scalar_lea.vmem [#allocation2], 2080
        %v3922 = vld [vmem:[%s3921] sm:$0xf]
        %v3923 = vld [vmem:[%s3921 + $0x4] sm:$0xf]
        %v3924 = vld [vmem:[%s3921 + $0x8] sm:$0xf]
        %v3925 = vld [vmem:[%s3921 + $0xc] sm:$0xf]
        %v3926 = vld [vmem:[%s3921 + $0x10] sm:$0xf]
        %v3927 = vld [vmem:[%s3921 + $0x14] sm:$0xf]
        %v3928 = vld [vmem:[%s3921 + $0x18] sm:$0xf]
        %v3929 = vld [vmem:[%s3921 + $0x1c] sm:$0xf]
        %v3930 = vld [vmem:[%s3921 + $0x20] sm:$0xf]
        %v3931 = vld [vmem:[%s3921 + $0x24] sm:$0xf]
        %v3932 = vld [vmem:[%s3921 + $0x28] sm:$0xf]
        %v3933 = vld [vmem:[%s3921 + $0x2c] sm:$0xf]
        %v3934 = vld [vmem:[%s3921 + $0x30] sm:$0xf]
        %v3935 = vld [vmem:[%s3921 + $0x34] sm:$0xf]
        %v3936 = vld [vmem:[%s3921 + $0x38] sm:$0xf]
        %v3937 = vld [vmem:[%s3921 + $0x3c] sm:$0xf]
        %v3938 = vld [vmem:[%s3921 + $0x40] sm:$0xf]
        %v3939 = vld [vmem:[%s3921 + $0x44] sm:$0xf]
        %v3940 = vld [vmem:[%s3921 + $0x48] sm:$0xf]
        %v3941 = vld [vmem:[%s3921 + $0x4c] sm:$0xf]
        %v3942 = vld [vmem:[%s3921 + $0x50] sm:$0xf]
        %v3943 = vld [vmem:[%s3921 + $0x54] sm:$0xf]
        %v3944 = vld [vmem:[%s3921 + $0x58] sm:$0xf]
        %v3945 = vld [vmem:[%s3921 + $0x5c] sm:$0xf]
        %v3946 = vld [vmem:[%s3921 + $0x60] sm:$0xf]
        %v3947 = vld [vmem:[%s3921 + $0x64] sm:$0xf]
        %v3948 = vld [vmem:[%s3921 + $0x68] sm:$0xf]
        %v3949 = vld [vmem:[%s3921 + $0x6c] sm:$0xf]
        %v3950 = vld [vmem:[%s3921 + $0x70] sm:$0xf]
        %v3951 = vld [vmem:[%s3921 + $0x74] sm:$0xf]
        %v3952 = vld [vmem:[%s3921 + $0x78] sm:$0xf]
        %v3953 = vld [vmem:[%s3921 + $0x7c] sm:$0xf]
        %v3954 = vld [vmem:[%s3921 + $0x80] sm:$0xf]
        %v3955 = vld [vmem:[%s3921 + $0x84] sm:$0xf]
        %v3956 = vld [vmem:[%s3921 + $0x88] sm:$0xf]
        %v3957 = vld [vmem:[%s3921 + $0x8c] sm:$0xf]
        %v3958 = vld [vmem:[%s3921 + $0x90] sm:$0xf]
        %v3959 = vld [vmem:[%s3921 + $0x94] sm:$0xf]
        %v3960 = vld [vmem:[%s3921 + $0x98] sm:$0xf]
        %v3961 = vld [vmem:[%s3921 + $0x9c] sm:$0xf]
        %v4002 = vunpack.c.l.b16 %v3922
        %v4003 = vunpack.c.l.b16 %v3923
        %v4004 = vunpack.c.l.b16 %v3924
        %v4005 = vunpack.c.l.b16 %v3925
        %v4006 = vunpack.c.l.b16 %v3926
        %v4007 = vunpack.c.l.b16 %v3927
        %v4008 = vunpack.c.l.b16 %v3928
        %v4009 = vunpack.c.l.b16 %v3929
        %v4010 = vunpack.c.l.b16 %v3930
        %v4011 = vunpack.c.l.b16 %v3931
        %v4012 = vunpack.c.l.b16 %v3932
        %v4013 = vunpack.c.l.b16 %v3933
        %v4014 = vunpack.c.l.b16 %v3934
        %v4015 = vunpack.c.l.b16 %v3935
        %v4016 = vunpack.c.l.b16 %v3936
        %v4017 = vunpack.c.l.b16 %v3937
        %v4018 = vunpack.c.l.b16 %v3938
        %v4019 = vunpack.c.l.b16 %v3939
        %v4020 = vunpack.c.l.b16 %v3940
        %v4021 = vunpack.c.l.b16 %v3941
        %v4022 = vunpack.c.l.b16 %v3942
        %v4023 = vunpack.c.l.b16 %v3943
        %v4024 = vunpack.c.l.b16 %v3944
        %v4025 = vunpack.c.l.b16 %v3945
        %v4026 = vunpack.c.l.b16 %v3946
        %v4027 = vunpack.c.l.b16 %v3947
        %v4028 = vunpack.c.l.b16 %v3948
        %v4029 = vunpack.c.l.b16 %v3949
        %v4030 = vunpack.c.l.b16 %v3950
        %v4031 = vunpack.c.l.b16 %v3951
        %v4032 = vunpack.c.l.b16 %v3952
        %v4033 = vunpack.c.l.b16 %v3953
        %v4034 = vunpack.c.l.b16 %v3954
        %v4035 = vunpack.c.l.b16 %v3955
        %v4036 = vunpack.c.l.b16 %v3956
        %v4037 = vunpack.c.l.b16 %v3957
        %v4038 = vunpack.c.l.b16 %v3958
        %v4039 = vunpack.c.l.b16 %v3959
        %v4040 = vunpack.c.l.b16 %v3960
        %v4041 = vunpack.c.l.b16 %v3961
        %v4042 = vpack.c.b16 %v4003, %v4002
        %v4043 = vpack.c.b16 %v4005, %v4004
        %v4044 = vpack.c.b16 %v4007, %v4006
        %v4045 = vpack.c.b16 %v4009, %v4008
        %v4046 = vpack.c.b16 %v4011, %v4010
        %v4047 = vpack.c.b16 %v4013, %v4012
        %v4048 = vpack.c.b16 %v4015, %v4014
        %v4049 = vpack.c.b16 %v4017, %v4016
        %v4050 = vpack.c.b16 %v4019, %v4018
        %v4051 = vpack.c.b16 %v4021, %v4020
        %v4052 = vpack.c.b16 %v4023, %v4022
        %v4053 = vpack.c.b16 %v4025, %v4024
        %v4054 = vpack.c.b16 %v4027, %v4026
        %v4055 = vpack.c.b16 %v4029, %v4028
        %v4056 = vpack.c.b16 %v4031, %v4030
        %v4057 = vpack.c.b16 %v4033, %v4032
        %v4058 = vpack.c.b16 %v4035, %v4034
        %v4059 = vpack.c.b16 %v4037, %v4036
        %v4060 = vpack.c.b16 %v4039, %v4038
        %v4061 = vpack.c.b16 %v4041, %v4040
        %4082 = vmatpush.bf16.msra.mxu0 %v4049
        %4083 = vmatpush.bf16.msra.mxu0 %v4048
        %4084 = vmatpush.bf16.msra.mxu0 %v4047
        %4085 = vmatpush.bf16.msra.mxu0 %v4046
        %4086 = vmatpush.bf16.msra.mxu0 %v4045
        %4087 = vmatpush.bf16.msra.mxu0 %v4044
        %4088 = vmatpush.bf16.msra.mxu0 %v4043
        %4089 = vmatpush.bf16.msra.mxu0 %v4042
        %4090 = vmatmul.bf16.gmra.mxu0 %v3674
        %v4091 = vpop.f32.mrf.mxu0
        %v4092 = vadd.f32 0.0, %v4091
        %v4093 = vpop.f32.mrf.mxu0
        %v4094 = vadd.f32 0.0, %v4093
        %4095 = vmatmul.bf16.gmra.mxu0 %v3677
        %v4096 = vpop.f32.mrf.mxu0
        %v4097 = vadd.f32 0.0, %v4096
        %v4098 = vpop.f32.mrf.mxu0
        %v4099 = vadd.f32 0.0, %v4098
        %4100 = vmatmul.bf16.gmra.mxu0 %v3680
        %v4101 = vpop.f32.mrf.mxu0
        %v4102 = vadd.f32 0.0, %v4101
        %v4103 = vpop.f32.mrf.mxu0
        %v4104 = vadd.f32 0.0, %v4103
        %4105 = vmatmul.bf16.gmra.mxu0 %v3683
        %v4106 = vpop.f32.mrf.mxu0
        %v4107 = vadd.f32 0.0, %v4106
        %v4108 = vpop.f32.mrf.mxu0
        %v4109 = vadd.f32 0.0, %v4108
        %4110 = vdwg.mxu0
        %4111 = vmatpush.bf16.msra.mxu0 %v4057
        %4112 = vmatpush.bf16.msra.mxu0 %v4056
        %4113 = vmatpush.bf16.msra.mxu0 %v4055
        %4114 = vmatpush.bf16.msra.mxu0 %v4054
        %4115 = vmatpush.bf16.msra.mxu0 %v4053
        %4116 = vmatpush.bf16.msra.mxu0 %v4052
        %4117 = vmatpush.bf16.msra.mxu0 %v4051
        %4118 = vmatpush.bf16.msra.mxu0 %v4050
        %4119 = vmatmul.bf16.gmra.mxu0 %v3675
        %v4120 = vpop.f32.mrf.mxu0
        %v4121 = vadd.f32 %v4092, %v4120
        %v4122 = vpop.f32.mrf.mxu0
        %v4123 = vadd.f32 %v4094, %v4122
        %4124 = vmatmul.bf16.gmra.mxu0 %v3678
        %v4125 = vpop.f32.mrf.mxu0
        %v4126 = vadd.f32 %v4097, %v4125
        %v4127 = vpop.f32.mrf.mxu0
        %v4128 = vadd.f32 %v4099, %v4127
        %4129 = vmatmul.bf16.gmra.mxu0 %v3681
        %v4130 = vpop.f32.mrf.mxu0
        %v4131 = vadd.f32 %v4102, %v4130
        %v4132 = vpop.f32.mrf.mxu0
        %v4133 = vadd.f32 %v4104, %v4132
        %4134 = vmatmul.bf16.gmra.mxu0 %v3684
        %v4135 = vpop.f32.mrf.mxu0
        %v4136 = vadd.f32 %v4107, %v4135
        %v4137 = vpop.f32.mrf.mxu0
        %v4138 = vadd.f32 %v4109, %v4137
        %4139 = vdwg.mxu0
        %4140 = vmatpush.bf16.msra.mxu0 0
        %4141 = vmatpush.bf16.msra.mxu0 0
        %4142 = vmatpush.bf16.msra.mxu0 0
        %4143 = vmatpush.bf16.msra.mxu0 0
        %4144 = vmatpush.bf16.msra.mxu0 %v4061
        %4145 = vmatpush.bf16.msra.mxu0 %v4060
        %4146 = vmatpush.bf16.msra.mxu0 %v4059
        %4147 = vmatpush.bf16.msra.mxu0 %v4058
        %4148 = vmatmul.bf16.gmra.mxu0 %v3815
        %v4149 = vpop.f32.mrf.mxu0
        %v4150 = vadd.f32 %v4121, %v4149
        %v4151 = vpop.f32.mrf.mxu0
        %v4152 = vadd.f32 %v4123, %v4151
        %4153 = vmatmul.bf16.gmra.mxu0 %v3818
        %v4154 = vpop.f32.mrf.mxu0
        %v4155 = vadd.f32 %v4126, %v4154
        %v4156 = vpop.f32.mrf.mxu0
        %v4157 = vadd.f32 %v4128, %v4156
        %4158 = vmatmul.bf16.gmra.mxu0 %v3821
        %v4159 = vpop.f32.mrf.mxu0
        %v4160 = vadd.f32 %v4131, %v4159
        %v4161 = vpop.f32.mrf.mxu0
        %v4162 = vadd.f32 %v4133, %v4161
        %4163 = vmatmul.bf16.gmra.mxu0 %v3824
        %v4164 = vpop.f32.mrf.mxu0
        %v4165 = vadd.f32 %v4136, %v4164
        %v4166 = vpop.f32.mrf.mxu0
        %v4167 = vadd.f32 %v4138, %v4166
        %4168 = vdwg.mxu0
        %v4209 = vunpack.c.l.b16 %v3457
        %v4210 = vunpack.c.l.b16 %v3458
        %v4211 = vunpack.c.l.b16 %v3459
        %v4212 = vunpack.c.l.b16 %v3460
        %v4213 = vunpack.c.l.b16 %v3461
        %v4214 = vunpack.c.l.b16 %v3462
        %v4215 = vunpack.c.l.b16 %v3463
        %v4216 = vunpack.c.l.b16 %v3464
        %v4217 = vunpack.c.l.b16 %v3465
        %v4218 = vunpack.c.l.b16 %v3466
        %v4219 = vunpack.c.l.b16 %v3467
        %v4220 = vunpack.c.l.b16 %v3468
        %v4221 = vunpack.c.l.b16 %v3469
        %v4222 = vunpack.c.l.b16 %v3470
        %v4223 = vunpack.c.l.b16 %v3471
        %v4224 = vunpack.c.l.b16 %v3472
        %v4225 = vunpack.c.l.b16 %v3473
        %v4226 = vunpack.c.l.b16 %v3474
        %v4227 = vunpack.c.l.b16 %v3475
        %v4228 = vunpack.c.l.b16 %v3476
        %v4229 = vunpack.c.l.b16 %v3477
        %v4230 = vunpack.c.l.b16 %v3478
        %v4231 = vunpack.c.l.b16 %v3479
        %v4232 = vunpack.c.l.b16 %v3480
        %v4233 = vunpack.c.l.b16 %v3481
        %v4234 = vunpack.c.l.b16 %v3482
        %v4235 = vunpack.c.l.b16 %v3483
        %v4236 = vunpack.c.l.b16 %v3484
        %v4237 = vunpack.c.l.b16 %v3485
        %v4238 = vunpack.c.l.b16 %v3486
        %v4239 = vunpack.c.l.b16 %v3487
        %v4240 = vunpack.c.l.b16 %v3488
        %v4241 = vunpack.c.l.b16 %v3489
        %v4242 = vunpack.c.l.b16 %v3490
        %v4243 = vunpack.c.l.b16 %v3491
        %v4244 = vunpack.c.l.b16 %v3492
        %v4245 = vunpack.c.l.b16 %v3493
        %v4246 = vunpack.c.l.b16 %v3494
        %v4247 = vunpack.c.l.b16 %v3495
        %v4248 = vunpack.c.l.b16 %v3496
        %v4249 = vpack.c.b16 %v4210, %v4209
        %v4250 = vpack.c.b16 %v4212, %v4211
        %v4251 = vpack.c.b16 %v4214, %v4213
        %v4252 = vpack.c.b16 %v4216, %v4215
        %v4253 = vpack.c.b16 %v4218, %v4217
        %v4254 = vpack.c.b16 %v4220, %v4219
        %v4255 = vpack.c.b16 %v4222, %v4221
        %v4256 = vpack.c.b16 %v4224, %v4223
        %v4257 = vpack.c.b16 %v4226, %v4225
        %v4258 = vpack.c.b16 %v4228, %v4227
        %v4259 = vpack.c.b16 %v4230, %v4229
        %v4260 = vpack.c.b16 %v4232, %v4231
        %v4261 = vpack.c.b16 %v4234, %v4233
        %v4262 = vpack.c.b16 %v4236, %v4235
        %v4263 = vpack.c.b16 %v4238, %v4237
        %v4264 = vpack.c.b16 %v4240, %v4239
        %v4265 = vpack.c.b16 %v4242, %v4241
        %v4266 = vpack.c.b16 %v4244, %v4243
        %v4267 = vpack.c.b16 %v4246, %v4245
        %v4268 = vpack.c.b16 %v4248, %v4247
        %4289 = vmatpush.bf16.msra.mxu0 %v4256
        %4290 = vmatpush.bf16.msra.mxu0 %v4255
        %4291 = vmatpush.bf16.msra.mxu0 %v4254
        %4292 = vmatpush.bf16.msra.mxu0 %v4253
        %4293 = vmatpush.bf16.msra.mxu0 %v4252
        %4294 = vmatpush.bf16.msra.mxu0 %v4251
        %4295 = vmatpush.bf16.msra.mxu0 %v4250
        %4296 = vmatpush.bf16.msra.mxu0 %v4249
        %4297 = vmatmul.bf16.gmra.mxu0 %v2498
        %v4298 = vpop.f32.mrf.mxu0
        %v4299 = vadd.f32 %v4150, %v4298
        %v4300 = vpop.f32.mrf.mxu0
        %v4301 = vadd.f32 %v4152, %v4300
        %4302 = vmatmul.bf16.gmra.mxu0 %v2501
        %v4303 = vpop.f32.mrf.mxu0
        %v4304 = vadd.f32 %v4155, %v4303
        %v4305 = vpop.f32.mrf.mxu0
        %v4306 = vadd.f32 %v4157, %v4305
        %4307 = vmatmul.bf16.gmra.mxu0 %v2504
        %v4308 = vpop.f32.mrf.mxu0
        %v4309 = vadd.f32 %v4160, %v4308
        %v4310 = vpop.f32.mrf.mxu0
        %v4311 = vadd.f32 %v4162, %v4310
        %4312 = vmatmul.bf16.gmra.mxu0 %v2507
        %v4313 = vpop.f32.mrf.mxu0
        %v4314 = vadd.f32 %v4165, %v4313
        %v4315 = vpop.f32.mrf.mxu0
        %v4316 = vadd.f32 %v4167, %v4315
        %4317 = vdwg.mxu0
        %4318 = vmatpush.bf16.msra.mxu0 %v4264
        %4319 = vmatpush.bf16.msra.mxu0 %v4263
        %4320 = vmatpush.bf16.msra.mxu0 %v4262
        %4321 = vmatpush.bf16.msra.mxu0 %v4261
        %4322 = vmatpush.bf16.msra.mxu0 %v4260
        %4323 = vmatpush.bf16.msra.mxu0 %v4259
        %4324 = vmatpush.bf16.msra.mxu0 %v4258
        %4325 = vmatpush.bf16.msra.mxu0 %v4257
        %4326 = vmatmul.bf16.gmra.mxu0 %v2499
        %v4327 = vpop.f32.mrf.mxu0
        %v4328 = vadd.f32 %v4299, %v4327
        %v4329 = vpop.f32.mrf.mxu0
        %v4330 = vadd.f32 %v4301, %v4329
        %4331 = vmatmul.bf16.gmra.mxu0 %v2502
        %v4332 = vpop.f32.mrf.mxu0
        %v4333 = vadd.f32 %v4304, %v4332
        %v4334 = vpop.f32.mrf.mxu0
        %v4335 = vadd.f32 %v4306, %v4334
        %4336 = vmatmul.bf16.gmra.mxu0 %v2505
        %v4337 = vpop.f32.mrf.mxu0
        %v4338 = vadd.f32 %v4309, %v4337
        %v4339 = vpop.f32.mrf.mxu0
        %v4340 = vadd.f32 %v4311, %v4339
        %4341 = vmatmul.bf16.gmra.mxu0 %v2508
        %v4342 = vpop.f32.mrf.mxu0
        %v4343 = vadd.f32 %v4314, %v4342
        %v4344 = vpop.f32.mrf.mxu0
        %v4345 = vadd.f32 %v4316, %v4344
        %4346 = vdwg.mxu0
        %4347 = vmatpush.bf16.msra.mxu0 0
        %4348 = vmatpush.bf16.msra.mxu0 0
        %4349 = vmatpush.bf16.msra.mxu0 0
        %4350 = vmatpush.bf16.msra.mxu0 0
        %4351 = vmatpush.bf16.msra.mxu0 %v4268
        %4352 = vmatpush.bf16.msra.mxu0 %v4267
        %4353 = vmatpush.bf16.msra.mxu0 %v4266
        %4354 = vmatpush.bf16.msra.mxu0 %v4265
        %4355 = vmatmul.bf16.gmra.mxu0 %v2639
        %v4356 = vpop.f32.mrf.mxu0
        %v4357 = vadd.f32 %v4328, %v4356
        %v4358 = vpop.f32.mrf.mxu0
        %v4359 = vadd.f32 %v4330, %v4358
        %4360 = vmatmul.bf16.gmra.mxu0 %v2642
        %v4361 = vpop.f32.mrf.mxu0
        %v4362 = vadd.f32 %v4333, %v4361
        %v4363 = vpop.f32.mrf.mxu0
        %v4364 = vadd.f32 %v4335, %v4363
        %4365 = vmatmul.bf16.gmra.mxu0 %v2645
        %v4366 = vpop.f32.mrf.mxu0
        %v4367 = vadd.f32 %v4338, %v4366
        %v4368 = vpop.f32.mrf.mxu0
        %v4369 = vadd.f32 %v4340, %v4368
        %4370 = vmatmul.bf16.gmra.mxu0 %v2648
        %v4371 = vpop.f32.mrf.mxu0
        %v4372 = vadd.f32 %v4343, %v4371
        %v4373 = vpop.f32.mrf.mxu0
        %v4374 = vadd.f32 %v4345, %v4373
        %4375 = vdwg.mxu0
        %s4376 = scalar_lea.vmem %s229, 48
        %v4377 = vld [vmem:[%s4376] sm:$0xff]
        %v4378 = vld [vmem:[%s4376 + $0x8] sm:$0xf]
        %v4379 = vld [vmem:[%s4376 + $0x18] sm:$0xff]
        %v4380 = vld [vmem:[%s4376 + $0x20] sm:$0xf]
        %v4381 = vld [vmem:[%s4376 + $0x30] sm:$0xff]
        %v4382 = vld [vmem:[%s4376 + $0x38] sm:$0xf]
        %v4383 = vld [vmem:[%s4376 + $0x48] sm:$0xff]
        %v4384 = vld [vmem:[%s4376 + $0x50] sm:$0xf]
        %v4385 = vld [vmem:[%s4376 + $0x60] sm:$0xff]
        %v4386 = vld [vmem:[%s4376 + $0x68] sm:$0xf]
        %v4387 = vld [vmem:[%s4376 + $0x78] sm:$0xff]
        %v4388 = vld [vmem:[%s4376 + $0x80] sm:$0xf]
        %v4389 = vld [vmem:[%s4376 + $0x90] sm:$0xff]
        %v4390 = vld [vmem:[%s4376 + $0x98] sm:$0xf]
        %v4391 = vld [vmem:[%s4376 + $0xa8] sm:$0xff]
        %v4392 = vld [vmem:[%s4376 + $0xb0] sm:$0xf]
        %s4393 = scalar_lea.vmem [#allocation2], 1600
        %v4394 = vld [vmem:[%s4393] sm:$0xf]
        %v4395 = vld [vmem:[%s4393 + $0x4] sm:$0xf]
        %v4396 = vld [vmem:[%s4393 + $0x8] sm:$0xf]
        %v4397 = vld [vmem:[%s4393 + $0xc] sm:$0xf]
        %v4398 = vld [vmem:[%s4393 + $0x10] sm:$0xf]
        %v4399 = vld [vmem:[%s4393 + $0x14] sm:$0xf]
        %v4400 = vld [vmem:[%s4393 + $0x18] sm:$0xf]
        %v4401 = vld [vmem:[%s4393 + $0x1c] sm:$0xf]
        %v4402 = vld [vmem:[%s4393 + $0x20] sm:$0xf]
        %v4403 = vld [vmem:[%s4393 + $0x24] sm:$0xf]
        %v4404 = vld [vmem:[%s4393 + $0x28] sm:$0xf]
        %v4405 = vld [vmem:[%s4393 + $0x2c] sm:$0xf]
        %v4406 = vld [vmem:[%s4393 + $0x30] sm:$0xf]
        %v4407 = vld [vmem:[%s4393 + $0x34] sm:$0xf]
        %v4408 = vld [vmem:[%s4393 + $0x38] sm:$0xf]
        %v4409 = vld [vmem:[%s4393 + $0x3c] sm:$0xf]
        %v4410 = vld [vmem:[%s4393 + $0x40] sm:$0xf]
        %v4411 = vld [vmem:[%s4393 + $0x44] sm:$0xf]
        %v4412 = vld [vmem:[%s4393 + $0x48] sm:$0xf]
        %v4413 = vld [vmem:[%s4393 + $0x4c] sm:$0xf]
        %v4414 = vld [vmem:[%s4393 + $0x50] sm:$0xf]
        %v4415 = vld [vmem:[%s4393 + $0x54] sm:$0xf]
        %v4416 = vld [vmem:[%s4393 + $0x58] sm:$0xf]
        %v4417 = vld [vmem:[%s4393 + $0x5c] sm:$0xf]
        %v4418 = vld [vmem:[%s4393 + $0x60] sm:$0xf]
        %v4419 = vld [vmem:[%s4393 + $0x64] sm:$0xf]
        %v4420 = vld [vmem:[%s4393 + $0x68] sm:$0xf]
        %v4421 = vld [vmem:[%s4393 + $0x6c] sm:$0xf]
        %v4422 = vld [vmem:[%s4393 + $0x70] sm:$0xf]
        %v4423 = vld [vmem:[%s4393 + $0x74] sm:$0xf]
        %v4424 = vld [vmem:[%s4393 + $0x78] sm:$0xf]
        %v4425 = vld [vmem:[%s4393 + $0x7c] sm:$0xf]
        %v4426 = vld [vmem:[%s4393 + $0x80] sm:$0xf]
        %v4427 = vld [vmem:[%s4393 + $0x84] sm:$0xf]
        %v4428 = vld [vmem:[%s4393 + $0x88] sm:$0xf]
        %v4429 = vld [vmem:[%s4393 + $0x8c] sm:$0xf]
        %v4430 = vld [vmem:[%s4393 + $0x90] sm:$0xf]
        %v4431 = vld [vmem:[%s4393 + $0x94] sm:$0xf]
        %v4432 = vld [vmem:[%s4393 + $0x98] sm:$0xf]
        %v4433 = vld [vmem:[%s4393 + $0x9c] sm:$0xf]
        %v4450 = vunpack.c.l.b16 %v4377
        %v4451 = vunpack.c.h.b16 %v4377
        %v4452 = vunpack.c.l.b16 %v4378
        %v4453 = vunpack.c.l.b16 %v4379
        %v4454 = vunpack.c.h.b16 %v4379
        %v4455 = vunpack.c.l.b16 %v4380
        %v4456 = vunpack.c.l.b16 %v4381
        %v4457 = vunpack.c.h.b16 %v4381
        %v4458 = vunpack.c.l.b16 %v4382
        %v4459 = vunpack.c.l.b16 %v4383
        %v4460 = vunpack.c.h.b16 %v4383
        %v4461 = vunpack.c.l.b16 %v4384
        %v4462 = vunpack.c.l.b16 %v4385
        %v4463 = vunpack.c.h.b16 %v4385
        %v4464 = vunpack.c.l.b16 %v4386
        %v4465 = vunpack.c.l.b16 %v4387
        %v4466 = vunpack.c.h.b16 %v4387
        %v4467 = vunpack.c.l.b16 %v4388
        %v4468 = vunpack.c.l.b16 %v4389
        %v4469 = vunpack.c.h.b16 %v4389
        %v4470 = vunpack.c.l.b16 %v4390
        %v4471 = vunpack.c.l.b16 %v4391
        %v4472 = vunpack.c.h.b16 %v4391
        %v4473 = vunpack.c.l.b16 %v4392
        %v4474 = vpack.c.b16 %v4453, %v4450
        %v4475 = vpack.c.b16 %v4454, %v4451
        %v4476 = vpack.c.b16 %v4455, %v4452
        %v4477 = vpack.c.b16 %v4459, %v4456
        %v4478 = vpack.c.b16 %v4460, %v4457
        %v4479 = vpack.c.b16 %v4461, %v4458
        %v4480 = vpack.c.b16 %v4465, %v4462
        %v4481 = vpack.c.b16 %v4466, %v4463
        %v4482 = vpack.c.b16 %v4467, %v4464
        %v4483 = vpack.c.b16 %v4471, %v4468
        %v4484 = vpack.c.b16 %v4472, %v4469
        %v4485 = vpack.c.b16 %v4473, %v4470
        %v4534 = vunpack.c.l.b16 %v4394
        %v4535 = vunpack.c.l.b16 %v4395
        %v4536 = vunpack.c.l.b16 %v4396
        %v4537 = vunpack.c.l.b16 %v4397
        %v4538 = vunpack.c.l.b16 %v4398
        %v4539 = vunpack.c.l.b16 %v4399
        %v4540 = vunpack.c.l.b16 %v4400
        %v4541 = vunpack.c.l.b16 %v4401
        %v4542 = vunpack.c.l.b16 %v4402
        %v4543 = vunpack.c.l.b16 %v4403
        %v4544 = vunpack.c.l.b16 %v4404
        %v4545 = vunpack.c.l.b16 %v4405
        %v4546 = vunpack.c.l.b16 %v4406
        %v4547 = vunpack.c.l.b16 %v4407
        %v4548 = vunpack.c.l.b16 %v4408
        %v4549 = vunpack.c.l.b16 %v4409
        %v4550 = vunpack.c.l.b16 %v4410
        %v4551 = vunpack.c.l.b16 %v4411
        %v4552 = vunpack.c.l.b16 %v4412
        %v4553 = vunpack.c.l.b16 %v4413
        %v4554 = vunpack.c.l.b16 %v4414
        %v4555 = vunpack.c.l.b16 %v4415
        %v4556 = vunpack.c.l.b16 %v4416
        %v4557 = vunpack.c.l.b16 %v4417
        %v4558 = vunpack.c.l.b16 %v4418
        %v4559 = vunpack.c.l.b16 %v4419
        %v4560 = vunpack.c.l.b16 %v4420
        %v4561 = vunpack.c.l.b16 %v4421
        %v4562 = vunpack.c.l.b16 %v4422
        %v4563 = vunpack.c.l.b16 %v4423
        %v4564 = vunpack.c.l.b16 %v4424
        %v4565 = vunpack.c.l.b16 %v4425
        %v4566 = vunpack.c.l.b16 %v4426
        %v4567 = vunpack.c.l.b16 %v4427
        %v4568 = vunpack.c.l.b16 %v4428
        %v4569 = vunpack.c.l.b16 %v4429
        %v4570 = vunpack.c.l.b16 %v4430
        %v4571 = vunpack.c.l.b16 %v4431
        %v4572 = vunpack.c.l.b16 %v4432
        %v4573 = vunpack.c.l.b16 %v4433
        %v4574 = vpack.c.b16 %v4535, %v4534
        %v4575 = vpack.c.b16 %v4537, %v4536
        %v4576 = vpack.c.b16 %v4539, %v4538
        %v4577 = vpack.c.b16 %v4541, %v4540
        %v4578 = vpack.c.b16 %v4543, %v4542
        %v4579 = vpack.c.b16 %v4545, %v4544
        %v4580 = vpack.c.b16 %v4547, %v4546
        %v4581 = vpack.c.b16 %v4549, %v4548
        %v4582 = vpack.c.b16 %v4551, %v4550
        %v4583 = vpack.c.b16 %v4553, %v4552
        %v4584 = vpack.c.b16 %v4555, %v4554
        %v4585 = vpack.c.b16 %v4557, %v4556
        %v4586 = vpack.c.b16 %v4559, %v4558
        %v4587 = vpack.c.b16 %v4561, %v4560
        %v4588 = vpack.c.b16 %v4563, %v4562
        %v4589 = vpack.c.b16 %v4565, %v4564
        %v4590 = vpack.c.b16 %v4567, %v4566
        %v4591 = vpack.c.b16 %v4569, %v4568
        %v4592 = vpack.c.b16 %v4571, %v4570
        %v4593 = vpack.c.b16 %v4573, %v4572
        %v4615 = vsel %vm745, %v4476, 0
        %v4618 = vsel %vm745, %v4479, 0
        %v4621 = vsel %vm745, %v4482, 0
        %v4624 = vsel %vm745, %v4485, 0
        %4626 = vmatpush.bf16.msra.mxu0 %v4581
        %4627 = vmatpush.bf16.msra.mxu0 %v4580
        %4628 = vmatpush.bf16.msra.mxu0 %v4579
        %4629 = vmatpush.bf16.msra.mxu0 %v4578
        %4630 = vmatpush.bf16.msra.mxu0 %v4577
        %4631 = vmatpush.bf16.msra.mxu0 %v4576
        %4632 = vmatpush.bf16.msra.mxu0 %v4575
        %4633 = vmatpush.bf16.msra.mxu0 %v4574
        %4634 = vmatmul.bf16.gmra.mxu0 %v4474
        %v4635 = vpop.f32.mrf.mxu0
        %v4636 = vadd.f32 0.0, %v4635
        %v4637 = vpop.f32.mrf.mxu0
        %v4638 = vadd.f32 0.0, %v4637
        %4639 = vmatmul.bf16.gmra.mxu0 %v4477
        %v4640 = vpop.f32.mrf.mxu0
        %v4641 = vadd.f32 0.0, %v4640
        %v4642 = vpop.f32.mrf.mxu0
        %v4643 = vadd.f32 0.0, %v4642
        %4644 = vmatmul.bf16.gmra.mxu0 %v4480
        %v4645 = vpop.f32.mrf.mxu0
        %v4646 = vadd.f32 0.0, %v4645
        %v4647 = vpop.f32.mrf.mxu0
        %v4648 = vadd.f32 0.0, %v4647
        %4649 = vmatmul.bf16.gmra.mxu0 %v4483
        %v4650 = vpop.f32.mrf.mxu0
        %v4651 = vadd.f32 0.0, %v4650
        %v4652 = vpop.f32.mrf.mxu0
        %v4653 = vadd.f32 0.0, %v4652
        %4654 = vdwg.mxu0
        %4655 = vmatpush.bf16.msra.mxu0 %v4589
        %4656 = vmatpush.bf16.msra.mxu0 %v4588
        %4657 = vmatpush.bf16.msra.mxu0 %v4587
        %4658 = vmatpush.bf16.msra.mxu0 %v4586
        %4659 = vmatpush.bf16.msra.mxu0 %v4585
        %4660 = vmatpush.bf16.msra.mxu0 %v4584
        %4661 = vmatpush.bf16.msra.mxu0 %v4583
        %4662 = vmatpush.bf16.msra.mxu0 %v4582
        %4663 = vmatmul.bf16.gmra.mxu0 %v4475
        %v4664 = vpop.f32.mrf.mxu0
        %v4665 = vadd.f32 %v4636, %v4664
        %v4666 = vpop.f32.mrf.mxu0
        %v4667 = vadd.f32 %v4638, %v4666
        %4668 = vmatmul.bf16.gmra.mxu0 %v4478
        %v4669 = vpop.f32.mrf.mxu0
        %v4670 = vadd.f32 %v4641, %v4669
        %v4671 = vpop.f32.mrf.mxu0
        %v4672 = vadd.f32 %v4643, %v4671
        %4673 = vmatmul.bf16.gmra.mxu0 %v4481
        %v4674 = vpop.f32.mrf.mxu0
        %v4675 = vadd.f32 %v4646, %v4674
        %v4676 = vpop.f32.mrf.mxu0
        %v4677 = vadd.f32 %v4648, %v4676
        %4678 = vmatmul.bf16.gmra.mxu0 %v4484
        %v4679 = vpop.f32.mrf.mxu0
        %v4680 = vadd.f32 %v4651, %v4679
        %v4681 = vpop.f32.mrf.mxu0
        %v4682 = vadd.f32 %v4653, %v4681
        %4683 = vdwg.mxu0
        %4684 = vmatpush.bf16.msra.mxu0 0
        %4685 = vmatpush.bf16.msra.mxu0 0
        %4686 = vmatpush.bf16.msra.mxu0 0
        %4687 = vmatpush.bf16.msra.mxu0 0
        %4688 = vmatpush.bf16.msra.mxu0 %v4593
        %4689 = vmatpush.bf16.msra.mxu0 %v4592
        %4690 = vmatpush.bf16.msra.mxu0 %v4591
        %4691 = vmatpush.bf16.msra.mxu0 %v4590
        %4692 = vmatmul.bf16.gmra.mxu0 %v4615
        %v4693 = vpop.f32.mrf.mxu0
        %v4694 = vadd.f32 %v4665, %v4693
        %v4695 = vpop.f32.mrf.mxu0
        %v4696 = vadd.f32 %v4667, %v4695
        %4697 = vmatmul.bf16.gmra.mxu0 %v4618
        %v4698 = vpop.f32.mrf.mxu0
        %v4699 = vadd.f32 %v4670, %v4698
        %v4700 = vpop.f32.mrf.mxu0
        %v4701 = vadd.f32 %v4672, %v4700
        %4702 = vmatmul.bf16.gmra.mxu0 %v4621
        %v4703 = vpop.f32.mrf.mxu0
        %v4704 = vadd.f32 %v4675, %v4703
        %v4705 = vpop.f32.mrf.mxu0
        %v4706 = vadd.f32 %v4677, %v4705
        %4707 = vmatmul.bf16.gmra.mxu0 %v4624
        %v4708 = vpop.f32.mrf.mxu0
        %v4709 = vadd.f32 %v4680, %v4708
        %v4710 = vpop.f32.mrf.mxu0
        %v4711 = vadd.f32 %v4682, %v4710
        %4712 = vdwg.mxu0
        %v4713 = vadd.f32 %v3437, %v4694
        %v4714 = vadd.f32 %v3439, %v4696
        %v4715 = vadd.f32 %v3442, %v4699
        %v4716 = vadd.f32 %v3444, %v4701
        %v4717 = vadd.f32 %v3447, %v4704
        %v4718 = vadd.f32 %v3449, %v4706
        %v4719 = vadd.f32 %v3452, %v4709
        %v4720 = vadd.f32 %v3454, %v4711
        %v4721 = vld [vmem:[%s4376] sm:$0xff]
        %v4722 = vld [vmem:[%s4376 + $0x8] sm:$0xf]
        %v4723 = vld [vmem:[%s4376 + $0xc] sm:$0x11]
        %v4724 = vld [vmem:[%s4376 + $0x14] sm:$0x1]
        %v4725 = vld [vmem:[%s4376 + $0x18] sm:$0xff]
        %v4726 = vld [vmem:[%s4376 + $0x20] sm:$0xf]
        %v4727 = vld [vmem:[%s4376 + $0x24] sm:$0x11]
        %v4728 = vld [vmem:[%s4376 + $0x2c] sm:$0x1]
        %v4729 = vld [vmem:[%s4376 + $0x30] sm:$0xff]
        %v4730 = vld [vmem:[%s4376 + $0x38] sm:$0xf]
        %v4731 = vld [vmem:[%s4376 + $0x3c] sm:$0x11]
        %v4732 = vld [vmem:[%s4376 + $0x44] sm:$0x1]
        %v4733 = vld [vmem:[%s4376 + $0x48] sm:$0xff]
        %v4734 = vld [vmem:[%s4376 + $0x50] sm:$0xf]
        %v4735 = vld [vmem:[%s4376 + $0x54] sm:$0x11]
        %v4736 = vld [vmem:[%s4376 + $0x5c] sm:$0x1]
        %v4737 = vld [vmem:[%s4376 + $0x60] sm:$0xff]
        %v4738 = vld [vmem:[%s4376 + $0x68] sm:$0xf]
        %v4739 = vld [vmem:[%s4376 + $0x6c] sm:$0x11]
        %v4740 = vld [vmem:[%s4376 + $0x74] sm:$0x1]
        %v4741 = vld [vmem:[%s4376 + $0x78] sm:$0xff]
        %v4742 = vld [vmem:[%s4376 + $0x80] sm:$0xf]
        %v4743 = vld [vmem:[%s4376 + $0x84] sm:$0x11]
        %v4744 = vld [vmem:[%s4376 + $0x8c] sm:$0x1]
        %v4745 = vld [vmem:[%s4376 + $0x90] sm:$0xff]
        %v4746 = vld [vmem:[%s4376 + $0x98] sm:$0xf]
        %v4747 = vld [vmem:[%s4376 + $0x9c] sm:$0x11]
        %v4748 = vld [vmem:[%s4376 + $0xa4] sm:$0x1]
        %v4749 = vld [vmem:[%s4376 + $0xa8] sm:$0xff]
        %v4750 = vld [vmem:[%s4376 + $0xb0] sm:$0xf]
        %v4751 = vld [vmem:[%s4376 + $0xb4] sm:$0x11]
        %v4752 = vld [vmem:[%s4376 + $0xbc] sm:$0x1]
        %v4754 = vshrl.u32 %v4721, 16
        %v4756 = vrot.slane %v4754, 4
        %v4757 = vshll.u32 %v4721, 16
        %v4759 = vrot.slane %v4757, 5
        %v4760 = vor.u32 %v4756, %v4759
        %v4761 = vrot.slane %v4760, 4
        %v4763 = vshll.u32 %v4723, 16
        %v4765 = vrot.slane %v4763, 5
        %v4766 = vsel %vm315, %v4761, %v4765
        %v4768 = vshrl.u32 %v4722, 16
        %v4770 = vrot.slane %v4768, 4
        %v4771 = vshll.u32 %v4722, 16
        %v4773 = vrot.slane %v4771, 5
        %v4774 = vor.u32 %v4770, %v4773
        %v4775 = vrot.slane %v4774, 4
        %v4777 = vshll.u32 %v4724, 16
        %v4779 = vrot.slane %v4777, 5
        %v4780 = vsel %vm315, %v4775, %v4779
        %v4782 = vshrl.u32 %v4725, 16
        %v4784 = vrot.slane %v4782, 4
        %v4785 = vshll.u32 %v4725, 16
        %v4787 = vrot.slane %v4785, 5
        %v4788 = vor.u32 %v4784, %v4787
        %v4789 = vrot.slane %v4788, 4
        %v4791 = vshll.u32 %v4727, 16
        %v4793 = vrot.slane %v4791, 5
        %v4794 = vsel %vm315, %v4789, %v4793
        %v4796 = vshrl.u32 %v4726, 16
        %v4798 = vrot.slane %v4796, 4
        %v4799 = vshll.u32 %v4726, 16
        %v4801 = vrot.slane %v4799, 5
        %v4802 = vor.u32 %v4798, %v4801
        %v4803 = vrot.slane %v4802, 4
        %v4805 = vshll.u32 %v4728, 16
        %v4807 = vrot.slane %v4805, 5
        %v4808 = vsel %vm315, %v4803, %v4807
        %v4810 = vshrl.u32 %v4729, 16
        %v4812 = vrot.slane %v4810, 4
        %v4813 = vshll.u32 %v4729, 16
        %v4815 = vrot.slane %v4813, 5
        %v4816 = vor.u32 %v4812, %v4815
        %v4817 = vrot.slane %v4816, 4
        %v4819 = vshll.u32 %v4731, 16
        %v4821 = vrot.slane %v4819, 5
        %v4822 = vsel %vm315, %v4817, %v4821
        %v4824 = vshrl.u32 %v4730, 16
        %v4826 = vrot.slane %v4824, 4
        %v4827 = vshll.u32 %v4730, 16
        %v4829 = vrot.slane %v4827, 5
        %v4830 = vor.u32 %v4826, %v4829
        %v4831 = vrot.slane %v4830, 4
        %v4833 = vshll.u32 %v4732, 16
        %v4835 = vrot.slane %v4833, 5
        %v4836 = vsel %vm315, %v4831, %v4835
        %v4838 = vshrl.u32 %v4733, 16
        %v4840 = vrot.slane %v4838, 4
        %v4841 = vshll.u32 %v4733, 16
        %v4843 = vrot.slane %v4841, 5
        %v4844 = vor.u32 %v4840, %v4843
        %v4845 = vrot.slane %v4844, 4
        %v4847 = vshll.u32 %v4735, 16
        %v4849 = vrot.slane %v4847, 5
        %v4850 = vsel %vm315, %v4845, %v4849
        %v4852 = vshrl.u32 %v4734, 16
        %v4854 = vrot.slane %v4852, 4
        %v4855 = vshll.u32 %v4734, 16
        %v4857 = vrot.slane %v4855, 5
        %v4858 = vor.u32 %v4854, %v4857
        %v4859 = vrot.slane %v4858, 4
        %v4861 = vshll.u32 %v4736, 16
        %v4863 = vrot.slane %v4861, 5
        %v4864 = vsel %vm315, %v4859, %v4863
        %v4866 = vshrl.u32 %v4737, 16
        %v4868 = vrot.slane %v4866, 4
        %v4869 = vshll.u32 %v4737, 16
        %v4871 = vrot.slane %v4869, 5
        %v4872 = vor.u32 %v4868, %v4871
        %v4873 = vrot.slane %v4872, 4
        %v4875 = vshll.u32 %v4739, 16
        %v4877 = vrot.slane %v4875, 5
        %v4878 = vsel %vm315, %v4873, %v4877
        %v4880 = vshrl.u32 %v4738, 16
        %v4882 = vrot.slane %v4880, 4
        %v4883 = vshll.u32 %v4738, 16
        %v4885 = vrot.slane %v4883, 5
        %v4886 = vor.u32 %v4882, %v4885
        %v4887 = vrot.slane %v4886, 4
        %v4889 = vshll.u32 %v4740, 16
        %v4891 = vrot.slane %v4889, 5
        %v4892 = vsel %vm315, %v4887, %v4891
        %v4894 = vshrl.u32 %v4741, 16
        %v4896 = vrot.slane %v4894, 4
        %v4897 = vshll.u32 %v4741, 16
        %v4899 = vrot.slane %v4897, 5
        %v4900 = vor.u32 %v4896, %v4899
        %v4901 = vrot.slane %v4900, 4
        %v4903 = vshll.u32 %v4743, 16
        %v4905 = vrot.slane %v4903, 5
        %v4906 = vsel %vm315, %v4901, %v4905
        %v4908 = vshrl.u32 %v4742, 16
        %v4910 = vrot.slane %v4908, 4
        %v4911 = vshll.u32 %v4742, 16
        %v4913 = vrot.slane %v4911, 5
        %v4914 = vor.u32 %v4910, %v4913
        %v4915 = vrot.slane %v4914, 4
        %v4917 = vshll.u32 %v4744, 16
        %v4919 = vrot.slane %v4917, 5
        %v4920 = vsel %vm315, %v4915, %v4919
        %v4922 = vshrl.u32 %v4745, 16
        %v4924 = vrot.slane %v4922, 4
        %v4925 = vshll.u32 %v4745, 16
        %v4927 = vrot.slane %v4925, 5
        %v4928 = vor.u32 %v4924, %v4927
        %v4929 = vrot.slane %v4928, 4
        %v4931 = vshll.u32 %v4747, 16
        %v4933 = vrot.slane %v4931, 5
        %v4934 = vsel %vm315, %v4929, %v4933
        %v4936 = vshrl.u32 %v4746, 16
        %v4938 = vrot.slane %v4936, 4
        %v4939 = vshll.u32 %v4746, 16
        %v4941 = vrot.slane %v4939, 5
        %v4942 = vor.u32 %v4938, %v4941
        %v4943 = vrot.slane %v4942, 4
        %v4945 = vshll.u32 %v4748, 16
        %v4947 = vrot.slane %v4945, 5
        %v4948 = vsel %vm315, %v4943, %v4947
        %v4950 = vshrl.u32 %v4749, 16
        %v4952 = vrot.slane %v4950, 4
        %v4953 = vshll.u32 %v4749, 16
        %v4955 = vrot.slane %v4953, 5
        %v4956 = vor.u32 %v4952, %v4955
        %v4957 = vrot.slane %v4956, 4
        %v4959 = vshll.u32 %v4751, 16
        %v4961 = vrot.slane %v4959, 5
        %v4962 = vsel %vm315, %v4957, %v4961
        %v4964 = vshrl.u32 %v4750, 16
        %v4966 = vrot.slane %v4964, 4
        %v4967 = vshll.u32 %v4750, 16
        %v4969 = vrot.slane %v4967, 5
        %v4970 = vor.u32 %v4966, %v4969
        %v4971 = vrot.slane %v4970, 4
        %v4973 = vshll.u32 %v4752, 16
        %v4975 = vrot.slane %v4973, 5
        %v4976 = vsel %vm315, %v4971, %v4975
        %s4977 = scalar_lea.vmem [#allocation2], 1760
        %v4978 = vld [vmem:[%s4977] sm:$0xf]
        %v4979 = vld [vmem:[%s4977 + $0x4] sm:$0xf]
        %v4980 = vld [vmem:[%s4977 + $0x8] sm:$0xf]
        %v4981 = vld [vmem:[%s4977 + $0xc] sm:$0xf]
        %v4982 = vld [vmem:[%s4977 + $0x10] sm:$0xf]
        %v4983 = vld [vmem:[%s4977 + $0x14] sm:$0xf]
        %v4984 = vld [vmem:[%s4977 + $0x18] sm:$0xf]
        %v4985 = vld [vmem:[%s4977 + $0x1c] sm:$0xf]
        %v4986 = vld [vmem:[%s4977 + $0x20] sm:$0xf]
        %v4987 = vld [vmem:[%s4977 + $0x24] sm:$0xf]
        %v4988 = vld [vmem:[%s4977 + $0x28] sm:$0xf]
        %v4989 = vld [vmem:[%s4977 + $0x2c] sm:$0xf]
        %v4990 = vld [vmem:[%s4977 + $0x30] sm:$0xf]
        %v4991 = vld [vmem:[%s4977 + $0x34] sm:$0xf]
        %v4992 = vld [vmem:[%s4977 + $0x38] sm:$0xf]
        %v4993 = vld [vmem:[%s4977 + $0x3c] sm:$0xf]
        %v4994 = vld [vmem:[%s4977 + $0x40] sm:$0xf]
        %v4995 = vld [vmem:[%s4977 + $0x44] sm:$0xf]
        %v4996 = vld [vmem:[%s4977 + $0x48] sm:$0xf]
        %v4997 = vld [vmem:[%s4977 + $0x4c] sm:$0xf]
        %v4998 = vld [vmem:[%s4977 + $0x50] sm:$0xf]
        %v4999 = vld [vmem:[%s4977 + $0x54] sm:$0xf]
        %v5000 = vld [vmem:[%s4977 + $0x58] sm:$0xf]
        %v5001 = vld [vmem:[%s4977 + $0x5c] sm:$0xf]
        %v5002 = vld [vmem:[%s4977 + $0x60] sm:$0xf]
        %v5003 = vld [vmem:[%s4977 + $0x64] sm:$0xf]
        %v5004 = vld [vmem:[%s4977 + $0x68] sm:$0xf]
        %v5005 = vld [vmem:[%s4977 + $0x6c] sm:$0xf]
        %v5006 = vld [vmem:[%s4977 + $0x70] sm:$0xf]
        %v5007 = vld [vmem:[%s4977 + $0x74] sm:$0xf]
        %v5008 = vld [vmem:[%s4977 + $0x78] sm:$0xf]
        %v5009 = vld [vmem:[%s4977 + $0x7c] sm:$0xf]
        %v5010 = vld [vmem:[%s4977 + $0x80] sm:$0xf]
        %v5011 = vld [vmem:[%s4977 + $0x84] sm:$0xf]
        %v5012 = vld [vmem:[%s4977 + $0x88] sm:$0xf]
        %v5013 = vld [vmem:[%s4977 + $0x8c] sm:$0xf]
        %v5014 = vld [vmem:[%s4977 + $0x90] sm:$0xf]
        %v5015 = vld [vmem:[%s4977 + $0x94] sm:$0xf]
        %v5016 = vld [vmem:[%s4977 + $0x98] sm:$0xf]
        %v5017 = vld [vmem:[%s4977 + $0x9c] sm:$0xf]
        %v5018 = vunpack.c.l.b16 %v4766
        %v5019 = vunpack.c.h.b16 %v4766
        %v5020 = vunpack.c.l.b16 %v4780
        %v5021 = vunpack.c.l.b16 %v4794
        %v5022 = vunpack.c.h.b16 %v4794
        %v5023 = vunpack.c.l.b16 %v4808
        %v5024 = vunpack.c.l.b16 %v4822
        %v5025 = vunpack.c.h.b16 %v4822
        %v5026 = vunpack.c.l.b16 %v4836
        %v5027 = vunpack.c.l.b16 %v4850
        %v5028 = vunpack.c.h.b16 %v4850
        %v5029 = vunpack.c.l.b16 %v4864
        %v5030 = vunpack.c.l.b16 %v4878
        %v5031 = vunpack.c.h.b16 %v4878
        %v5032 = vunpack.c.l.b16 %v4892
        %v5033 = vunpack.c.l.b16 %v4906
        %v5034 = vunpack.c.h.b16 %v4906
        %v5035 = vunpack.c.l.b16 %v4920
        %v5036 = vunpack.c.l.b16 %v4934
        %v5037 = vunpack.c.h.b16 %v4934
        %v5038 = vunpack.c.l.b16 %v4948
        %v5039 = vunpack.c.l.b16 %v4962
        %v5040 = vunpack.c.h.b16 %v4962
        %v5041 = vunpack.c.l.b16 %v4976
        %v5042 = vpack.c.b16 %v5021, %v5018
        %v5043 = vpack.c.b16 %v5022, %v5019
        %v5044 = vpack.c.b16 %v5023, %v5020
        %v5045 = vpack.c.b16 %v5027, %v5024
        %v5046 = vpack.c.b16 %v5028, %v5025
        %v5047 = vpack.c.b16 %v5029, %v5026
        %v5048 = vpack.c.b16 %v5033, %v5030
        %v5049 = vpack.c.b16 %v5034, %v5031
        %v5050 = vpack.c.b16 %v5035, %v5032
        %v5051 = vpack.c.b16 %v5039, %v5036
        %v5052 = vpack.c.b16 %v5040, %v5037
        %v5053 = vpack.c.b16 %v5041, %v5038
        %v5102 = vunpack.c.l.b16 %v4978
        %v5103 = vunpack.c.l.b16 %v4979
        %v5104 = vunpack.c.l.b16 %v4980
        %v5105 = vunpack.c.l.b16 %v4981
        %v5106 = vunpack.c.l.b16 %v4982
        %v5107 = vunpack.c.l.b16 %v4983
        %v5108 = vunpack.c.l.b16 %v4984
        %v5109 = vunpack.c.l.b16 %v4985
        %v5110 = vunpack.c.l.b16 %v4986
        %v5111 = vunpack.c.l.b16 %v4987
        %v5112 = vunpack.c.l.b16 %v4988
        %v5113 = vunpack.c.l.b16 %v4989
        %v5114 = vunpack.c.l.b16 %v4990
        %v5115 = vunpack.c.l.b16 %v4991
        %v5116 = vunpack.c.l.b16 %v4992
        %v5117 = vunpack.c.l.b16 %v4993
        %v5118 = vunpack.c.l.b16 %v4994
        %v5119 = vunpack.c.l.b16 %v4995
        %v5120 = vunpack.c.l.b16 %v4996
        %v5121 = vunpack.c.l.b16 %v4997
        %v5122 = vunpack.c.l.b16 %v4998
        %v5123 = vunpack.c.l.b16 %v4999
        %v5124 = vunpack.c.l.b16 %v5000
        %v5125 = vunpack.c.l.b16 %v5001
        %v5126 = vunpack.c.l.b16 %v5002
        %v5127 = vunpack.c.l.b16 %v5003
        %v5128 = vunpack.c.l.b16 %v5004
        %v5129 = vunpack.c.l.b16 %v5005
        %v5130 = vunpack.c.l.b16 %v5006
        %v5131 = vunpack.c.l.b16 %v5007
        %v5132 = vunpack.c.l.b16 %v5008
        %v5133 = vunpack.c.l.b16 %v5009
        %v5134 = vunpack.c.l.b16 %v5010
        %v5135 = vunpack.c.l.b16 %v5011
        %v5136 = vunpack.c.l.b16 %v5012
        %v5137 = vunpack.c.l.b16 %v5013
        %v5138 = vunpack.c.l.b16 %v5014
        %v5139 = vunpack.c.l.b16 %v5015
        %v5140 = vunpack.c.l.b16 %v5016
        %v5141 = vunpack.c.l.b16 %v5017
        %v5142 = vpack.c.b16 %v5103, %v5102
        %v5143 = vpack.c.b16 %v5105, %v5104
        %v5144 = vpack.c.b16 %v5107, %v5106
        %v5145 = vpack.c.b16 %v5109, %v5108
        %v5146 = vpack.c.b16 %v5111, %v5110
        %v5147 = vpack.c.b16 %v5113, %v5112
        %v5148 = vpack.c.b16 %v5115, %v5114
        %v5149 = vpack.c.b16 %v5117, %v5116
        %v5150 = vpack.c.b16 %v5119, %v5118
        %v5151 = vpack.c.b16 %v5121, %v5120
        %v5152 = vpack.c.b16 %v5123, %v5122
        %v5153 = vpack.c.b16 %v5125, %v5124
        %v5154 = vpack.c.b16 %v5127, %v5126
        %v5155 = vpack.c.b16 %v5129, %v5128
        %v5156 = vpack.c.b16 %v5131, %v5130
        %v5157 = vpack.c.b16 %v5133, %v5132
        %v5158 = vpack.c.b16 %v5135, %v5134
        %v5159 = vpack.c.b16 %v5137, %v5136
        %v5160 = vpack.c.b16 %v5139, %v5138
        %v5161 = vpack.c.b16 %v5141, %v5140
        %v5183 = vsel %vm745, %v5044, 0
        %v5186 = vsel %vm745, %v5047, 0
        %v5189 = vsel %vm745, %v5050, 0
        %v5192 = vsel %vm745, %v5053, 0
        %5194 = vmatpush.bf16.msra.mxu0 %v5149
        %5195 = vmatpush.bf16.msra.mxu0 %v5148
        %5196 = vmatpush.bf16.msra.mxu0 %v5147
        %5197 = vmatpush.bf16.msra.mxu0 %v5146
        %5198 = vmatpush.bf16.msra.mxu0 %v5145
        %5199 = vmatpush.bf16.msra.mxu0 %v5144
        %5200 = vmatpush.bf16.msra.mxu0 %v5143
        %5201 = vmatpush.bf16.msra.mxu0 %v5142
        %5202 = vmatmul.bf16.gmra.mxu0 %v5042
        %v5203 = vpop.f32.mrf.mxu0
        %v5204 = vadd.f32 0.0, %v5203
        %v5205 = vpop.f32.mrf.mxu0
        %v5206 = vadd.f32 0.0, %v5205
        %5207 = vmatmul.bf16.gmra.mxu0 %v5045
        %v5208 = vpop.f32.mrf.mxu0
        %v5209 = vadd.f32 0.0, %v5208
        %v5210 = vpop.f32.mrf.mxu0
        %v5211 = vadd.f32 0.0, %v5210
        %5212 = vmatmul.bf16.gmra.mxu0 %v5048
        %v5213 = vpop.f32.mrf.mxu0
        %v5214 = vadd.f32 0.0, %v5213
        %v5215 = vpop.f32.mrf.mxu0
        %v5216 = vadd.f32 0.0, %v5215
        %5217 = vmatmul.bf16.gmra.mxu0 %v5051
        %v5218 = vpop.f32.mrf.mxu0
        %v5219 = vadd.f32 0.0, %v5218
        %v5220 = vpop.f32.mrf.mxu0
        %v5221 = vadd.f32 0.0, %v5220
        %5222 = vdwg.mxu0
        %5223 = vmatpush.bf16.msra.mxu0 %v5157
        %5224 = vmatpush.bf16.msra.mxu0 %v5156
        %5225 = vmatpush.bf16.msra.mxu0 %v5155
        %5226 = vmatpush.bf16.msra.mxu0 %v5154
        %5227 = vmatpush.bf16.msra.mxu0 %v5153
        %5228 = vmatpush.bf16.msra.mxu0 %v5152
        %5229 = vmatpush.bf16.msra.mxu0 %v5151
        %5230 = vmatpush.bf16.msra.mxu0 %v5150
        %5231 = vmatmul.bf16.gmra.mxu0 %v5043
        %v5232 = vpop.f32.mrf.mxu0
        %v5233 = vadd.f32 %v5204, %v5232
        %v5234 = vpop.f32.mrf.mxu0
        %v5235 = vadd.f32 %v5206, %v5234
        %5236 = vmatmul.bf16.gmra.mxu0 %v5046
        %v5237 = vpop.f32.mrf.mxu0
        %v5238 = vadd.f32 %v5209, %v5237
        %v5239 = vpop.f32.mrf.mxu0
        %v5240 = vadd.f32 %v5211, %v5239
        %5241 = vmatmul.bf16.gmra.mxu0 %v5049
        %v5242 = vpop.f32.mrf.mxu0
        %v5243 = vadd.f32 %v5214, %v5242
        %v5244 = vpop.f32.mrf.mxu0
        %v5245 = vadd.f32 %v5216, %v5244
        %5246 = vmatmul.bf16.gmra.mxu0 %v5052
        %v5247 = vpop.f32.mrf.mxu0
        %v5248 = vadd.f32 %v5219, %v5247
        %v5249 = vpop.f32.mrf.mxu0
        %v5250 = vadd.f32 %v5221, %v5249
        %5251 = vdwg.mxu0
        %5252 = vmatpush.bf16.msra.mxu0 0
        %5253 = vmatpush.bf16.msra.mxu0 0
        %5254 = vmatpush.bf16.msra.mxu0 0
        %5255 = vmatpush.bf16.msra.mxu0 0
        %5256 = vmatpush.bf16.msra.mxu0 %v5161
        %5257 = vmatpush.bf16.msra.mxu0 %v5160
        %5258 = vmatpush.bf16.msra.mxu0 %v5159
        %5259 = vmatpush.bf16.msra.mxu0 %v5158
        %5260 = vmatmul.bf16.gmra.mxu0 %v5183
        %v5261 = vpop.f32.mrf.mxu0
        %v5262 = vadd.f32 %v5233, %v5261
        %v5263 = vpop.f32.mrf.mxu0
        %v5264 = vadd.f32 %v5235, %v5263
        %5265 = vmatmul.bf16.gmra.mxu0 %v5186
        %v5266 = vpop.f32.mrf.mxu0
        %v5267 = vadd.f32 %v5238, %v5266
        %v5268 = vpop.f32.mrf.mxu0
        %v5269 = vadd.f32 %v5240, %v5268
        %5270 = vmatmul.bf16.gmra.mxu0 %v5189
        %v5271 = vpop.f32.mrf.mxu0
        %v5272 = vadd.f32 %v5243, %v5271
        %v5273 = vpop.f32.mrf.mxu0
        %v5274 = vadd.f32 %v5245, %v5273
        %5275 = vmatmul.bf16.gmra.mxu0 %v5192
        %v5276 = vpop.f32.mrf.mxu0
        %v5277 = vadd.f32 %v5248, %v5276
        %v5278 = vpop.f32.mrf.mxu0
        %v5279 = vadd.f32 %v5250, %v5278
        %5280 = vdwg.mxu0
        %v5281 = vadd.f32 %v4713, %v5262
        %v5282 = vadd.f32 %v4714, %v5264
        %v5283 = vadd.f32 %v4715, %v5267
        %v5284 = vadd.f32 %v4716, %v5269
        %v5285 = vadd.f32 %v4717, %v5272
        %v5286 = vadd.f32 %v4718, %v5274
        %v5287 = vadd.f32 %v4719, %v5277
        %v5288 = vadd.f32 %v4720, %v5279
        %s5289 = scalar_lea.vmem [#allocation2], 2240
        %v5290 = vld [vmem:[%s5289] sm:$0xf]
        %v5291 = vld [vmem:[%s5289 + $0x4] sm:$0xf]
        %v5292 = vld [vmem:[%s5289 + $0x8] sm:$0xf]
        %v5293 = vld [vmem:[%s5289 + $0xc] sm:$0xf]
        %v5294 = vld [vmem:[%s5289 + $0x10] sm:$0xf]
        %v5295 = vld [vmem:[%s5289 + $0x14] sm:$0xf]
        %v5296 = vld [vmem:[%s5289 + $0x18] sm:$0xf]
        %v5297 = vld [vmem:[%s5289 + $0x1c] sm:$0xf]
        %v5298 = vld [vmem:[%s5289 + $0x20] sm:$0xf]
        %v5299 = vld [vmem:[%s5289 + $0x24] sm:$0xf]
        %v5300 = vld [vmem:[%s5289 + $0x28] sm:$0xf]
        %v5301 = vld [vmem:[%s5289 + $0x2c] sm:$0xf]
        %v5302 = vld [vmem:[%s5289 + $0x30] sm:$0xf]
        %v5303 = vld [vmem:[%s5289 + $0x34] sm:$0xf]
        %v5304 = vld [vmem:[%s5289 + $0x38] sm:$0xf]
        %v5305 = vld [vmem:[%s5289 + $0x3c] sm:$0xf]
        %v5306 = vld [vmem:[%s5289 + $0x40] sm:$0xf]
        %v5307 = vld [vmem:[%s5289 + $0x44] sm:$0xf]
        %v5308 = vld [vmem:[%s5289 + $0x48] sm:$0xf]
        %v5309 = vld [vmem:[%s5289 + $0x4c] sm:$0xf]
        %v5310 = vld [vmem:[%s5289 + $0x50] sm:$0xf]
        %v5311 = vld [vmem:[%s5289 + $0x54] sm:$0xf]
        %v5312 = vld [vmem:[%s5289 + $0x58] sm:$0xf]
        %v5313 = vld [vmem:[%s5289 + $0x5c] sm:$0xf]
        %v5314 = vld [vmem:[%s5289 + $0x60] sm:$0xf]
        %v5315 = vld [vmem:[%s5289 + $0x64] sm:$0xf]
        %v5316 = vld [vmem:[%s5289 + $0x68] sm:$0xf]
        %v5317 = vld [vmem:[%s5289 + $0x6c] sm:$0xf]
        %v5318 = vld [vmem:[%s5289 + $0x70] sm:$0xf]
        %v5319 = vld [vmem:[%s5289 + $0x74] sm:$0xf]
        %v5320 = vld [vmem:[%s5289 + $0x78] sm:$0xf]
        %v5321 = vld [vmem:[%s5289 + $0x7c] sm:$0xf]
        %v5322 = vld [vmem:[%s5289 + $0x80] sm:$0xf]
        %v5323 = vld [vmem:[%s5289 + $0x84] sm:$0xf]
        %v5324 = vld [vmem:[%s5289 + $0x88] sm:$0xf]
        %v5325 = vld [vmem:[%s5289 + $0x8c] sm:$0xf]
        %v5326 = vld [vmem:[%s5289 + $0x90] sm:$0xf]
        %v5327 = vld [vmem:[%s5289 + $0x94] sm:$0xf]
        %v5328 = vld [vmem:[%s5289 + $0x98] sm:$0xf]
        %v5329 = vld [vmem:[%s5289 + $0x9c] sm:$0xf]
        %v5370 = vunpack.c.l.b16 %v5290
        %v5371 = vunpack.c.l.b16 %v5291
        %v5372 = vunpack.c.l.b16 %v5292
        %v5373 = vunpack.c.l.b16 %v5293
        %v5374 = vunpack.c.l.b16 %v5294
        %v5375 = vunpack.c.l.b16 %v5295
        %v5376 = vunpack.c.l.b16 %v5296
        %v5377 = vunpack.c.l.b16 %v5297
        %v5378 = vunpack.c.l.b16 %v5298
        %v5379 = vunpack.c.l.b16 %v5299
        %v5380 = vunpack.c.l.b16 %v5300
        %v5381 = vunpack.c.l.b16 %v5301
        %v5382 = vunpack.c.l.b16 %v5302
        %v5383 = vunpack.c.l.b16 %v5303
        %v5384 = vunpack.c.l.b16 %v5304
        %v5385 = vunpack.c.l.b16 %v5305
        %v5386 = vunpack.c.l.b16 %v5306
        %v5387 = vunpack.c.l.b16 %v5307
        %v5388 = vunpack.c.l.b16 %v5308
        %v5389 = vunpack.c.l.b16 %v5309
        %v5390 = vunpack.c.l.b16 %v5310
        %v5391 = vunpack.c.l.b16 %v5311
        %v5392 = vunpack.c.l.b16 %v5312
        %v5393 = vunpack.c.l.b16 %v5313
        %v5394 = vunpack.c.l.b16 %v5314
        %v5395 = vunpack.c.l.b16 %v5315
        %v5396 = vunpack.c.l.b16 %v5316
        %v5397 = vunpack.c.l.b16 %v5317
        %v5398 = vunpack.c.l.b16 %v5318
        %v5399 = vunpack.c.l.b16 %v5319
        %v5400 = vunpack.c.l.b16 %v5320
        %v5401 = vunpack.c.l.b16 %v5321
        %v5402 = vunpack.c.l.b16 %v5322
        %v5403 = vunpack.c.l.b16 %v5323
        %v5404 = vunpack.c.l.b16 %v5324
        %v5405 = vunpack.c.l.b16 %v5325
        %v5406 = vunpack.c.l.b16 %v5326
        %v5407 = vunpack.c.l.b16 %v5327
        %v5408 = vunpack.c.l.b16 %v5328
        %v5409 = vunpack.c.l.b16 %v5329
        %v5410 = vpack.c.b16 %v5371, %v5370
        %v5411 = vpack.c.b16 %v5373, %v5372
        %v5412 = vpack.c.b16 %v5375, %v5374
        %v5413 = vpack.c.b16 %v5377, %v5376
        %v5414 = vpack.c.b16 %v5379, %v5378
        %v5415 = vpack.c.b16 %v5381, %v5380
        %v5416 = vpack.c.b16 %v5383, %v5382
        %v5417 = vpack.c.b16 %v5385, %v5384
        %v5418 = vpack.c.b16 %v5387, %v5386
        %v5419 = vpack.c.b16 %v5389, %v5388
        %v5420 = vpack.c.b16 %v5391, %v5390
        %v5421 = vpack.c.b16 %v5393, %v5392
        %v5422 = vpack.c.b16 %v5395, %v5394
        %v5423 = vpack.c.b16 %v5397, %v5396
        %v5424 = vpack.c.b16 %v5399, %v5398
        %v5425 = vpack.c.b16 %v5401, %v5400
        %v5426 = vpack.c.b16 %v5403, %v5402
        %v5427 = vpack.c.b16 %v5405, %v5404
        %v5428 = vpack.c.b16 %v5407, %v5406
        %v5429 = vpack.c.b16 %v5409, %v5408
        %5450 = vmatpush.bf16.msra.mxu0 %v5417
        %5451 = vmatpush.bf16.msra.mxu0 %v5416
        %5452 = vmatpush.bf16.msra.mxu0 %v5415
        %5453 = vmatpush.bf16.msra.mxu0 %v5414
        %5454 = vmatpush.bf16.msra.mxu0 %v5413
        %5455 = vmatpush.bf16.msra.mxu0 %v5412
        %5456 = vmatpush.bf16.msra.mxu0 %v5411
        %5457 = vmatpush.bf16.msra.mxu0 %v5410
        %5458 = vmatmul.bf16.gmra.mxu0 %v5042
        %v5459 = vpop.f32.mrf.mxu0
        %v5460 = vadd.f32 0.0, %v5459
        %v5461 = vpop.f32.mrf.mxu0
        %v5462 = vadd.f32 0.0, %v5461
        %5463 = vmatmul.bf16.gmra.mxu0 %v5045
        %v5464 = vpop.f32.mrf.mxu0
        %v5465 = vadd.f32 0.0, %v5464
        %v5466 = vpop.f32.mrf.mxu0
        %v5467 = vadd.f32 0.0, %v5466
        %5468 = vmatmul.bf16.gmra.mxu0 %v5048
        %v5469 = vpop.f32.mrf.mxu0
        %v5470 = vadd.f32 0.0, %v5469
        %v5471 = vpop.f32.mrf.mxu0
        %v5472 = vadd.f32 0.0, %v5471
        %5473 = vmatmul.bf16.gmra.mxu0 %v5051
        %v5474 = vpop.f32.mrf.mxu0
        %v5475 = vadd.f32 0.0, %v5474
        %v5476 = vpop.f32.mrf.mxu0
        %v5477 = vadd.f32 0.0, %v5476
        %5478 = vdwg.mxu0
        %5479 = vmatpush.bf16.msra.mxu0 %v5425
        %5480 = vmatpush.bf16.msra.mxu0 %v5424
        %5481 = vmatpush.bf16.msra.mxu0 %v5423
        %5482 = vmatpush.bf16.msra.mxu0 %v5422
        %5483 = vmatpush.bf16.msra.mxu0 %v5421
        %5484 = vmatpush.bf16.msra.mxu0 %v5420
        %5485 = vmatpush.bf16.msra.mxu0 %v5419
        %5486 = vmatpush.bf16.msra.mxu0 %v5418
        %5487 = vmatmul.bf16.gmra.mxu0 %v5043
        %v5488 = vpop.f32.mrf.mxu0
        %v5489 = vadd.f32 %v5460, %v5488
        %v5490 = vpop.f32.mrf.mxu0
        %v5491 = vadd.f32 %v5462, %v5490
        %5492 = vmatmul.bf16.gmra.mxu0 %v5046
        %v5493 = vpop.f32.mrf.mxu0
        %v5494 = vadd.f32 %v5465, %v5493
        %v5495 = vpop.f32.mrf.mxu0
        %v5496 = vadd.f32 %v5467, %v5495
        %5497 = vmatmul.bf16.gmra.mxu0 %v5049
        %v5498 = vpop.f32.mrf.mxu0
        %v5499 = vadd.f32 %v5470, %v5498
        %v5500 = vpop.f32.mrf.mxu0
        %v5501 = vadd.f32 %v5472, %v5500
        %5502 = vmatmul.bf16.gmra.mxu0 %v5052
        %v5503 = vpop.f32.mrf.mxu0
        %v5504 = vadd.f32 %v5475, %v5503
        %v5505 = vpop.f32.mrf.mxu0
        %v5506 = vadd.f32 %v5477, %v5505
        %5507 = vdwg.mxu0
        %5508 = vmatpush.bf16.msra.mxu0 0
        %5509 = vmatpush.bf16.msra.mxu0 0
        %5510 = vmatpush.bf16.msra.mxu0 0
        %5511 = vmatpush.bf16.msra.mxu0 0
        %5512 = vmatpush.bf16.msra.mxu0 %v5429
        %5513 = vmatpush.bf16.msra.mxu0 %v5428
        %5514 = vmatpush.bf16.msra.mxu0 %v5427
        %5515 = vmatpush.bf16.msra.mxu0 %v5426
        %5516 = vmatmul.bf16.gmra.mxu0 %v5183
        %v5517 = vpop.f32.mrf.mxu0
        %v5518 = vadd.f32 %v5489, %v5517
        %v5519 = vpop.f32.mrf.mxu0
        %v5520 = vadd.f32 %v5491, %v5519
        %5521 = vmatmul.bf16.gmra.mxu0 %v5186
        %v5522 = vpop.f32.mrf.mxu0
        %v5523 = vadd.f32 %v5494, %v5522
        %v5524 = vpop.f32.mrf.mxu0
        %v5525 = vadd.f32 %v5496, %v5524
        %5526 = vmatmul.bf16.gmra.mxu0 %v5189
        %v5527 = vpop.f32.mrf.mxu0
        %v5528 = vadd.f32 %v5499, %v5527
        %v5529 = vpop.f32.mrf.mxu0
        %v5530 = vadd.f32 %v5501, %v5529
        %5531 = vmatmul.bf16.gmra.mxu0 %v5192
        %v5532 = vpop.f32.mrf.mxu0
        %v5533 = vadd.f32 %v5504, %v5532
        %v5534 = vpop.f32.mrf.mxu0
        %v5535 = vadd.f32 %v5506, %v5534
        %5536 = vdwg.mxu0
        %v5537 = vadd.f32 %v4357, %v5518
        %v5538 = vadd.f32 %v4359, %v5520
        %v5539 = vadd.f32 %v4362, %v5523
        %v5540 = vadd.f32 %v4364, %v5525
        %v5541 = vadd.f32 %v4367, %v5528
        %v5542 = vadd.f32 %v4369, %v5530
        %v5543 = vadd.f32 %v4372, %v5533
        %v5544 = vadd.f32 %v4374, %v5535
        %v5545 = vld [vmem:[%s4376] sm:$0xee]
        %v5546 = vld [vmem:[%s4376 + $0x8] sm:$0xe]
        %v5547 = vld [vmem:[%s4376 + $0x18] sm:$0xee]
        %v5548 = vld [vmem:[%s4376 + $0x20] sm:$0xe]
        %v5549 = vld [vmem:[%s4376 + $0x30] sm:$0xee]
        %v5550 = vld [vmem:[%s4376 + $0x38] sm:$0xe]
        %v5551 = vld [vmem:[%s4376 + $0x48] sm:$0xee]
        %v5552 = vld [vmem:[%s4376 + $0x50] sm:$0xe]
        %v5553 = vld [vmem:[%s4376 + $0x60] sm:$0xee]
        %v5554 = vld [vmem:[%s4376 + $0x68] sm:$0xe]
        %v5555 = vld [vmem:[%s4376 + $0x78] sm:$0xee]
        %v5556 = vld [vmem:[%s4376 + $0x80] sm:$0xe]
        %v5557 = vld [vmem:[%s4376 + $0x90] sm:$0xee]
        %v5558 = vld [vmem:[%s4376 + $0x98] sm:$0xe]
        %v5559 = vld [vmem:[%s4376 + $0xa8] sm:$0xee]
        %v5560 = vld [vmem:[%s4376 + $0xb0] sm:$0xe]
        %v5593 = vrot.slane %v5545, 5
        %v5594 = vrot.slane %v5593, 4
        %v5595 = vrot.slane %v4723, 5
        %v5596 = vsel %vm1215, %v5594, %v5595
        %v5597 = vrot.slane %v5546, 5
        %v5598 = vrot.slane %v5597, 4
        %v5599 = vrot.slane %v4724, 5
        %v5600 = vsel %vm1215, %v5598, %v5599
        %v5601 = vrot.slane %v5547, 5
        %v5602 = vrot.slane %v5601, 4
        %v5603 = vrot.slane %v4727, 5
        %v5604 = vsel %vm1215, %v5602, %v5603
        %v5605 = vrot.slane %v5548, 5
        %v5606 = vrot.slane %v5605, 4
        %v5607 = vrot.slane %v4728, 5
        %v5608 = vsel %vm1215, %v5606, %v5607
        %v5609 = vrot.slane %v5549, 5
        %v5610 = vrot.slane %v5609, 4
        %v5611 = vrot.slane %v4731, 5
        %v5612 = vsel %vm1215, %v5610, %v5611
        %v5613 = vrot.slane %v5550, 5
        %v5614 = vrot.slane %v5613, 4
        %v5615 = vrot.slane %v4732, 5
        %v5616 = vsel %vm1215, %v5614, %v5615
        %v5617 = vrot.slane %v5551, 5
        %v5618 = vrot.slane %v5617, 4
        %v5619 = vrot.slane %v4735, 5
        %v5620 = vsel %vm1215, %v5618, %v5619
        %v5621 = vrot.slane %v5552, 5
        %v5622 = vrot.slane %v5621, 4
        %v5623 = vrot.slane %v4736, 5
        %v5624 = vsel %vm1215, %v5622, %v5623
        %v5625 = vrot.slane %v5553, 5
        %v5626 = vrot.slane %v5625, 4
        %v5627 = vrot.slane %v4739, 5
        %v5628 = vsel %vm1215, %v5626, %v5627
        %v5629 = vrot.slane %v5554, 5
        %v5630 = vrot.slane %v5629, 4
        %v5631 = vrot.slane %v4740, 5
        %v5632 = vsel %vm1215, %v5630, %v5631
        %v5633 = vrot.slane %v5555, 5
        %v5634 = vrot.slane %v5633, 4
        %v5635 = vrot.slane %v4743, 5
        %v5636 = vsel %vm1215, %v5634, %v5635
        %v5637 = vrot.slane %v5556, 5
        %v5638 = vrot.slane %v5637, 4
        %v5639 = vrot.slane %v4744, 5
        %v5640 = vsel %vm1215, %v5638, %v5639
        %v5641 = vrot.slane %v5557, 5
        %v5642 = vrot.slane %v5641, 4
        %v5643 = vrot.slane %v4747, 5
        %v5644 = vsel %vm1215, %v5642, %v5643
        %v5645 = vrot.slane %v5558, 5
        %v5646 = vrot.slane %v5645, 4
        %v5647 = vrot.slane %v4748, 5
        %v5648 = vsel %vm1215, %v5646, %v5647
        %v5649 = vrot.slane %v5559, 5
        %v5650 = vrot.slane %v5649, 4
        %v5651 = vrot.slane %v4751, 5
        %v5652 = vsel %vm1215, %v5650, %v5651
        %v5653 = vrot.slane %v5560, 5
        %v5654 = vrot.slane %v5653, 4
        %v5655 = vrot.slane %v4752, 5
        %v5656 = vsel %vm1215, %v5654, %v5655
        %s5657 = scalar_lea.vmem [#allocation2], 2400
        %v5658 = vld [vmem:[%s5657] sm:$0xf]
        %v5659 = vld [vmem:[%s5657 + $0x4] sm:$0xf]
        %v5660 = vld [vmem:[%s5657 + $0x8] sm:$0xf]
        %v5661 = vld [vmem:[%s5657 + $0xc] sm:$0xf]
        %v5662 = vld [vmem:[%s5657 + $0x10] sm:$0xf]
        %v5663 = vld [vmem:[%s5657 + $0x14] sm:$0xf]
        %v5664 = vld [vmem:[%s5657 + $0x18] sm:$0xf]
        %v5665 = vld [vmem:[%s5657 + $0x1c] sm:$0xf]
        %v5666 = vld [vmem:[%s5657 + $0x20] sm:$0xf]
        %v5667 = vld [vmem:[%s5657 + $0x24] sm:$0xf]
        %v5668 = vld [vmem:[%s5657 + $0x28] sm:$0xf]
        %v5669 = vld [vmem:[%s5657 + $0x2c] sm:$0xf]
        %v5670 = vld [vmem:[%s5657 + $0x30] sm:$0xf]
        %v5671 = vld [vmem:[%s5657 + $0x34] sm:$0xf]
        %v5672 = vld [vmem:[%s5657 + $0x38] sm:$0xf]
        %v5673 = vld [vmem:[%s5657 + $0x3c] sm:$0xf]
        %v5674 = vld [vmem:[%s5657 + $0x40] sm:$0xf]
        %v5675 = vld [vmem:[%s5657 + $0x44] sm:$0xf]
        %v5676 = vld [vmem:[%s5657 + $0x48] sm:$0xf]
        %v5677 = vld [vmem:[%s5657 + $0x4c] sm:$0xf]
        %v5678 = vld [vmem:[%s5657 + $0x50] sm:$0xf]
        %v5679 = vld [vmem:[%s5657 + $0x54] sm:$0xf]
        %v5680 = vld [vmem:[%s5657 + $0x58] sm:$0xf]
        %v5681 = vld [vmem:[%s5657 + $0x5c] sm:$0xf]
        %v5682 = vld [vmem:[%s5657 + $0x60] sm:$0xf]
        %v5683 = vld [vmem:[%s5657 + $0x64] sm:$0xf]
        %v5684 = vld [vmem:[%s5657 + $0x68] sm:$0xf]
        %v5685 = vld [vmem:[%s5657 + $0x6c] sm:$0xf]
        %v5686 = vld [vmem:[%s5657 + $0x70] sm:$0xf]
        %v5687 = vld [vmem:[%s5657 + $0x74] sm:$0xf]
        %v5688 = vld [vmem:[%s5657 + $0x78] sm:$0xf]
        %v5689 = vld [vmem:[%s5657 + $0x7c] sm:$0xf]
        %v5690 = vld [vmem:[%s5657 + $0x80] sm:$0xf]
        %v5691 = vld [vmem:[%s5657 + $0x84] sm:$0xf]
        %v5692 = vld [vmem:[%s5657 + $0x88] sm:$0xf]
        %v5693 = vld [vmem:[%s5657 + $0x8c] sm:$0xf]
        %v5694 = vld [vmem:[%s5657 + $0x90] sm:$0xf]
        %v5695 = vld [vmem:[%s5657 + $0x94] sm:$0xf]
        %v5696 = vld [vmem:[%s5657 + $0x98] sm:$0xf]
        %v5697 = vld [vmem:[%s5657 + $0x9c] sm:$0xf]
        %v5698 = vunpack.c.l.b16 %v5596
        %v5699 = vunpack.c.h.b16 %v5596
        %v5700 = vunpack.c.l.b16 %v5600
        %v5701 = vunpack.c.l.b16 %v5604
        %v5702 = vunpack.c.h.b16 %v5604
        %v5703 = vunpack.c.l.b16 %v5608
        %v5704 = vunpack.c.l.b16 %v5612
        %v5705 = vunpack.c.h.b16 %v5612
        %v5706 = vunpack.c.l.b16 %v5616
        %v5707 = vunpack.c.l.b16 %v5620
        %v5708 = vunpack.c.h.b16 %v5620
        %v5709 = vunpack.c.l.b16 %v5624
        %v5710 = vunpack.c.l.b16 %v5628
        %v5711 = vunpack.c.h.b16 %v5628
        %v5712 = vunpack.c.l.b16 %v5632
        %v5713 = vunpack.c.l.b16 %v5636
        %v5714 = vunpack.c.h.b16 %v5636
        %v5715 = vunpack.c.l.b16 %v5640
        %v5716 = vunpack.c.l.b16 %v5644
        %v5717 = vunpack.c.h.b16 %v5644
        %v5718 = vunpack.c.l.b16 %v5648
        %v5719 = vunpack.c.l.b16 %v5652
        %v5720 = vunpack.c.h.b16 %v5652
        %v5721 = vunpack.c.l.b16 %v5656
        %v5722 = vpack.c.b16 %v5701, %v5698
        %v5723 = vpack.c.b16 %v5702, %v5699
        %v5724 = vpack.c.b16 %v5703, %v5700
        %v5725 = vpack.c.b16 %v5707, %v5704
        %v5726 = vpack.c.b16 %v5708, %v5705
        %v5727 = vpack.c.b16 %v5709, %v5706
        %v5728 = vpack.c.b16 %v5713, %v5710
        %v5729 = vpack.c.b16 %v5714, %v5711
        %v5730 = vpack.c.b16 %v5715, %v5712
        %v5731 = vpack.c.b16 %v5719, %v5716
        %v5732 = vpack.c.b16 %v5720, %v5717
        %v5733 = vpack.c.b16 %v5721, %v5718
        %v5782 = vunpack.c.l.b16 %v5658
        %v5783 = vunpack.c.l.b16 %v5659
        %v5784 = vunpack.c.l.b16 %v5660
        %v5785 = vunpack.c.l.b16 %v5661
        %v5786 = vunpack.c.l.b16 %v5662
        %v5787 = vunpack.c.l.b16 %v5663
        %v5788 = vunpack.c.l.b16 %v5664
        %v5789 = vunpack.c.l.b16 %v5665
        %v5790 = vunpack.c.l.b16 %v5666
        %v5791 = vunpack.c.l.b16 %v5667
        %v5792 = vunpack.c.l.b16 %v5668
        %v5793 = vunpack.c.l.b16 %v5669
        %v5794 = vunpack.c.l.b16 %v5670
        %v5795 = vunpack.c.l.b16 %v5671
        %v5796 = vunpack.c.l.b16 %v5672
        %v5797 = vunpack.c.l.b16 %v5673
        %v5798 = vunpack.c.l.b16 %v5674
        %v5799 = vunpack.c.l.b16 %v5675
        %v5800 = vunpack.c.l.b16 %v5676
        %v5801 = vunpack.c.l.b16 %v5677
        %v5802 = vunpack.c.l.b16 %v5678
        %v5803 = vunpack.c.l.b16 %v5679
        %v5804 = vunpack.c.l.b16 %v5680
        %v5805 = vunpack.c.l.b16 %v5681
        %v5806 = vunpack.c.l.b16 %v5682
        %v5807 = vunpack.c.l.b16 %v5683
        %v5808 = vunpack.c.l.b16 %v5684
        %v5809 = vunpack.c.l.b16 %v5685
        %v5810 = vunpack.c.l.b16 %v5686
        %v5811 = vunpack.c.l.b16 %v5687
        %v5812 = vunpack.c.l.b16 %v5688
        %v5813 = vunpack.c.l.b16 %v5689
        %v5814 = vunpack.c.l.b16 %v5690
        %v5815 = vunpack.c.l.b16 %v5691
        %v5816 = vunpack.c.l.b16 %v5692
        %v5817 = vunpack.c.l.b16 %v5693
        %v5818 = vunpack.c.l.b16 %v5694
        %v5819 = vunpack.c.l.b16 %v5695
        %v5820 = vunpack.c.l.b16 %v5696
        %v5821 = vunpack.c.l.b16 %v5697
        %v5822 = vpack.c.b16 %v5783, %v5782
        %v5823 = vpack.c.b16 %v5785, %v5784
        %v5824 = vpack.c.b16 %v5787, %v5786
        %v5825 = vpack.c.b16 %v5789, %v5788
        %v5826 = vpack.c.b16 %v5791, %v5790
        %v5827 = vpack.c.b16 %v5793, %v5792
        %v5828 = vpack.c.b16 %v5795, %v5794
        %v5829 = vpack.c.b16 %v5797, %v5796
        %v5830 = vpack.c.b16 %v5799, %v5798
        %v5831 = vpack.c.b16 %v5801, %v5800
        %v5832 = vpack.c.b16 %v5803, %v5802
        %v5833 = vpack.c.b16 %v5805, %v5804
        %v5834 = vpack.c.b16 %v5807, %v5806
        %v5835 = vpack.c.b16 %v5809, %v5808
        %v5836 = vpack.c.b16 %v5811, %v5810
        %v5837 = vpack.c.b16 %v5813, %v5812
        %v5838 = vpack.c.b16 %v5815, %v5814
        %v5839 = vpack.c.b16 %v5817, %v5816
        %v5840 = vpack.c.b16 %v5819, %v5818
        %v5841 = vpack.c.b16 %v5821, %v5820
        %v5863 = vsel %vm745, %v5724, 0
        %v5866 = vsel %vm745, %v5727, 0
        %v5869 = vsel %vm745, %v5730, 0
        %v5872 = vsel %vm745, %v5733, 0
        %5874 = vmatpush.bf16.msra.mxu0 %v5829
        %5875 = vmatpush.bf16.msra.mxu0 %v5828
        %5876 = vmatpush.bf16.msra.mxu0 %v5827
        %5877 = vmatpush.bf16.msra.mxu0 %v5826
        %5878 = vmatpush.bf16.msra.mxu0 %v5825
        %5879 = vmatpush.bf16.msra.mxu0 %v5824
        %5880 = vmatpush.bf16.msra.mxu0 %v5823
        %5881 = vmatpush.bf16.msra.mxu0 %v5822
        %5882 = vmatmul.bf16.gmra.mxu0 %v5722
        %v5883 = vpop.f32.mrf.mxu0
        %v5884 = vadd.f32 0.0, %v5883
        %v5885 = vpop.f32.mrf.mxu0
        %v5886 = vadd.f32 0.0, %v5885
        %5887 = vmatmul.bf16.gmra.mxu0 %v5725
        %v5888 = vpop.f32.mrf.mxu0
        %v5889 = vadd.f32 0.0, %v5888
        %v5890 = vpop.f32.mrf.mxu0
        %v5891 = vadd.f32 0.0, %v5890
        %5892 = vmatmul.bf16.gmra.mxu0 %v5728
        %v5893 = vpop.f32.mrf.mxu0
        %v5894 = vadd.f32 0.0, %v5893
        %v5895 = vpop.f32.mrf.mxu0
        %v5896 = vadd.f32 0.0, %v5895
        %5897 = vmatmul.bf16.gmra.mxu0 %v5731
        %v5898 = vpop.f32.mrf.mxu0
        %v5899 = vadd.f32 0.0, %v5898
        %v5900 = vpop.f32.mrf.mxu0
        %v5901 = vadd.f32 0.0, %v5900
        %5902 = vdwg.mxu0
        %5903 = vmatpush.bf16.msra.mxu0 %v5837
        %5904 = vmatpush.bf16.msra.mxu0 %v5836
        %5905 = vmatpush.bf16.msra.mxu0 %v5835
        %5906 = vmatpush.bf16.msra.mxu0 %v5834
        %5907 = vmatpush.bf16.msra.mxu0 %v5833
        %5908 = vmatpush.bf16.msra.mxu0 %v5832
        %5909 = vmatpush.bf16.msra.mxu0 %v5831
        %5910 = vmatpush.bf16.msra.mxu0 %v5830
        %5911 = vmatmul.bf16.gmra.mxu0 %v5723
        %v5912 = vpop.f32.mrf.mxu0
        %v5913 = vadd.f32 %v5884, %v5912
        %v5914 = vpop.f32.mrf.mxu0
        %v5915 = vadd.f32 %v5886, %v5914
        %5916 = vmatmul.bf16.gmra.mxu0 %v5726
        %v5917 = vpop.f32.mrf.mxu0
        %v5918 = vadd.f32 %v5889, %v5917
        %v5919 = vpop.f32.mrf.mxu0
        %v5920 = vadd.f32 %v5891, %v5919
        %5921 = vmatmul.bf16.gmra.mxu0 %v5729
        %v5922 = vpop.f32.mrf.mxu0
        %v5923 = vadd.f32 %v5894, %v5922
        %v5924 = vpop.f32.mrf.mxu0
        %v5925 = vadd.f32 %v5896, %v5924
        %5926 = vmatmul.bf16.gmra.mxu0 %v5732
        %v5927 = vpop.f32.mrf.mxu0
        %v5928 = vadd.f32 %v5899, %v5927
        %v5929 = vpop.f32.mrf.mxu0
        %v5930 = vadd.f32 %v5901, %v5929
        %5931 = vdwg.mxu0
        %5932 = vmatpush.bf16.msra.mxu0 0
        %5933 = vmatpush.bf16.msra.mxu0 0
        %5934 = vmatpush.bf16.msra.mxu0 0
        %5935 = vmatpush.bf16.msra.mxu0 0
        %5936 = vmatpush.bf16.msra.mxu0 %v5841
        %5937 = vmatpush.bf16.msra.mxu0 %v5840
        %5938 = vmatpush.bf16.msra.mxu0 %v5839
        %5939 = vmatpush.bf16.msra.mxu0 %v5838
        %5940 = vmatmul.bf16.gmra.mxu0 %v5863
        %v5941 = vpop.f32.mrf.mxu0
        %v5942 = vadd.f32 %v5913, %v5941
        %v5943 = vpop.f32.mrf.mxu0
        %v5944 = vadd.f32 %v5915, %v5943
        %5945 = vmatmul.bf16.gmra.mxu0 %v5866
        %v5946 = vpop.f32.mrf.mxu0
        %v5947 = vadd.f32 %v5918, %v5946
        %v5948 = vpop.f32.mrf.mxu0
        %v5949 = vadd.f32 %v5920, %v5948
        %5950 = vmatmul.bf16.gmra.mxu0 %v5869
        %v5951 = vpop.f32.mrf.mxu0
        %v5952 = vadd.f32 %v5923, %v5951
        %v5953 = vpop.f32.mrf.mxu0
        %v5954 = vadd.f32 %v5925, %v5953
        %5955 = vmatmul.bf16.gmra.mxu0 %v5872
        %v5956 = vpop.f32.mrf.mxu0
        %v5957 = vadd.f32 %v5928, %v5956
        %v5958 = vpop.f32.mrf.mxu0
        %v5959 = vadd.f32 %v5930, %v5958
        %5960 = vdwg.mxu0
        %v5961 = vadd.f32 %v5537, %v5942
        %v5962 = vadd.f32 %v5538, %v5944
        %v5963 = vadd.f32 %v5539, %v5947
        %v5964 = vadd.f32 %v5540, %v5949
        %v5965 = vadd.f32 %v5541, %v5952
        %v5966 = vadd.f32 %v5542, %v5954
        %v5967 = vadd.f32 %v5543, %v5957
        %v5968 = vadd.f32 %v5544, %v5959
        %v5970 = vperm.slane %v240, 0
        %v5972 = vadd.f32 %v2737, %v5970
        %v5973 = vadd.f32 %v2738, %v5970
        %v5974 = vadd.f32 %v2739, %v5970
        %v5975 = vadd.f32 %v2740, %v5970
        %v5976 = vadd.f32 %v2741, %v5970
        %v5977 = vadd.f32 %v2742, %v5970
        %v5978 = vadd.f32 %v2743, %v5970
        %v5979 = vadd.f32 %v2744, %v5970
        %v5980 = vmax.f32 %v5972, 0.0
        %v5981 = vmax.f32 %v5973, 0.0
        %v5982 = vmax.f32 %v5974, 0.0
        %v5983 = vmax.f32 %v5975, 0.0
        %v5984 = vmax.f32 %v5976, 0.0
        %v5985 = vmax.f32 %v5977, 0.0
        %v5986 = vmax.f32 %v5978, 0.0
        %v5987 = vmax.f32 %v5979, 0.0
        %5988 = vst [vmem:[%s238] sm:$0xff] %v5980
        %5989 = vst [vmem:[%s238 + $0x8] sm:$0xff] %v5981
        %5990 = vst [vmem:[%s238 + $0x10] sm:$0xff] %v5982
        %5991 = vst [vmem:[%s238 + $0x18] sm:$0xff] %v5983
        %5992 = vst [vmem:[%s238 + $0x20] sm:$0xff] %v5984
        %5993 = vst [vmem:[%s238 + $0x28] sm:$0xff] %v5985
        %5994 = vst [vmem:[%s238 + $0x30] sm:$0xff] %v5986
        %5995 = vst [vmem:[%s238 + $0x38] sm:$0xff] %v5987
        %v5996 = vadd.f32 %v3913, %v5970
        %v5997 = vadd.f32 %v3914, %v5970
        %v5998 = vadd.f32 %v3915, %v5970
        %v5999 = vadd.f32 %v3916, %v5970
        %v6000 = vadd.f32 %v3917, %v5970
        %v6001 = vadd.f32 %v3918, %v5970
        %v6002 = vadd.f32 %v3919, %v5970
        %v6003 = vadd.f32 %v3920, %v5970
        %v6004 = vmax.f32 %v5996, 0.0
        %v6005 = vmax.f32 %v5997, 0.0
        %v6006 = vmax.f32 %v5998, 0.0
        %v6007 = vmax.f32 %v5999, 0.0
        %v6008 = vmax.f32 %v6000, 0.0
        %v6009 = vmax.f32 %v6001, 0.0
        %v6010 = vmax.f32 %v6002, 0.0
        %v6011 = vmax.f32 %v6003, 0.0
        %s6012 = scalar_lea.vmem %s238, 64
        %6013 = vst [vmem:[%s6012] sm:$0xff] %v6004
        %6014 = vst [vmem:[%s6012 + $0x8] sm:$0xff] %v6005
        %6015 = vst [vmem:[%s6012 + $0x10] sm:$0xff] %v6006
        %6016 = vst [vmem:[%s6012 + $0x18] sm:$0xff] %v6007
        %6017 = vst [vmem:[%s6012 + $0x20] sm:$0xff] %v6008
        %6018 = vst [vmem:[%s6012 + $0x28] sm:$0xff] %v6009
        %6019 = vst [vmem:[%s6012 + $0x30] sm:$0xff] %v6010
        %6020 = vst [vmem:[%s6012 + $0x38] sm:$0xff] %v6011
        %v6021 = vadd.f32 %v5281, %v5970
        %v6022 = vadd.f32 %v5282, %v5970
        %v6023 = vadd.f32 %v5283, %v5970
        %v6024 = vadd.f32 %v5284, %v5970
        %v6025 = vadd.f32 %v5285, %v5970
        %v6026 = vadd.f32 %v5286, %v5970
        %v6027 = vadd.f32 %v5287, %v5970
        %v6028 = vadd.f32 %v5288, %v5970
        %v6029 = vmax.f32 %v6021, 0.0
        %v6030 = vmax.f32 %v6022, 0.0
        %v6031 = vmax.f32 %v6023, 0.0
        %v6032 = vmax.f32 %v6024, 0.0
        %v6033 = vmax.f32 %v6025, 0.0
        %v6034 = vmax.f32 %v6026, 0.0
        %v6035 = vmax.f32 %v6027, 0.0
        %v6036 = vmax.f32 %v6028, 0.0
        %s6037 = scalar_lea.vmem %s238, 128
        %6038 = vst [vmem:[%s6037] sm:$0xff] %v6029
        %6039 = vst [vmem:[%s6037 + $0x8] sm:$0xff] %v6030
        %6040 = vst [vmem:[%s6037 + $0x10] sm:$0xff] %v6031
        %6041 = vst [vmem:[%s6037 + $0x18] sm:$0xff] %v6032
        %6042 = vst [vmem:[%s6037 + $0x20] sm:$0xff] %v6033
        %6043 = vst [vmem:[%s6037 + $0x28] sm:$0xff] %v6034
        %6044 = vst [vmem:[%s6037 + $0x30] sm:$0xff] %v6035
        %6045 = vst [vmem:[%s6037 + $0x38] sm:$0xff] %v6036
        %v6046 = vadd.f32 %v5961, %v5970
        %v6047 = vadd.f32 %v5962, %v5970
        %v6048 = vadd.f32 %v5963, %v5970
        %v6049 = vadd.f32 %v5964, %v5970
        %v6050 = vadd.f32 %v5965, %v5970
        %v6051 = vadd.f32 %v5966, %v5970
        %v6052 = vadd.f32 %v5967, %v5970
        %v6053 = vadd.f32 %v5968, %v5970
        %v6054 = vmax.f32 %v6046, 0.0
        %v6055 = vmax.f32 %v6047, 0.0
        %v6056 = vmax.f32 %v6048, 0.0
        %v6057 = vmax.f32 %v6049, 0.0
        %v6058 = vmax.f32 %v6050, 0.0
        %v6059 = vmax.f32 %v6051, 0.0
        %v6060 = vmax.f32 %v6052, 0.0
        %v6061 = vmax.f32 %v6053, 0.0
        %s6062 = scalar_lea.vmem %s238, 192
        %6063 = vst [vmem:[%s6062] sm:$0xff] %v6054
        %6064 = vst [vmem:[%s6062 + $0x8] sm:$0xff] %v6055
        %6065 = vst [vmem:[%s6062 + $0x10] sm:$0xff] %v6056
        %6066 = vst [vmem:[%s6062 + $0x18] sm:$0xff] %v6057
        %6067 = vst [vmem:[%s6062 + $0x20] sm:$0xff] %v6058
        %6068 = vst [vmem:[%s6062 + $0x28] sm:$0xff] %v6059
        %6069 = vst [vmem:[%s6062 + $0x30] sm:$0xff] %v6060
        %6070 = vst [vmem:[%s6062 + $0x38] sm:$0xff] %v6061
        %p6071 = scmp.lt.s32.totalorder %s20, 1
        %s6072 = scalar_select %p6071, %s20, 1
        %p6073 = scmp.lt.s32.totalorder %s21, 0
        %s6074 = scalar_select %p6073, %s21, 0
        %s6075 = smul.addr %s6074, 32
        %s6076 = smul.addr %s6072, 32
        %s6077 = sadd.s32 %s6075, %s6076
        %s6078 = smul.addr %s6077, 8
        %s6079 = scalar_lea.vmem %s3, %s6078
        // Predicated region
        $region41: #{secret_embedder_forward.1} parent=31 // pred_check
          %p6080 = pneg %p118
        $region42: #{secret_embedder_forward.1} parent=31 // pred_check_branch
          %6082 = sbr.rel (%p6080) target = $region44
        $region43: #{secret_embedder_forward.1} parent=31 // pred_region
          _
        $region44: #{secret_embedder_forward.1} parent=31 // pred_fallthru
          _
      $region32: #{secret_embedder_forward.1} parent=5 // pred_fallthru
        _
      %p6083 = scmp.le.s32.totalorder 2, %s11
      // Predicated region
      $region45: #{secret_embedder_forward.1} parent=5 // pred_check
        %p6084 = pneg %p6083
      $region46: #{secret_embedder_forward.1} parent=5 // pred_check_branch
        %6086 = sbr.rel (%p6084) target = $region48
      $region47: #{secret_embedder_forward.1} parent=5 // pred_region
        %s6087 = ssub.s32 %s11, 2
        // Predicated region
        $region49: #{secret_embedder_forward.1} parent=47 // pred_check
          %p6088 = pneg %p124
        $region50: #{secret_embedder_forward.1} parent=47 // pred_check_branch
          %6090 = sbr.rel (%p6088) target = $region52
        $region51: #{secret_embedder_forward.1} parent=47 // pred_region
          %p6091 = scmp.lt.s32.totalorder %s22, 1
          %s6092 = scalar_select %p6091, %s22, 1
          %p6093 = scmp.lt.s32.totalorder %s23, 0
          %s6094 = scalar_select %p6093, %s23, 0
          %s6095 = smul.addr %s6094, 32
          %s6096 = smul.addr %s6092, 32
          %s6097 = sadd.s32 %s6095, %s6096
          %s6098 = smul.addr %s6097, 8
          %s6099 = scalar_lea.vmem %s3, %s6098
        $region52: #{secret_embedder_forward.1} parent=47 // pred_fallthru
          _
      $region48: #{secret_embedder_forward.1} parent=5 // pred_fallthru
        _
    $region6: #{secret_embedder_forward.1} parent=1 // loop_footer
      %s15 = sadd.s32 1, %s11
    $region7: #{secret_embedder_forward.1} parent=1 // loop_footer_branch
      %10 = sbr.rel target = $region3
    $region8: #{secret_embedder_forward.1} parent=1 // loop_exit
      _
    %6100 = vsyncpa [#allocation3], 1
    %s6101 = scalar_lea.sflag [#allocation3], 1
    %6102 = vsyncpa %s6101, 1
    %6103 = vsyncpa [#allocation5], 1

</llo_original>
